<compile_context>
chip_gen: v7x
topology: tpu7x:2x2x1
jax: 0.10.0
libtpu: 0.0.40
codegen_flags: <defaults>
</compile_context>

<pallas_src>
import functools

import jax
import jax.numpy as jnp
import numpy as np
from jax import lax
from jax.experimental import pallas as pl
from jax.experimental.pallas import tpu as pltpu

EPS = 1e-5  # nn.InstanceNorm2d default


def _round_up(x, m):
    return ((x + m - 1) // m) * m


# ----------------------------- Pallas kernel ---------------------------------
def hdd_kernel(
    H, W, fuse_sc,
    x_ref,                                     # (B_blk, in_ch, HW) f32
    okwm_ref, okwp_ref, okhm_ref, okhp_ref,    # (1, HW) f32 boundary masks
    wmid_ref, bmid_ref,                        # (out_p, in_ch) bf16, (out_p, 1) f32
    wt11_ref, b11_ref,                         # (mid_p, 3*mid_p) bf16, (mid_p, 1) f32
    wt21_ref, b21_ref,
    wt31_ref, b31_ref,
    w1_ref, b1_ref,                            # (out_p, out_p) bf16, (out_p, 1) f32
    wt12_ref, b12_ref,
    wt22_ref, b22_ref,
    wt32_ref, b32_ref,
    w2sc_ref, b2sc_ref,                        # (out_p, out_p [+ in_ch]) bf16, (out_p,1) f32
    out_ref,                                   # (B_blk, out_p, HW) f32
):
    HW = H * W
    B_blk = x_ref.shape[0]
    mid_p = wt11_ref.shape[0]

    ok_wm = okwm_ref[...]
    ok_wp = okwp_ref[...]
    ok_hm = okhm_ref[...]
    ok_hp = okhp_ref[...]

    def mm(w_bf16, a_f32):
        # bf16 operands -> f32 accumulation on the MXU.
        return jnp.dot(w_bf16, a_f32.astype(jnp.bfloat16),
                       preferred_element_type=jnp.float32)

    def inorm_relu(y):
        # Per-channel InstanceNorm over spatial lanes; single pass: var = E[y^2]-mu^2.
        mu = jnp.mean(y, axis=1, keepdims=True)
        ms = jnp.mean(y * y, axis=1, keepdims=True)
        var = jnp.maximum(ms - mu * mu, 0.0)
        return jnp.maximum((y - mu) * lax.rsqrt(var + EPS), 0.0)

    def conv_tap(xv, wt, b, s, ok_m, ok_p):
        # out[:,p] = Wt @ [x[p-s]; x[p]; x[p+s]] + b  (zero padding via masks).
        xm = pltpu.roll(xv, s, 1) * ok_m        # value at p-s   (lane rotate, XLU)
        xp = pltpu.roll(xv, HW - s, 1) * ok_p   # value at p+s   (roll by -s mod HW)
        cat = jnp.concatenate([xm, xv, xp], axis=0)   # (3*mid_p, HW), 8-aligned pieces
        return mm(wt, cat) + b

    # Load weights once; reused by every sample of the batch block.
    wmid, bmid = wmid_ref[...], bmid_ref[...]
    wt11, b11 = wt11_ref[...], b11_ref[...]
    wt21, b21 = wt21_ref[...], b21_ref[...]
    wt31, b31 = wt31_ref[...], b31_ref[...]
    w1, b1 = w1_ref[...], b1_ref[...]
    wt12, b12 = wt12_ref[...], b12_ref[...]
    wt22, b22 = wt22_ref[...], b22_ref[...]
    wt32, b32 = wt32_ref[...], b32_ref[...]
    w2sc, b2sc = w2sc_ref[...], b2sc_ref[...]

    for bi in range(B_blk):                    # static unroll; amortizes per-step overhead
        x = x_ref[bi]                          # (in_ch, HW) f32

        # conv1x1_mid (Conv + InstanceNorm + ReLU) -- one packed matmul.
        xxx = inorm_relu(mm(wmid, x) + bmid)
        x0 = xxx[0 * mid_p:1 * mid_p]
        x1 = xxx[1 * mid_p:2 * mid_p]
        x2 = xxx[2 * mid_p:3 * mid_p]
        x3 = xxx[3 * mid_p:4 * mid_p]

        # [1,3] conv blocks (shift along W by +/-1), one fused matmul each.
        x4 = inorm_relu(conv_tap(x1, wt11, b11, 1, ok_wm, ok_wp))
        x5 = inorm_relu(conv_tap(x2 + x4, wt21, b21, 1, ok_wm, ok_wp))
        x6 = inorm_relu(conv_tap(x5 + x3, wt31, b31, 1, ok_wm, ok_wp))

        # conv1x1_1 on concat(x0, x4, x5, x6): single matmul (no norm/act).
        cat1 = jnp.concatenate([x0, x4, x5, x6], axis=0)       # 8-aligned concat
        xxx2 = mm(w1, cat1) + b1
        m0 = xxx2[0 * mid_p:1 * mid_p]
        m1 = xxx2[1 * mid_p:2 * mid_p]
        m2 = xxx2[2 * mid_p:3 * mid_p]
        m3 = xxx2[3 * mid_p:4 * mid_p]

        # [3,1] conv blocks (shift along H by +/-W).
        y4 = inorm_relu(conv_tap(m1, wt12, b12, W, ok_hm, ok_hp))
        y5 = inorm_relu(conv_tap(y4 + m2, wt22, b22, W, ok_hm, ok_hp))
        y6 = inorm_relu(conv_tap(y5 + m3, wt32, b32, W, ok_hm, ok_hp))

        # conv1x1_2 (+ fused short-connect) + residual (pre-act conv1x1_1 output) + ReLU.
        parts = [m0, y4, y5, y6]
        if fuse_sc:
            parts.append(x)                    # short connect folded into the same matmul
        cat2 = jnp.concatenate(parts, axis=0)
        xx = mm(w2sc, cat2) + b2sc
        res = xx + xxx2 if fuse_sc else xx + xxx2 + x
        out_ref[bi] = jnp.maximum(res, 0.0).astype(out_ref.dtype)


# ----------------------------- glue / wrapper --------------------------------
def init_params(key, in_ch, out_ch):
    mid = out_ch // 4
    keys = iter(jax.random.split(key, 32))

    def w(shape):
        return jax.random.normal(next(keys), shape, jnp.float32) * 0.2

    p = dict(
        w_mid=w((in_ch, out_ch)), b_mid=w((out_ch,)),
        w11=w((3, mid, mid)), b11=w((mid,)),
        w21=w((3, mid, mid)), b21=w((mid,)),
        w31=w((3, mid, mid)), b31=w((mid,)),
        w1=w((out_ch, out_ch)), b1=w((out_ch,)),
        w12=w((3, mid, mid)), b12=w((mid,)),
        w22=w((3, mid, mid)), b22=w((mid,)),
        w32=w((3, mid, mid)), b32=w((mid,)),
        w2=w((out_ch, out_ch)), b2=w((out_ch,)),
    )
    if in_ch != out_ch:
        p["w_sc"] = w((in_ch, out_ch))
        p["b_sc"] = w((out_ch,))
    return p


def _prep_params(p, in_ch, out_ch):
    """Pad grouped channels to 8-sublane multiples, fuse tap weights into one matrix
    per conv, fuse short-connect into conv1x1_2, and cast MXU weights to bf16."""
    mid = out_ch // 4
    mid_p = _round_up(mid, 8)
    out_p = 4 * mid_p

    # real channel c (group g, offset r) -> padded row g*mid_p + r
    pad_idx = np.concatenate([np.arange(mid) + g * mid_p for g in range(4)])

    def f32(a):
        return np.asarray(a, np.float32)

    def scat_rows(w_oi):                     # (out_ch, K) -> (out_p, K)
        out = np.zeros((out_p, w_oi.shape[1]), np.float32)
        out[pad_idx, :] = w_oi
        return out

    def scat_cols(w_ro):                     # (R, out_ch) -> (R, out_p)
        out = np.zeros((w_ro.shape[0], out_p), np.float32)
        out[:, pad_idx] = w_ro
        return out

    def scat_bias(b):                        # (out_ch,) -> (out_p, 1)
        out = np.zeros((out_p, 1), np.float32)
        out[pad_idx, 0] = b
        return out

    def fuse_tap(w3):                        # (3, in=mid, out=mid) -> (mid_p, 3*mid_p)
        wt = np.zeros((mid_p, 3 * mid_p), np.float32)
        for k in range(3):
            wt[:mid, k * mid_p:k * mid_p + mid] = w3[k].T   # (out, in) per tap
        return wt

    def pad_mid_bias(b):                     # (mid,) -> (mid_p, 1)
        out = np.zeros((mid_p, 1), np.float32)
        out[:mid, 0] = b
        return out

    w_mid = scat_rows(f32(p["w_mid"]).T)                 # (out_p, in_ch)
    b_mid = scat_bias(f32(p["b_mid"]))
    w1 = scat_cols(scat_rows(f32(p["w1"]).T))            # (out_p, out_p)
    b1 = scat_bias(f32(p["b1"]))
    w2 = scat_cols(scat_rows(f32(p["w2"]).T))            # (out_p, out_p)
    b2 = scat_bias(f32(p["b2"]))

    # Short connect: fuse into conv1x1_2 unless the residual is a plain, unpadded add.
    fuse_sc = ("w_sc" in p) or (mid_p != mid)
    if not fuse_sc:
        w2sc, b2sc = w2, b2                              # residual added directly in-kernel
    else:
        if "w_sc" in p:
            wsc = scat_rows(f32(p["w_sc"]).T)            # (out_p, in_ch)
            bsc = scat_bias(f32(p["b_sc"]))
        else:                                            # identity residual, padded layout
            wsc = scat_rows(np.eye(out_ch, in_ch, dtype=np.float32))
            bsc = np.zeros((out_p, 1), np.float32)
        w2sc = np.concatenate([w2, wsc], axis=1)         # (out_p, out_p + in_ch)
        b2sc = b2 + bsc

    bf = lambda a: jnp.asarray(a, jnp.bfloat16)          # MXU operands in bf16
    ff = lambda a: jnp.asarray(a, jnp.float32)

    wlist = [
        bf(w_mid), ff(b_mid),
        bf(fuse_tap(f32(p["w11"]))), ff(pad_mid_bias(f32(p["b11"]))),
        bf(fuse_tap(f32(p["w21"]))), ff(pad_mid_bias(f32(p["b21"]))),
        bf(fuse_tap(f32(p["w31"]))), ff(pad_mid_bias(f32(p["b31"]))),
        bf(w1), ff(b1),
        bf(fuse_tap(f32(p["w12"]))), ff(pad_mid_bias(f32(p["b12"]))),
        bf(fuse_tap(f32(p["w22"]))), ff(pad_mid_bias(f32(p["b22"]))),
        bf(fuse_tap(f32(p["w32"]))), ff(pad_mid_bias(f32(p["b32"]))),
        bf(w2sc), ff(b2sc),
    ]
    return wlist, fuse_sc, mid_p, out_p


def hdd_forward(x_nchw, params):
    N, in_ch, H, W = x_nchw.shape
    out_ch = params["w1"].shape[0]
    mid = out_ch // 4
    HW = H * W

    # NCHW -> (N, C, H*W): pure reshape, no layout transpose needed in this scheme.
    x = x_nchw.reshape(N, in_ch, HW).astype(jnp.float32)
    wlist, fuse_sc, mid_p, out_p = _prep_params(params, in_ch, out_ch)

    # Host-built, grid-invariant boundary masks (no in-kernel div/mod).
    wi = np.arange(HW, dtype=np.int64) % W
    hi = np.arange(HW, dtype=np.int64) // W
    masks = [
        jnp.asarray((wi > 0).astype(np.float32)[None, :]),      # x[h, w-1] valid
        jnp.asarray((wi < W - 1).astype(np.float32)[None, :]),  # x[h, w+1] valid
        jnp.asarray((hi > 0).astype(np.float32)[None, :]),      # x[h-1, w] valid
        jnp.asarray((hi < H - 1).astype(np.float32)[None, :]),  # x[h+1, w] valid
    ]

    # Batch block per grid step: largest divisor of N up to 8 (amortize step overhead).
    B_blk = 1
    for cand in range(min(N, 8), 0, -1):
        if N % cand == 0:
            B_blk = cand
            break
    grid = (N // B_blk,)

    def full_spec(a):
        nd = a.ndim
        return pl.BlockSpec(a.shape, lambda n, _nd=nd: (0,) * _nd)

    in_specs = (
        [pl.BlockSpec((B_blk, in_ch, HW), lambda n: (n, 0, 0))]
        + [full_spec(m) for m in masks]
        + [full_spec(a) for a in wlist]
    )
    out_spec = pl.BlockSpec((B_blk, out_p, HW), lambda n: (n, 0, 0))

    # Rough cost hint for the XLA scheduler.
    flops_per_n = 2 * HW * (out_p * in_ch               # conv1x1_mid
                            + 6 * mid_p * 3 * mid_p     # six fused 3-tap convs
                            + out_p * out_p             # conv1x1_1
                            + out_p * (out_p + in_ch))  # conv1x1_2 + fused short connect
    w_bytes = sum(int(np.prod(a.shape)) * a.dtype.itemsize for a in wlist)
    cost = pl.CostEstimate(
        flops=N * flops_per_n,
        transcendentals=N * (out_p + 6 * mid_p),        # rsqrt per normalized channel
        bytes_accessed=N * 4 * HW * (in_ch + out_p) + w_bytes,
    )

    # Explicit VMEM budget (v7x has only 64 MiB physical / 32 MiB default scoped).
    vmem_est = (w_bytes + 4 * HW * 4
                + 2 * 2 * B_blk * HW * 4 * (in_ch + out_p)     # double-buffered I/O blocks
                + 16 * B_blk * out_p * HW * 4)                 # live intermediates (rough)
    vmem_limit = int(min(max(2 * vmem_est, 8 << 20), 32 << 20))

    out = pl.pallas_call(
        functools.partial(hdd_kernel, H, W, fuse_sc),
        out_shape=jax.ShapeDtypeStruct((N, out_p, HW), jnp.float32),
        grid=grid,
        in_specs=in_specs,
        out_specs=out_spec,
        compiler_params=pltpu.CompilerParams(
            dimension_semantics=("parallel",),
            vmem_limit_bytes=vmem_limit,
        ),
        cost_estimate=cost,
    )(x, *masks, *wlist)

    # Drop the zero-padded channels of each group, then back to NCHW.
    out = out.reshape(N, 4, mid_p, HW)[:, :, :mid, :].reshape(N, out_ch, HW)
    return out.reshape(N, out_ch, H, W)


# ----------------------------- plain-JAX reference ---------------------------
def _conv_nhwc(x, w_hwio, b, pad):
    y = lax.conv_general_dilated(
        x, w_hwio, (1, 1), pad,
        dimension_numbers=("NHWC", "HWIO", "NHWC"),
        precision=lax.Precision.HIGHEST,
    )
    return y + b.reshape(1, 1, 1, -1)


def _inorm_relu_nhwc(y):
    mu = jnp.mean(y, axis=(1, 2), keepdims=True)
    var = jnp.mean((y - mu) ** 2, axis=(1, 2), keepdims=True)
    return jnp.maximum((y - mu) * lax.rsqrt(var + EPS), 0.0)


def hdd_reference(x_nchw, params):
    in_ch = x_nchw.shape[1]
    out_ch = params["w1"].shape[0]
    mid = out_ch // 4
    p = params
    x = jnp.transpose(x_nchw, (0, 2, 3, 1)).astype(jnp.float32)

    cb_1x1 = lambda xi, w, b: _inorm_relu_nhwc(_conv_nhwc(xi, w[None, None], b, [(0, 0), (0, 0)]))
    cb_1x3 = lambda xi, w3, b: _inorm_relu_nhwc(_conv_nhwc(xi, w3[None], b, [(0, 0), (1, 1)]))
    cb_3x1 = lambda xi, w3, b: _inorm_relu_nhwc(_conv_nhwc(xi, w3[:, None], b, [(1, 1), (0, 0)]))

    xxx = cb_1x1(x, p["w_mid"], p["b_mid"])
    x0, x1, x2, x3 = (xxx[..., i * mid:(i + 1) * mid] for i in range(4))
    x4 = cb_1x3(x1, p["w11"], p["b11"])
    x5 = cb_1x3(x2 + x4, p["w21"], p["b21"])
    x6 = cb_1x3(x5 + x3, p["w31"], p["b31"])
    xxx2 = _conv_nhwc(jnp.concatenate([x0, x4, x5, x6], -1), p["w1"][None, None],
                      p["b1"], [(0, 0), (0, 0)])
    x0_0, x1_2, x2_2, x3_2 = (xxx2[..., i * mid:(i + 1) * mid] for i in range(4))
    y4 = cb_3x1(x1_2, p["w12"], p["b12"])
    y5 = cb_3x1(y4 + x2_2, p["w22"], p["b22"])
    y6 = cb_3x1(y5 + x3_2, p["w32"], p["b32"])
    xx = _conv_nhwc(jnp.concatenate([x0_0, y4, y5, y6], -1), p["w2"][None, None],
                    p["b2"], [(0, 0), (0, 0)])
    if in_ch != out_ch:
        x_sc = _conv_nhwc(x, p["w_sc"][None, None], p["b_sc"], [(0, 0), (0, 0)])
    else:
        x_sc = x
    out = jnp.maximum(xx + x_sc + xxx2, 0.0)
    return jnp.transpose(out, (0, 3, 1, 2))


# ----------------------------------- main -------------------------------------
if __name__ == "__main__":
    N, in_ch, out_ch, H, W = 2, 4, 8, 16, 16
    key = jax.random.PRNGKey(0)
    kx, kp = jax.random.split(key)
    x = jax.random.normal(kx, (N, in_ch, H, W), jnp.float32)
    params = init_params(kp, in_ch, out_ch)

    out = jax.block_until_ready(hdd_forward(x, params))
    assert out.shape == (N, out_ch, H, W)

    ref = jax.block_until_ready(hdd_reference(x, params))
    # bf16 MXU operands (per perf review) -> slightly looser tolerance than pure-f32.
    np.testing.assert_allclose(np.asarray(out), np.asarray(ref), rtol=5e-2, atol=5e-2)

    print("KERNEL_OK")
</pallas_src>

<mosaic_0001>
module attributes {stable_mosaic.version = 11 : i64} {
  func.func @hdd_kernel(%arg0: i32, %arg1: memref<2x4x256xf32, #tpu.memory_space<vmem>>, %arg2: memref<1x256xf32, #tpu.memory_space<vmem>>, %arg3: memref<1x256xf32, #tpu.memory_space<vmem>>, %arg4: memref<1x256xf32, #tpu.memory_space<vmem>>, %arg5: memref<1x256xf32, #tpu.memory_space<vmem>>, %arg6: memref<32x4xbf16, #tpu.memory_space<vmem>>, %arg7: memref<32x1xf32, #tpu.memory_space<vmem>>, %arg8: memref<8x24xbf16, #tpu.memory_space<vmem>>, %arg9: memref<8x1xf32, #tpu.memory_space<vmem>>, %arg10: memref<8x24xbf16, #tpu.memory_space<vmem>>, %arg11: memref<8x1xf32, #tpu.memory_space<vmem>>, %arg12: memref<8x24xbf16, #tpu.memory_space<vmem>>, %arg13: memref<8x1xf32, #tpu.memory_space<vmem>>, %arg14: memref<32x32xbf16, #tpu.memory_space<vmem>>, %arg15: memref<32x1xf32, #tpu.memory_space<vmem>>, %arg16: memref<8x24xbf16, #tpu.memory_space<vmem>>, %arg17: memref<8x1xf32, #tpu.memory_space<vmem>>, %arg18: memref<8x24xbf16, #tpu.memory_space<vmem>>, %arg19: memref<8x1xf32, #tpu.memory_space<vmem>>, %arg20: memref<8x24xbf16, #tpu.memory_space<vmem>>, %arg21: memref<8x1xf32, #tpu.memory_space<vmem>>, %arg22: memref<32x36xbf16, #tpu.memory_space<vmem>>, %arg23: memref<32x1xf32, #tpu.memory_space<vmem>>, %arg24: memref<2x32x256xf32, #tpu.memory_space<vmem>>) attributes {dimension_semantics = [#tpu.dimension_semantics<parallel>], iteration_bounds = array<i64: 1>, scalar_prefetch = 0 : i64, scratch_operands = 0 : i64, tpu.core_type = #tpu.core_type<tc>, window_params = [{transform_indices = @transform_0, window_bounds = array<i64: 2, 4, 256>}, {pipeline_mode = #tpu.pipeline_mode<synchronous>, transform_indices = @transform_1, window_bounds = array<i64: 1, 256>}, {pipeline_mode = #tpu.pipeline_mode<synchronous>, transform_indices = @transform_2, window_bounds = array<i64: 1, 256>}, {pipeline_mode = #tpu.pipeline_mode<synchronous>, transform_indices = @transform_3, window_bounds = array<i64: 1, 256>}, {pipeline_mode = #tpu.pipeline_mode<synchronous>, transform_indices = @transform_4, window_bounds = array<i64: 1, 256>}, {pipeline_mode = #tpu.pipeline_mode<synchronous>, transform_indices = @transform_5, window_bounds = array<i64: 32, 4>}, {pipeline_mode = #tpu.pipeline_mode<synchronous>, transform_indices = @transform_6, window_bounds = array<i64: 32, 1>}, {pipeline_mode = #tpu.pipeline_mode<synchronous>, transform_indices = @transform_7, window_bounds = array<i64: 8, 24>}, {pipeline_mode = #tpu.pipeline_mode<synchronous>, transform_indices = @transform_8, window_bounds = array<i64: 8, 1>}, {pipeline_mode = #tpu.pipeline_mode<synchronous>, transform_indices = @transform_9, window_bounds = array<i64: 8, 24>}, {pipeline_mode = #tpu.pipeline_mode<synchronous>, transform_indices = @transform_10, window_bounds = array<i64: 8, 1>}, {pipeline_mode = #tpu.pipeline_mode<synchronous>, transform_indices = @transform_11, window_bounds = array<i64: 8, 24>}, {pipeline_mode = #tpu.pipeline_mode<synchronous>, transform_indices = @transform_12, window_bounds = array<i64: 8, 1>}, {pipeline_mode = #tpu.pipeline_mode<synchronous>, transform_indices = @transform_13, window_bounds = array<i64: 32, 32>}, {pipeline_mode = #tpu.pipeline_mode<synchronous>, transform_indices = @transform_14, window_bounds = array<i64: 32, 1>}, {pipeline_mode = #tpu.pipeline_mode<synchronous>, transform_indices = @transform_15, window_bounds = array<i64: 8, 24>}, {pipeline_mode = #tpu.pipeline_mode<synchronous>, transform_indices = @transform_16, window_bounds = array<i64: 8, 1>}, {pipeline_mode = #tpu.pipeline_mode<synchronous>, transform_indices = @transform_17, window_bounds = array<i64: 8, 24>}, {pipeline_mode = #tpu.pipeline_mode<synchronous>, transform_indices = @transform_18, window_bounds = array<i64: 8, 1>}, {pipeline_mode = #tpu.pipeline_mode<synchronous>, transform_indices = @transform_19, window_bounds = array<i64: 8, 24>}, {pipeline_mode = #tpu.pipeline_mode<synchronous>, transform_indices = @transform_20, window_bounds = array<i64: 8, 1>}, {pipeline_mode = #tpu.pipeline_mode<synchronous>, transform_indices = @transform_21, window_bounds = array<i64: 32, 36>}, {pipeline_mode = #tpu.pipeline_mode<synchronous>, transform_indices = @transform_22, window_bounds = array<i64: 32, 1>}, {transform_indices = @transform_23, window_bounds = array<i64: 2, 32, 256>}]} {
    %c0 = arith.constant 0 : index
    %c0_0 = arith.constant 0 : index
    %0 = vector.load %arg2[%c0, %c0_0] : memref<1x256xf32, #tpu.memory_space<vmem>>, vector<1x256xf32>
    %c0_1 = arith.constant 0 : index
    %c0_2 = arith.constant 0 : index
    %1 = vector.load %arg3[%c0_1, %c0_2] : memref<1x256xf32, #tpu.memory_space<vmem>>, vector<1x256xf32>
    %c0_3 = arith.constant 0 : index
    %c0_4 = arith.constant 0 : index
    %2 = vector.load %arg4[%c0_3, %c0_4] : memref<1x256xf32, #tpu.memory_space<vmem>>, vector<1x256xf32>
    %c0_5 = arith.constant 0 : index
    %c0_6 = arith.constant 0 : index
    %3 = vector.load %arg5[%c0_5, %c0_6] : memref<1x256xf32, #tpu.memory_space<vmem>>, vector<1x256xf32>
    %c0_7 = arith.constant 0 : index
    %c0_8 = arith.constant 0 : index
    %4 = vector.load %arg6[%c0_7, %c0_8] : memref<32x4xbf16, #tpu.memory_space<vmem>>, vector<32x4xbf16>
    %c0_9 = arith.constant 0 : index
    %c0_10 = arith.constant 0 : index
    %5 = vector.load %arg7[%c0_9, %c0_10] : memref<32x1xf32, #tpu.memory_space<vmem>>, vector<32x1xf32>
    %c0_11 = arith.constant 0 : index
    %c0_12 = arith.constant 0 : index
    %6 = vector.load %arg8[%c0_11, %c0_12] : memref<8x24xbf16, #tpu.memory_space<vmem>>, vector<8x24xbf16>
    %c0_13 = arith.constant 0 : index
    %c0_14 = arith.constant 0 : index
    %7 = vector.load %arg9[%c0_13, %c0_14] : memref<8x1xf32, #tpu.memory_space<vmem>>, vector<8x1xf32>
    %c0_15 = arith.constant 0 : index
    %c0_16 = arith.constant 0 : index
    %8 = vector.load %arg10[%c0_15, %c0_16] : memref<8x24xbf16, #tpu.memory_space<vmem>>, vector<8x24xbf16>
    %c0_17 = arith.constant 0 : index
    %c0_18 = arith.constant 0 : index
    %9 = vector.load %arg11[%c0_17, %c0_18] : memref<8x1xf32, #tpu.memory_space<vmem>>, vector<8x1xf32>
    %c0_19 = arith.constant 0 : index
    %c0_20 = arith.constant 0 : index
    %10 = vector.load %arg12[%c0_19, %c0_20] : memref<8x24xbf16, #tpu.memory_space<vmem>>, vector<8x24xbf16>
    %c0_21 = arith.constant 0 : index
    %c0_22 = arith.constant 0 : index
    %11 = vector.load %arg13[%c0_21, %c0_22] : memref<8x1xf32, #tpu.memory_space<vmem>>, vector<8x1xf32>
    %c0_23 = arith.constant 0 : index
    %c0_24 = arith.constant 0 : index
    %12 = vector.load %arg14[%c0_23, %c0_24] : memref<32x32xbf16, #tpu.memory_space<vmem>>, vector<32x32xbf16>
    %c0_25 = arith.constant 0 : index
    %c0_26 = arith.constant 0 : index
    %13 = vector.load %arg15[%c0_25, %c0_26] : memref<32x1xf32, #tpu.memory_space<vmem>>, vector<32x1xf32>
    %c0_27 = arith.constant 0 : index
    %c0_28 = arith.constant 0 : index
    %14 = vector.load %arg16[%c0_27, %c0_28] : memref<8x24xbf16, #tpu.memory_space<vmem>>, vector<8x24xbf16>
    %c0_29 = arith.constant 0 : index
    %c0_30 = arith.constant 0 : index
    %15 = vector.load %arg17[%c0_29, %c0_30] : memref<8x1xf32, #tpu.memory_space<vmem>>, vector<8x1xf32>
    %c0_31 = arith.constant 0 : index
    %c0_32 = arith.constant 0 : index
    %16 = vector.load %arg18[%c0_31, %c0_32] : memref<8x24xbf16, #tpu.memory_space<vmem>>, vector<8x24xbf16>
    %c0_33 = arith.constant 0 : index
    %c0_34 = arith.constant 0 : index
    %17 = vector.load %arg19[%c0_33, %c0_34] : memref<8x1xf32, #tpu.memory_space<vmem>>, vector<8x1xf32>
    %c0_35 = arith.constant 0 : index
    %c0_36 = arith.constant 0 : index
    %18 = vector.load %arg20[%c0_35, %c0_36] : memref<8x24xbf16, #tpu.memory_space<vmem>>, vector<8x24xbf16>
    %c0_37 = arith.constant 0 : index
    %c0_38 = arith.constant 0 : index
    %19 = vector.load %arg21[%c0_37, %c0_38] : memref<8x1xf32, #tpu.memory_space<vmem>>, vector<8x1xf32>
    %c0_39 = arith.constant 0 : index
    %c0_40 = arith.constant 0 : index
    %20 = vector.load %arg22[%c0_39, %c0_40] : memref<32x36xbf16, #tpu.memory_space<vmem>>, vector<32x36xbf16>
    %c0_41 = arith.constant 0 : index
    %c0_42 = arith.constant 0 : index
    %21 = vector.load %arg23[%c0_41, %c0_42] : memref<32x1xf32, #tpu.memory_space<vmem>>, vector<32x1xf32>
    %c0_43 = arith.constant 0 : index
    %c0_44 = arith.constant 0 : index
    %c0_45 = arith.constant 0 : index
    %22 = vector.load %arg1[%c0_43, %c0_44, %c0_45] : memref<2x4x256xf32, #tpu.memory_space<vmem>>, vector<1x4x256xf32>
    %23 = vector.shape_cast %22 : vector<1x4x256xf32> to vector<4x256xf32>
    %24 = arith.truncf %23 : vector<4x256xf32> to vector<4x256xbf16>
    %cst = arith.constant dense<0.000000e+00> : vector<32x256xf32>
    %25 = tpu.matmul %4, %24, %cst {dimension_numbers = #tpu.dot_dimension_numbers<[1], [0], [0], [1], [0, 0, 1, 1], [], []>} : vector<32x4xbf16>, vector<4x256xbf16>, vector<32x256xf32> -> vector<32x256xf32>
    %26 = vector.broadcast %5 : vector<32x1xf32> to vector<32x256xf32>
    %27 = arith.addf %25, %26 : vector<32x256xf32>
    %cst_46 = arith.constant dense<0.000000e+00> : vector<32xf32>
    %28 = vector.multi_reduction <add>, %27, %cst_46 [1] : vector<32x256xf32> to vector<32xf32>
    %29 = vector.shape_cast %28 : vector<32xf32> to vector<32x1xf32>
    %cst_47 = arith.constant 2.560000e+02 : f32
    %30 = vector.broadcast %cst_47 : f32 to vector<32x1xf32>
    %31 = arith.divf %29, %30 : vector<32x1xf32>
    %32 = arith.mulf %27, %27 : vector<32x256xf32>
    %cst_48 = arith.constant dense<0.000000e+00> : vector<32xf32>
    %33 = vector.multi_reduction <add>, %32, %cst_48 [1] : vector<32x256xf32> to vector<32xf32>
    %34 = vector.shape_cast %33 : vector<32xf32> to vector<32x1xf32>
    %cst_49 = arith.constant 2.560000e+02 : f32
    %35 = vector.broadcast %cst_49 : f32 to vector<32x1xf32>
    %36 = arith.divf %34, %35 : vector<32x1xf32>
    %37 = arith.mulf %31, %31 : vector<32x1xf32>
    %38 = arith.subf %36, %37 : vector<32x1xf32>
    %cst_50 = arith.constant 0.000000e+00 : f32
    %39 = vector.broadcast %cst_50 : f32 to vector<32x1xf32>
    %40 = arith.maximumf %38, %39 : vector<32x1xf32>
    %41 = vector.broadcast %31 : vector<32x1xf32> to vector<32x256xf32>
    %42 = arith.subf %27, %41 : vector<32x256xf32>
    %cst_51 = arith.constant 9.99999974E-6 : f32
    %43 = vector.broadcast %cst_51 : f32 to vector<32x1xf32>
    %44 = arith.addf %40, %43 : vector<32x1xf32>
    %45 = math.rsqrt %44 : vector<32x1xf32>
    %46 = vector.broadcast %45 : vector<32x1xf32> to vector<32x256xf32>
    %47 = arith.mulf %42, %46 : vector<32x256xf32>
    %cst_52 = arith.constant 0.000000e+00 : f32
    %48 = vector.broadcast %cst_52 : f32 to vector<32x256xf32>
    %49 = arith.maximumf %47, %48 : vector<32x256xf32>
    %50 = vector.extract_strided_slice %49 {offsets = [0, 0], sizes = [8, 256], strides = [1, 1]} : vector<32x256xf32> to vector<8x256xf32>
    %51 = vector.extract_strided_slice %49 {offsets = [8, 0], sizes = [8, 256], strides = [1, 1]} : vector<32x256xf32> to vector<8x256xf32>
    %52 = vector.extract_strided_slice %49 {offsets = [16, 0], sizes = [8, 256], strides = [1, 1]} : vector<32x256xf32> to vector<8x256xf32>
    %53 = vector.extract_strided_slice %49 {offsets = [24, 0], sizes = [8, 256], strides = [1, 1]} : vector<32x256xf32> to vector<8x256xf32>
    %c1_i32 = arith.constant 1 : i32
    %54 = tpu.dynamic_rotate %51 by %c1_i32 dim 1 : vector<8x256xf32>, i32 -> vector<8x256xf32>
    %55 = vector.broadcast %0 : vector<1x256xf32> to vector<8x256xf32>
    %56 = arith.mulf %54, %55 : vector<8x256xf32>
    %c255_i32 = arith.constant 255 : i32
    %57 = tpu.dynamic_rotate %51 by %c255_i32 dim 1 : vector<8x256xf32>, i32 -> vector<8x256xf32>
    %58 = vector.broadcast %1 : vector<1x256xf32> to vector<8x256xf32>
    %59 = arith.mulf %57, %58 : vector<8x256xf32>
    %60 = tpu.concatenate %56, %51, %59 in 0 : vector<8x256xf32>, vector<8x256xf32>, vector<8x256xf32> -> vector<24x256xf32>
    %61 = arith.truncf %60 : vector<24x256xf32> to vector<24x256xbf16>
    %cst_53 = arith.constant dense<0.000000e+00> : vector<8x256xf32>
    %62 = tpu.matmul %6, %61, %cst_53 {dimension_numbers = #tpu.dot_dimension_numbers<[1], [0], [0], [1], [0, 0, 1, 1], [], []>} : vector<8x24xbf16>, vector<24x256xbf16>, vector<8x256xf32> -> vector<8x256xf32>
    %63 = vector.broadcast %7 : vector<8x1xf32> to vector<8x256xf32>
    %64 = arith.addf %62, %63 : vector<8x256xf32>
    %cst_54 = arith.constant dense<0.000000e+00> : vector<8xf32>
    %65 = vector.multi_reduction <add>, %64, %cst_54 [1] : vector<8x256xf32> to vector<8xf32>
    %66 = vector.shape_cast %65 : vector<8xf32> to vector<8x1xf32>
    %cst_55 = arith.constant 2.560000e+02 : f32
    %67 = vector.broadcast %cst_55 : f32 to vector<8x1xf32>
    %68 = arith.divf %66, %67 : vector<8x1xf32>
    %69 = arith.mulf %64, %64 : vector<8x256xf32>
    %cst_56 = arith.constant dense<0.000000e+00> : vector<8xf32>
    %70 = vector.multi_reduction <add>, %69, %cst_56 [1] : vector<8x256xf32> to vector<8xf32>
    %71 = vector.shape_cast %70 : vector<8xf32> to vector<8x1xf32>
    %cst_57 = arith.constant 2.560000e+02 : f32
    %72 = vector.broadcast %cst_57 : f32 to vector<8x1xf32>
    %73 = arith.divf %71, %72 : vector<8x1xf32>
    %74 = arith.mulf %68, %68 : vector<8x1xf32>
    %75 = arith.subf %73, %74 : vector<8x1xf32>
    %cst_58 = arith.constant 0.000000e+00 : f32
    %76 = vector.broadcast %cst_58 : f32 to vector<8x1xf32>
    %77 = arith.maximumf %75, %76 : vector<8x1xf32>
    %78 = vector.broadcast %68 : vector<8x1xf32> to vector<8x256xf32>
    %79 = arith.subf %64, %78 : vector<8x256xf32>
    %cst_59 = arith.constant 9.99999974E-6 : f32
    %80 = vector.broadcast %cst_59 : f32 to vector<8x1xf32>
    %81 = arith.addf %77, %80 : vector<8x1xf32>
    %82 = math.rsqrt %81 : vector<8x1xf32>
    %83 = vector.broadcast %82 : vector<8x1xf32> to vector<8x256xf32>
    %84 = arith.mulf %79, %83 : vector<8x256xf32>
    %cst_60 = arith.constant 0.000000e+00 : f32
    %85 = vector.broadcast %cst_60 : f32 to vector<8x256xf32>
    %86 = arith.maximumf %84, %85 : vector<8x256xf32>
    %87 = arith.addf %52, %86 : vector<8x256xf32>
    %c1_i32_61 = arith.constant 1 : i32
    %88 = tpu.dynamic_rotate %87 by %c1_i32_61 dim 1 : vector<8x256xf32>, i32 -> vector<8x256xf32>
    %89 = vector.broadcast %0 : vector<1x256xf32> to vector<8x256xf32>
    %90 = arith.mulf %88, %89 : vector<8x256xf32>
    %c255_i32_62 = arith.constant 255 : i32
    %91 = tpu.dynamic_rotate %87 by %c255_i32_62 dim 1 : vector<8x256xf32>, i32 -> vector<8x256xf32>
    %92 = vector.broadcast %1 : vector<1x256xf32> to vector<8x256xf32>
    %93 = arith.mulf %91, %92 : vector<8x256xf32>
    %94 = tpu.concatenate %90, %87, %93 in 0 : vector<8x256xf32>, vector<8x256xf32>, vector<8x256xf32> -> vector<24x256xf32>
    %95 = arith.truncf %94 : vector<24x256xf32> to vector<24x256xbf16>
    %cst_63 = arith.constant dense<0.000000e+00> : vector<8x256xf32>
    %96 = tpu.matmul %8, %95, %cst_63 {dimension_numbers = #tpu.dot_dimension_numbers<[1], [0], [0], [1], [0, 0, 1, 1], [], []>} : vector<8x24xbf16>, vector<24x256xbf16>, vector<8x256xf32> -> vector<8x256xf32>
    %97 = vector.broadcast %9 : vector<8x1xf32> to vector<8x256xf32>
    %98 = arith.addf %96, %97 : vector<8x256xf32>
    %cst_64 = arith.constant dense<0.000000e+00> : vector<8xf32>
    %99 = vector.multi_reduction <add>, %98, %cst_64 [1] : vector<8x256xf32> to vector<8xf32>
    %100 = vector.shape_cast %99 : vector<8xf32> to vector<8x1xf32>
    %cst_65 = arith.constant 2.560000e+02 : f32
    %101 = vector.broadcast %cst_65 : f32 to vector<8x1xf32>
    %102 = arith.divf %100, %101 : vector<8x1xf32>
    %103 = arith.mulf %98, %98 : vector<8x256xf32>
    %cst_66 = arith.constant dense<0.000000e+00> : vector<8xf32>
    %104 = vector.multi_reduction <add>, %103, %cst_66 [1] : vector<8x256xf32> to vector<8xf32>
    %105 = vector.shape_cast %104 : vector<8xf32> to vector<8x1xf32>
    %cst_67 = arith.constant 2.560000e+02 : f32
    %106 = vector.broadcast %cst_67 : f32 to vector<8x1xf32>
    %107 = arith.divf %105, %106 : vector<8x1xf32>
    %108 = arith.mulf %102, %102 : vector<8x1xf32>
    %109 = arith.subf %107, %108 : vector<8x1xf32>
    %cst_68 = arith.constant 0.000000e+00 : f32
    %110 = vector.broadcast %cst_68 : f32 to vector<8x1xf32>
    %111 = arith.maximumf %109, %110 : vector<8x1xf32>
    %112 = vector.broadcast %102 : vector<8x1xf32> to vector<8x256xf32>
    %113 = arith.subf %98, %112 : vector<8x256xf32>
    %cst_69 = arith.constant 9.99999974E-6 : f32
    %114 = vector.broadcast %cst_69 : f32 to vector<8x1xf32>
    %115 = arith.addf %111, %114 : vector<8x1xf32>
    %116 = math.rsqrt %115 : vector<8x1xf32>
    %117 = vector.broadcast %116 : vector<8x1xf32> to vector<8x256xf32>
    %118 = arith.mulf %113, %117 : vector<8x256xf32>
    %cst_70 = arith.constant 0.000000e+00 : f32
    %119 = vector.broadcast %cst_70 : f32 to vector<8x256xf32>
    %120 = arith.maximumf %118, %119 : vector<8x256xf32>
    %121 = arith.addf %120, %53 : vector<8x256xf32>
    %c1_i32_71 = arith.constant 1 : i32
    %122 = tpu.dynamic_rotate %121 by %c1_i32_71 dim 1 : vector<8x256xf32>, i32 -> vector<8x256xf32>
    %123 = vector.broadcast %0 : vector<1x256xf32> to vector<8x256xf32>
    %124 = arith.mulf %122, %123 : vector<8x256xf32>
    %c255_i32_72 = arith.constant 255 : i32
    %125 = tpu.dynamic_rotate %121 by %c255_i32_72 dim 1 : vector<8x256xf32>, i32 -> vector<8x256xf32>
    %126 = vector.broadcast %1 : vector<1x256xf32> to vector<8x256xf32>
    %127 = arith.mulf %125, %126 : vector<8x256xf32>
    %128 = tpu.concatenate %124, %121, %127 in 0 : vector<8x256xf32>, vector<8x256xf32>, vector<8x256xf32> -> vector<24x256xf32>
    %129 = arith.truncf %128 : vector<24x256xf32> to vector<24x256xbf16>
    %cst_73 = arith.constant dense<0.000000e+00> : vector<8x256xf32>
    %130 = tpu.matmul %10, %129, %cst_73 {dimension_numbers = #tpu.dot_dimension_numbers<[1], [0], [0], [1], [0, 0, 1, 1], [], []>} : vector<8x24xbf16>, vector<24x256xbf16>, vector<8x256xf32> -> vector<8x256xf32>
    %131 = vector.broadcast %11 : vector<8x1xf32> to vector<8x256xf32>
    %132 = arith.addf %130, %131 : vector<8x256xf32>
    %cst_74 = arith.constant dense<0.000000e+00> : vector<8xf32>
    %133 = vector.multi_reduction <add>, %132, %cst_74 [1] : vector<8x256xf32> to vector<8xf32>
    %134 = vector.shape_cast %133 : vector<8xf32> to vector<8x1xf32>
    %cst_75 = arith.constant 2.560000e+02 : f32
    %135 = vector.broadcast %cst_75 : f32 to vector<8x1xf32>
    %136 = arith.divf %134, %135 : vector<8x1xf32>
    %137 = arith.mulf %132, %132 : vector<8x256xf32>
    %cst_76 = arith.constant dense<0.000000e+00> : vector<8xf32>
    %138 = vector.multi_reduction <add>, %137, %cst_76 [1] : vector<8x256xf32> to vector<8xf32>
    %139 = vector.shape_cast %138 : vector<8xf32> to vector<8x1xf32>
    %cst_77 = arith.constant 2.560000e+02 : f32
    %140 = vector.broadcast %cst_77 : f32 to vector<8x1xf32>
    %141 = arith.divf %139, %140 : vector<8x1xf32>
    %142 = arith.mulf %136, %136 : vector<8x1xf32>
    %143 = arith.subf %141, %142 : vector<8x1xf32>
    %cst_78 = arith.constant 0.000000e+00 : f32
    %144 = vector.broadcast %cst_78 : f32 to vector<8x1xf32>
    %145 = arith.maximumf %143, %144 : vector<8x1xf32>
    %146 = vector.broadcast %136 : vector<8x1xf32> to vector<8x256xf32>
    %147 = arith.subf %132, %146 : vector<8x256xf32>
    %cst_79 = arith.constant 9.99999974E-6 : f32
    %148 = vector.broadcast %cst_79 : f32 to vector<8x1xf32>
    %149 = arith.addf %145, %148 : vector<8x1xf32>
    %150 = math.rsqrt %149 : vector<8x1xf32>
    %151 = vector.broadcast %150 : vector<8x1xf32> to vector<8x256xf32>
    %152 = arith.mulf %147, %151 : vector<8x256xf32>
    %cst_80 = arith.constant 0.000000e+00 : f32
    %153 = vector.broadcast %cst_80 : f32 to vector<8x256xf32>
    %154 = arith.maximumf %152, %153 : vector<8x256xf32>
    %155 = tpu.concatenate %50, %86, %120, %154 in 0 : vector<8x256xf32>, vector<8x256xf32>, vector<8x256xf32>, vector<8x256xf32> -> vector<32x256xf32>
    %156 = arith.truncf %155 : vector<32x256xf32> to vector<32x256xbf16>
    %cst_81 = arith.constant dense<0.000000e+00> : vector<32x256xf32>
    %157 = tpu.matmul %12, %156, %cst_81 {dimension_numbers = #tpu.dot_dimension_numbers<[1], [0], [0], [1], [0, 0, 1, 1], [], []>} : vector<32x32xbf16>, vector<32x256xbf16>, vector<32x256xf32> -> vector<32x256xf32>
    %158 = vector.broadcast %13 : vector<32x1xf32> to vector<32x256xf32>
    %159 = arith.addf %157, %158 : vector<32x256xf32>
    %160 = vector.extract_strided_slice %159 {offsets = [0, 0], sizes = [8, 256], strides = [1, 1]} : vector<32x256xf32> to vector<8x256xf32>
    %161 = vector.extract_strided_slice %159 {offsets = [8, 0], sizes = [8, 256], strides = [1, 1]} : vector<32x256xf32> to vector<8x256xf32>
    %162 = vector.extract_strided_slice %159 {offsets = [16, 0], sizes = [8, 256], strides = [1, 1]} : vector<32x256xf32> to vector<8x256xf32>
    %163 = vector.extract_strided_slice %159 {offsets = [24, 0], sizes = [8, 256], strides = [1, 1]} : vector<32x256xf32> to vector<8x256xf32>
    %c16_i32 = arith.constant 16 : i32
    %164 = tpu.dynamic_rotate %161 by %c16_i32 dim 1 : vector<8x256xf32>, i32 -> vector<8x256xf32>
    %165 = vector.broadcast %2 : vector<1x256xf32> to vector<8x256xf32>
    %166 = arith.mulf %164, %165 : vector<8x256xf32>
    %c240_i32 = arith.constant 240 : i32
    %167 = tpu.dynamic_rotate %161 by %c240_i32 dim 1 : vector<8x256xf32>, i32 -> vector<8x256xf32>
    %168 = vector.broadcast %3 : vector<1x256xf32> to vector<8x256xf32>
    %169 = arith.mulf %167, %168 : vector<8x256xf32>
    %170 = tpu.concatenate %166, %161, %169 in 0 : vector<8x256xf32>, vector<8x256xf32>, vector<8x256xf32> -> vector<24x256xf32>
    %171 = arith.truncf %170 : vector<24x256xf32> to vector<24x256xbf16>
    %cst_82 = arith.constant dense<0.000000e+00> : vector<8x256xf32>
    %172 = tpu.matmul %14, %171, %cst_82 {dimension_numbers = #tpu.dot_dimension_numbers<[1], [0], [0], [1], [0, 0, 1, 1], [], []>} : vector<8x24xbf16>, vector<24x256xbf16>, vector<8x256xf32> -> vector<8x256xf32>
    %173 = vector.broadcast %15 : vector<8x1xf32> to vector<8x256xf32>
    %174 = arith.addf %172, %173 : vector<8x256xf32>
    %cst_83 = arith.constant dense<0.000000e+00> : vector<8xf32>
    %175 = vector.multi_reduction <add>, %174, %cst_83 [1] : vector<8x256xf32> to vector<8xf32>
    %176 = vector.shape_cast %175 : vector<8xf32> to vector<8x1xf32>
    %cst_84 = arith.constant 2.560000e+02 : f32
    %177 = vector.broadcast %cst_84 : f32 to vector<8x1xf32>
    %178 = arith.divf %176, %177 : vector<8x1xf32>
    %179 = arith.mulf %174, %174 : vector<8x256xf32>
    %cst_85 = arith.constant dense<0.000000e+00> : vector<8xf32>
    %180 = vector.multi_reduction <add>, %179, %cst_85 [1] : vector<8x256xf32> to vector<8xf32>
    %181 = vector.shape_cast %180 : vector<8xf32> to vector<8x1xf32>
    %cst_86 = arith.constant 2.560000e+02 : f32
    %182 = vector.broadcast %cst_86 : f32 to vector<8x1xf32>
    %183 = arith.divf %181, %182 : vector<8x1xf32>
    %184 = arith.mulf %178, %178 : vector<8x1xf32>
    %185 = arith.subf %183, %184 : vector<8x1xf32>
    %cst_87 = arith.constant 0.000000e+00 : f32
    %186 = vector.broadcast %cst_87 : f32 to vector<8x1xf32>
    %187 = arith.maximumf %185, %186 : vector<8x1xf32>
    %188 = vector.broadcast %178 : vector<8x1xf32> to vector<8x256xf32>
    %189 = arith.subf %174, %188 : vector<8x256xf32>
    %cst_88 = arith.constant 9.99999974E-6 : f32
    %190 = vector.broadcast %cst_88 : f32 to vector<8x1xf32>
    %191 = arith.addf %187, %190 : vector<8x1xf32>
    %192 = math.rsqrt %191 : vector<8x1xf32>
    %193 = vector.broadcast %192 : vector<8x1xf32> to vector<8x256xf32>
    %194 = arith.mulf %189, %193 : vector<8x256xf32>
    %cst_89 = arith.constant 0.000000e+00 : f32
    %195 = vector.broadcast %cst_89 : f32 to vector<8x256xf32>
    %196 = arith.maximumf %194, %195 : vector<8x256xf32>
    %197 = arith.addf %196, %162 : vector<8x256xf32>
    %c16_i32_90 = arith.constant 16 : i32
    %198 = tpu.dynamic_rotate %197 by %c16_i32_90 dim 1 : vector<8x256xf32>, i32 -> vector<8x256xf32>
    %199 = vector.broadcast %2 : vector<1x256xf32> to vector<8x256xf32>
    %200 = arith.mulf %198, %199 : vector<8x256xf32>
    %c240_i32_91 = arith.constant 240 : i32
    %201 = tpu.dynamic_rotate %197 by %c240_i32_91 dim 1 : vector<8x256xf32>, i32 -> vector<8x256xf32>
    %202 = vector.broadcast %3 : vector<1x256xf32> to vector<8x256xf32>
    %203 = arith.mulf %201, %202 : vector<8x256xf32>
    %204 = tpu.concatenate %200, %197, %203 in 0 : vector<8x256xf32>, vector<8x256xf32>, vector<8x256xf32> -> vector<24x256xf32>
    %205 = arith.truncf %204 : vector<24x256xf32> to vector<24x256xbf16>
    %cst_92 = arith.constant dense<0.000000e+00> : vector<8x256xf32>
    %206 = tpu.matmul %16, %205, %cst_92 {dimension_numbers = #tpu.dot_dimension_numbers<[1], [0], [0], [1], [0, 0, 1, 1], [], []>} : vector<8x24xbf16>, vector<24x256xbf16>, vector<8x256xf32> -> vector<8x256xf32>
    %207 = vector.broadcast %17 : vector<8x1xf32> to vector<8x256xf32>
    %208 = arith.addf %206, %207 : vector<8x256xf32>
    %cst_93 = arith.constant dense<0.000000e+00> : vector<8xf32>
    %209 = vector.multi_reduction <add>, %208, %cst_93 [1] : vector<8x256xf32> to vector<8xf32>
    %210 = vector.shape_cast %209 : vector<8xf32> to vector<8x1xf32>
    %cst_94 = arith.constant 2.560000e+02 : f32
    %211 = vector.broadcast %cst_94 : f32 to vector<8x1xf32>
    %212 = arith.divf %210, %211 : vector<8x1xf32>
    %213 = arith.mulf %208, %208 : vector<8x256xf32>
    %cst_95 = arith.constant dense<0.000000e+00> : vector<8xf32>
    %214 = vector.multi_reduction <add>, %213, %cst_95 [1] : vector<8x256xf32> to vector<8xf32>
    %215 = vector.shape_cast %214 : vector<8xf32> to vector<8x1xf32>
    %cst_96 = arith.constant 2.560000e+02 : f32
    %216 = vector.broadcast %cst_96 : f32 to vector<8x1xf32>
    %217 = arith.divf %215, %216 : vector<8x1xf32>
    %218 = arith.mulf %212, %212 : vector<8x1xf32>
    %219 = arith.subf %217, %218 : vector<8x1xf32>
    %cst_97 = arith.constant 0.000000e+00 : f32
    %220 = vector.broadcast %cst_97 : f32 to vector<8x1xf32>
    %221 = arith.maximumf %219, %220 : vector<8x1xf32>
    %222 = vector.broadcast %212 : vector<8x1xf32> to vector<8x256xf32>
    %223 = arith.subf %208, %222 : vector<8x256xf32>
    %cst_98 = arith.constant 9.99999974E-6 : f32
    %224 = vector.broadcast %cst_98 : f32 to vector<8x1xf32>
    %225 = arith.addf %221, %224 : vector<8x1xf32>
    %226 = math.rsqrt %225 : vector<8x1xf32>
    %227 = vector.broadcast %226 : vector<8x1xf32> to vector<8x256xf32>
    %228 = arith.mulf %223, %227 : vector<8x256xf32>
    %cst_99 = arith.constant 0.000000e+00 : f32
    %229 = vector.broadcast %cst_99 : f32 to vector<8x256xf32>
    %230 = arith.maximumf %228, %229 : vector<8x256xf32>
    %231 = arith.addf %230, %163 : vector<8x256xf32>
    %c16_i32_100 = arith.constant 16 : i32
    %232 = tpu.dynamic_rotate %231 by %c16_i32_100 dim 1 : vector<8x256xf32>, i32 -> vector<8x256xf32>
    %233 = vector.broadcast %2 : vector<1x256xf32> to vector<8x256xf32>
    %234 = arith.mulf %232, %233 : vector<8x256xf32>
    %c240_i32_101 = arith.constant 240 : i32
    %235 = tpu.dynamic_rotate %231 by %c240_i32_101 dim 1 : vector<8x256xf32>, i32 -> vector<8x256xf32>
    %236 = vector.broadcast %3 : vector<1x256xf32> to vector<8x256xf32>
    %237 = arith.mulf %235, %236 : vector<8x256xf32>
    %238 = tpu.concatenate %234, %231, %237 in 0 : vector<8x256xf32>, vector<8x256xf32>, vector<8x256xf32> -> vector<24x256xf32>
    %239 = arith.truncf %238 : vector<24x256xf32> to vector<24x256xbf16>
    %cst_102 = arith.constant dense<0.000000e+00> : vector<8x256xf32>
    %240 = tpu.matmul %18, %239, %cst_102 {dimension_numbers = #tpu.dot_dimension_numbers<[1], [0], [0], [1], [0, 0, 1, 1], [], []>} : vector<8x24xbf16>, vector<24x256xbf16>, vector<8x256xf32> -> vector<8x256xf32>
    %241 = vector.broadcast %19 : vector<8x1xf32> to vector<8x256xf32>
    %242 = arith.addf %240, %241 : vector<8x256xf32>
    %cst_103 = arith.constant dense<0.000000e+00> : vector<8xf32>
    %243 = vector.multi_reduction <add>, %242, %cst_103 [1] : vector<8x256xf32> to vector<8xf32>
    %244 = vector.shape_cast %243 : vector<8xf32> to vector<8x1xf32>
    %cst_104 = arith.constant 2.560000e+02 : f32
    %245 = vector.broadcast %cst_104 : f32 to vector<8x1xf32>
    %246 = arith.divf %244, %245 : vector<8x1xf32>
    %247 = arith.mulf %242, %242 : vector<8x256xf32>
    %cst_105 = arith.constant dense<0.000000e+00> : vector<8xf32>
    %248 = vector.multi_reduction <add>, %247, %cst_105 [1] : vector<8x256xf32> to vector<8xf32>
    %249 = vector.shape_cast %248 : vector<8xf32> to vector<8x1xf32>
    %cst_106 = arith.constant 2.560000e+02 : f32
    %250 = vector.broadcast %cst_106 : f32 to vector<8x1xf32>
    %251 = arith.divf %249, %250 : vector<8x1xf32>
    %252 = arith.mulf %246, %246 : vector<8x1xf32>
    %253 = arith.subf %251, %252 : vector<8x1xf32>
    %cst_107 = arith.constant 0.000000e+00 : f32
    %254 = vector.broadcast %cst_107 : f32 to vector<8x1xf32>
    %255 = arith.maximumf %253, %254 : vector<8x1xf32>
    %256 = vector.broadcast %246 : vector<8x1xf32> to vector<8x256xf32>
    %257 = arith.subf %242, %256 : vector<8x256xf32>
    %cst_108 = arith.constant 9.99999974E-6 : f32
    %258 = vector.broadcast %cst_108 : f32 to vector<8x1xf32>
    %259 = arith.addf %255, %258 : vector<8x1xf32>
    %260 = math.rsqrt %259 : vector<8x1xf32>
    %261 = vector.broadcast %260 : vector<8x1xf32> to vector<8x256xf32>
    %262 = arith.mulf %257, %261 : vector<8x256xf32>
    %cst_109 = arith.constant 0.000000e+00 : f32
    %263 = vector.broadcast %cst_109 : f32 to vector<8x256xf32>
    %264 = arith.maximumf %262, %263 : vector<8x256xf32>
    %265 = tpu.concatenate %160, %196, %230, %264, %23 in 0 : vector<8x256xf32>, vector<8x256xf32>, vector<8x256xf32>, vector<8x256xf32>, vector<4x256xf32> -> vector<36x256xf32>
    %266 = arith.truncf %265 : vector<36x256xf32> to vector<36x256xbf16>
    %cst_110 = arith.constant dense<0.000000e+00> : vector<32x256xf32>
    %267 = tpu.matmul %20, %266, %cst_110 {dimension_numbers = #tpu.dot_dimension_numbers<[1], [0], [0], [1], [0, 0, 1, 1], [], []>} : vector<32x36xbf16>, vector<36x256xbf16>, vector<32x256xf32> -> vector<32x256xf32>
    %268 = vector.broadcast %21 : vector<32x1xf32> to vector<32x256xf32>
    %269 = arith.addf %267, %268 : vector<32x256xf32>
    %270 = arith.addf %269, %159 : vector<32x256xf32>
    %cst_111 = arith.constant 0.000000e+00 : f32
    %271 = vector.broadcast %cst_111 : f32 to vector<32x256xf32>
    %272 = arith.maximumf %270, %271 : vector<32x256xf32>
    %c0_112 = arith.constant 0 : index
    %c0_113 = arith.constant 0 : index
    %c0_114 = arith.constant 0 : index
    %273 = vector.load %arg24[%c0_112, %c0_113, %c0_114] : memref<2x32x256xf32, #tpu.memory_space<vmem>>, vector<1x32x256xf32>
    %274 = vector.shape_cast %273 : vector<1x32x256xf32> to vector<32x256xf32>
    %275 = vector.shape_cast %272 : vector<32x256xf32> to vector<1x32x256xf32>
    tpu.vector_store %arg24[%c0_112, %c0_113, %c0_114], %275 {strides = array<i32>} : memref<2x32x256xf32, #tpu.memory_space<vmem>>, vector<1x32x256xf32>,
    %c1 = arith.constant 1 : index
    %c0_115 = arith.constant 0 : index
    %c0_116 = arith.constant 0 : index
    %276 = vector.load %arg1[%c1, %c0_115, %c0_116] : memref<2x4x256xf32, #tpu.memory_space<vmem>>, vector<1x4x256xf32>
    %277 = vector.shape_cast %276 : vector<1x4x256xf32> to vector<4x256xf32>
    %278 = arith.truncf %277 : vector<4x256xf32> to vector<4x256xbf16>
    %cst_117 = arith.constant dense<0.000000e+00> : vector<32x256xf32>
    %279 = tpu.matmul %4, %278, %cst_117 {dimension_numbers = #tpu.dot_dimension_numbers<[1], [0], [0], [1], [0, 0, 1, 1], [], []>} : vector<32x4xbf16>, vector<4x256xbf16>, vector<32x256xf32> -> vector<32x256xf32>
    %280 = vector.broadcast %5 : vector<32x1xf32> to vector<32x256xf32>
    %281 = arith.addf %279, %280 : vector<32x256xf32>
    %cst_118 = arith.constant dense<0.000000e+00> : vector<32xf32>
    %282 = vector.multi_reduction <add>, %281, %cst_118 [1] : vector<32x256xf32> to vector<32xf32>
    %283 = vector.shape_cast %282 : vector<32xf32> to vector<32x1xf32>
    %cst_119 = arith.constant 2.560000e+02 : f32
    %284 = vector.broadcast %cst_119 : f32 to vector<32x1xf32>
    %285 = arith.divf %283, %284 : vector<32x1xf32>
    %286 = arith.mulf %281, %281 : vector<32x256xf32>
    %cst_120 = arith.constant dense<0.000000e+00> : vector<32xf32>
    %287 = vector.multi_reduction <add>, %286, %cst_120 [1] : vector<32x256xf32> to vector<32xf32>
    %288 = vector.shape_cast %287 : vector<32xf32> to vector<32x1xf32>
    %cst_121 = arith.constant 2.560000e+02 : f32
    %289 = vector.broadcast %cst_121 : f32 to vector<32x1xf32>
    %290 = arith.divf %288, %289 : vector<32x1xf32>
    %291 = arith.mulf %285, %285 : vector<32x1xf32>
    %292 = arith.subf %290, %291 : vector<32x1xf32>
    %cst_122 = arith.constant 0.000000e+00 : f32
    %293 = vector.broadcast %cst_122 : f32 to vector<32x1xf32>
    %294 = arith.maximumf %292, %293 : vector<32x1xf32>
    %295 = vector.broadcast %285 : vector<32x1xf32> to vector<32x256xf32>
    %296 = arith.subf %281, %295 : vector<32x256xf32>
    %cst_123 = arith.constant 9.99999974E-6 : f32
    %297 = vector.broadcast %cst_123 : f32 to vector<32x1xf32>
    %298 = arith.addf %294, %297 : vector<32x1xf32>
    %299 = math.rsqrt %298 : vector<32x1xf32>
    %300 = vector.broadcast %299 : vector<32x1xf32> to vector<32x256xf32>
    %301 = arith.mulf %296, %300 : vector<32x256xf32>
    %cst_124 = arith.constant 0.000000e+00 : f32
    %302 = vector.broadcast %cst_124 : f32 to vector<32x256xf32>
    %303 = arith.maximumf %301, %302 : vector<32x256xf32>
    %304 = vector.extract_strided_slice %303 {offsets = [0, 0], sizes = [8, 256], strides = [1, 1]} : vector<32x256xf32> to vector<8x256xf32>
    %305 = vector.extract_strided_slice %303 {offsets = [8, 0], sizes = [8, 256], strides = [1, 1]} : vector<32x256xf32> to vector<8x256xf32>
    %306 = vector.extract_strided_slice %303 {offsets = [16, 0], sizes = [8, 256], strides = [1, 1]} : vector<32x256xf32> to vector<8x256xf32>
    %307 = vector.extract_strided_slice %303 {offsets = [24, 0], sizes = [8, 256], strides = [1, 1]} : vector<32x256xf32> to vector<8x256xf32>
    %c1_i32_125 = arith.constant 1 : i32
    %308 = tpu.dynamic_rotate %305 by %c1_i32_125 dim 1 : vector<8x256xf32>, i32 -> vector<8x256xf32>
    %309 = vector.broadcast %0 : vector<1x256xf32> to vector<8x256xf32>
    %310 = arith.mulf %308, %309 : vector<8x256xf32>
    %c255_i32_126 = arith.constant 255 : i32
    %311 = tpu.dynamic_rotate %305 by %c255_i32_126 dim 1 : vector<8x256xf32>, i32 -> vector<8x256xf32>
    %312 = vector.broadcast %1 : vector<1x256xf32> to vector<8x256xf32>
    %313 = arith.mulf %311, %312 : vector<8x256xf32>
    %314 = tpu.concatenate %310, %305, %313 in 0 : vector<8x256xf32>, vector<8x256xf32>, vector<8x256xf32> -> vector<24x256xf32>
    %315 = arith.truncf %314 : vector<24x256xf32> to vector<24x256xbf16>
    %cst_127 = arith.constant dense<0.000000e+00> : vector<8x256xf32>
    %316 = tpu.matmul %6, %315, %cst_127 {dimension_numbers = #tpu.dot_dimension_numbers<[1], [0], [0], [1], [0, 0, 1, 1], [], []>} : vector<8x24xbf16>, vector<24x256xbf16>, vector<8x256xf32> -> vector<8x256xf32>
    %317 = vector.broadcast %7 : vector<8x1xf32> to vector<8x256xf32>
    %318 = arith.addf %316, %317 : vector<8x256xf32>
    %cst_128 = arith.constant dense<0.000000e+00> : vector<8xf32>
    %319 = vector.multi_reduction <add>, %318, %cst_128 [1] : vector<8x256xf32> to vector<8xf32>
    %320 = vector.shape_cast %319 : vector<8xf32> to vector<8x1xf32>
    %cst_129 = arith.constant 2.560000e+02 : f32
    %321 = vector.broadcast %cst_129 : f32 to vector<8x1xf32>
    %322 = arith.divf %320, %321 : vector<8x1xf32>
    %323 = arith.mulf %318, %318 : vector<8x256xf32>
    %cst_130 = arith.constant dense<0.000000e+00> : vector<8xf32>
    %324 = vector.multi_reduction <add>, %323, %cst_130 [1] : vector<8x256xf32> to vector<8xf32>
    %325 = vector.shape_cast %324 : vector<8xf32> to vector<8x1xf32>
    %cst_131 = arith.constant 2.560000e+02 : f32
    %326 = vector.broadcast %cst_131 : f32 to vector<8x1xf32>
    %327 = arith.divf %325, %326 : vector<8x1xf32>
    %328 = arith.mulf %322, %322 : vector<8x1xf32>
    %329 = arith.subf %327, %328 : vector<8x1xf32>
    %cst_132 = arith.constant 0.000000e+00 : f32
    %330 = vector.broadcast %cst_132 : f32 to vector<8x1xf32>
    %331 = arith.maximumf %329, %330 : vector<8x1xf32>
    %332 = vector.broadcast %322 : vector<8x1xf32> to vector<8x256xf32>
    %333 = arith.subf %318, %332 : vector<8x256xf32>
    %cst_133 = arith.constant 9.99999974E-6 : f32
    %334 = vector.broadcast %cst_133 : f32 to vector<8x1xf32>
    %335 = arith.addf %331, %334 : vector<8x1xf32>
    %336 = math.rsqrt %335 : vector<8x1xf32>
    %337 = vector.broadcast %336 : vector<8x1xf32> to vector<8x256xf32>
    %338 = arith.mulf %333, %337 : vector<8x256xf32>
    %cst_134 = arith.constant 0.000000e+00 : f32
    %339 = vector.broadcast %cst_134 : f32 to vector<8x256xf32>
    %340 = arith.maximumf %338, %339 : vector<8x256xf32>
    %341 = arith.addf %306, %340 : vector<8x256xf32>
    %c1_i32_135 = arith.constant 1 : i32
    %342 = tpu.dynamic_rotate %341 by %c1_i32_135 dim 1 : vector<8x256xf32>, i32 -> vector<8x256xf32>
    %343 = vector.broadcast %0 : vector<1x256xf32> to vector<8x256xf32>
    %344 = arith.mulf %342, %343 : vector<8x256xf32>
    %c255_i32_136 = arith.constant 255 : i32
    %345 = tpu.dynamic_rotate %341 by %c255_i32_136 dim 1 : vector<8x256xf32>, i32 -> vector<8x256xf32>
    %346 = vector.broadcast %1 : vector<1x256xf32> to vector<8x256xf32>
    %347 = arith.mulf %345, %346 : vector<8x256xf32>
    %348 = tpu.concatenate %344, %341, %347 in 0 : vector<8x256xf32>, vector<8x256xf32>, vector<8x256xf32> -> vector<24x256xf32>
    %349 = arith.truncf %348 : vector<24x256xf32> to vector<24x256xbf16>
    %cst_137 = arith.constant dense<0.000000e+00> : vector<8x256xf32>
    %350 = tpu.matmul %8, %349, %cst_137 {dimension_numbers = #tpu.dot_dimension_numbers<[1], [0], [0], [1], [0, 0, 1, 1], [], []>} : vector<8x24xbf16>, vector<24x256xbf16>, vector<8x256xf32> -> vector<8x256xf32>
    %351 = vector.broadcast %9 : vector<8x1xf32> to vector<8x256xf32>
    %352 = arith.addf %350, %351 : vector<8x256xf32>
    %cst_138 = arith.constant dense<0.000000e+00> : vector<8xf32>
    %353 = vector.multi_reduction <add>, %352, %cst_138 [1] : vector<8x256xf32> to vector<8xf32>
    %354 = vector.shape_cast %353 : vector<8xf32> to vector<8x1xf32>
    %cst_139 = arith.constant 2.560000e+02 : f32
    %355 = vector.broadcast %cst_139 : f32 to vector<8x1xf32>
    %356 = arith.divf %354, %355 : vector<8x1xf32>
    %357 = arith.mulf %352, %352 : vector<8x256xf32>
    %cst_140 = arith.constant dense<0.000000e+00> : vector<8xf32>
    %358 = vector.multi_reduction <add>, %357, %cst_140 [1] : vector<8x256xf32> to vector<8xf32>
    %359 = vector.shape_cast %358 : vector<8xf32> to vector<8x1xf32>
    %cst_141 = arith.constant 2.560000e+02 : f32
    %360 = vector.broadcast %cst_141 : f32 to vector<8x1xf32>
    %361 = arith.divf %359, %360 : vector<8x1xf32>
    %362 = arith.mulf %356, %356 : vector<8x1xf32>
    %363 = arith.subf %361, %362 : vector<8x1xf32>
    %cst_142 = arith.constant 0.000000e+00 : f32
    %364 = vector.broadcast %cst_142 : f32 to vector<8x1xf32>
    %365 = arith.maximumf %363, %364 : vector<8x1xf32>
    %366 = vector.broadcast %356 : vector<8x1xf32> to vector<8x256xf32>
    %367 = arith.subf %352, %366 : vector<8x256xf32>
    %cst_143 = arith.constant 9.99999974E-6 : f32
    %368 = vector.broadcast %cst_143 : f32 to vector<8x1xf32>
    %369 = arith.addf %365, %368 : vector<8x1xf32>
    %370 = math.rsqrt %369 : vector<8x1xf32>
    %371 = vector.broadcast %370 : vector<8x1xf32> to vector<8x256xf32>
    %372 = arith.mulf %367, %371 : vector<8x256xf32>
    %cst_144 = arith.constant 0.000000e+00 : f32
    %373 = vector.broadcast %cst_144 : f32 to vector<8x256xf32>
    %374 = arith.maximumf %372, %373 : vector<8x256xf32>
    %375 = arith.addf %374, %307 : vector<8x256xf32>
    %c1_i32_145 = arith.constant 1 : i32
    %376 = tpu.dynamic_rotate %375 by %c1_i32_145 dim 1 : vector<8x256xf32>, i32 -> vector<8x256xf32>
    %377 = vector.broadcast %0 : vector<1x256xf32> to vector<8x256xf32>
    %378 = arith.mulf %376, %377 : vector<8x256xf32>
    %c255_i32_146 = arith.constant 255 : i32
    %379 = tpu.dynamic_rotate %375 by %c255_i32_146 dim 1 : vector<8x256xf32>, i32 -> vector<8x256xf32>
    %380 = vector.broadcast %1 : vector<1x256xf32> to vector<8x256xf32>
    %381 = arith.mulf %379, %380 : vector<8x256xf32>
    %382 = tpu.concatenate %378, %375, %381 in 0 : vector<8x256xf32>, vector<8x256xf32>, vector<8x256xf32> -> vector<24x256xf32>
    %383 = arith.truncf %382 : vector<24x256xf32> to vector<24x256xbf16>
    %cst_147 = arith.constant dense<0.000000e+00> : vector<8x256xf32>
    %384 = tpu.matmul %10, %383, %cst_147 {dimension_numbers = #tpu.dot_dimension_numbers<[1], [0], [0], [1], [0, 0, 1, 1], [], []>} : vector<8x24xbf16>, vector<24x256xbf16>, vector<8x256xf32> -> vector<8x256xf32>
    %385 = vector.broadcast %11 : vector<8x1xf32> to vector<8x256xf32>
    %386 = arith.addf %384, %385 : vector<8x256xf32>
    %cst_148 = arith.constant dense<0.000000e+00> : vector<8xf32>
    %387 = vector.multi_reduction <add>, %386, %cst_148 [1] : vector<8x256xf32> to vector<8xf32>
    %388 = vector.shape_cast %387 : vector<8xf32> to vector<8x1xf32>
    %cst_149 = arith.constant 2.560000e+02 : f32
    %389 = vector.broadcast %cst_149 : f32 to vector<8x1xf32>
    %390 = arith.divf %388, %389 : vector<8x1xf32>
    %391 = arith.mulf %386, %386 : vector<8x256xf32>
    %cst_150 = arith.constant dense<0.000000e+00> : vector<8xf32>
    %392 = vector.multi_reduction <add>, %391, %cst_150 [1] : vector<8x256xf32> to vector<8xf32>
    %393 = vector.shape_cast %392 : vector<8xf32> to vector<8x1xf32>
    %cst_151 = arith.constant 2.560000e+02 : f32
    %394 = vector.broadcast %cst_151 : f32 to vector<8x1xf32>
    %395 = arith.divf %393, %394 : vector<8x1xf32>
    %396 = arith.mulf %390, %390 : vector<8x1xf32>
    %397 = arith.subf %395, %396 : vector<8x1xf32>
    %cst_152 = arith.constant 0.000000e+00 : f32
    %398 = vector.broadcast %cst_152 : f32 to vector<8x1xf32>
    %399 = arith.maximumf %397, %398 : vector<8x1xf32>
    %400 = vector.broadcast %390 : vector<8x1xf32> to vector<8x256xf32>
    %401 = arith.subf %386, %400 : vector<8x256xf32>
    %cst_153 = arith.constant 9.99999974E-6 : f32
    %402 = vector.broadcast %cst_153 : f32 to vector<8x1xf32>
    %403 = arith.addf %399, %402 : vector<8x1xf32>
    %404 = math.rsqrt %403 : vector<8x1xf32>
    %405 = vector.broadcast %404 : vector<8x1xf32> to vector<8x256xf32>
    %406 = arith.mulf %401, %405 : vector<8x256xf32>
    %cst_154 = arith.constant 0.000000e+00 : f32
    %407 = vector.broadcast %cst_154 : f32 to vector<8x256xf32>
    %408 = arith.maximumf %406, %407 : vector<8x256xf32>
    %409 = tpu.concatenate %304, %340, %374, %408 in 0 : vector<8x256xf32>, vector<8x256xf32>, vector<8x256xf32>, vector<8x256xf32> -> vector<32x256xf32>
    %410 = arith.truncf %409 : vector<32x256xf32> to vector<32x256xbf16>
    %cst_155 = arith.constant dense<0.000000e+00> : vector<32x256xf32>
    %411 = tpu.matmul %12, %410, %cst_155 {dimension_numbers = #tpu.dot_dimension_numbers<[1], [0], [0], [1], [0, 0, 1, 1], [], []>} : vector<32x32xbf16>, vector<32x256xbf16>, vector<32x256xf32> -> vector<32x256xf32>
    %412 = vector.broadcast %13 : vector<32x1xf32> to vector<32x256xf32>
    %413 = arith.addf %411, %412 : vector<32x256xf32>
    %414 = vector.extract_strided_slice %413 {offsets = [0, 0], sizes = [8, 256], strides = [1, 1]} : vector<32x256xf32> to vector<8x256xf32>
    %415 = vector.extract_strided_slice %413 {offsets = [8, 0], sizes = [8, 256], strides = [1, 1]} : vector<32x256xf32> to vector<8x256xf32>
    %416 = vector.extract_strided_slice %413 {offsets = [16, 0], sizes = [8, 256], strides = [1, 1]} : vector<32x256xf32> to vector<8x256xf32>
    %417 = vector.extract_strided_slice %413 {offsets = [24, 0], sizes = [8, 256], strides = [1, 1]} : vector<32x256xf32> to vector<8x256xf32>
    %c16_i32_156 = arith.constant 16 : i32
    %418 = tpu.dynamic_rotate %415 by %c16_i32_156 dim 1 : vector<8x256xf32>, i32 -> vector<8x256xf32>
    %419 = vector.broadcast %2 : vector<1x256xf32> to vector<8x256xf32>
    %420 = arith.mulf %418, %419 : vector<8x256xf32>
    %c240_i32_157 = arith.constant 240 : i32
    %421 = tpu.dynamic_rotate %415 by %c240_i32_157 dim 1 : vector<8x256xf32>, i32 -> vector<8x256xf32>
    %422 = vector.broadcast %3 : vector<1x256xf32> to vector<8x256xf32>
    %423 = arith.mulf %421, %422 : vector<8x256xf32>
    %424 = tpu.concatenate %420, %415, %423 in 0 : vector<8x256xf32>, vector<8x256xf32>, vector<8x256xf32> -> vector<24x256xf32>
    %425 = arith.truncf %424 : vector<24x256xf32> to vector<24x256xbf16>
    %cst_158 = arith.constant dense<0.000000e+00> : vector<8x256xf32>
    %426 = tpu.matmul %14, %425, %cst_158 {dimension_numbers = #tpu.dot_dimension_numbers<[1], [0], [0], [1], [0, 0, 1, 1], [], []>} : vector<8x24xbf16>, vector<24x256xbf16>, vector<8x256xf32> -> vector<8x256xf32>
    %427 = vector.broadcast %15 : vector<8x1xf32> to vector<8x256xf32>
    %428 = arith.addf %426, %427 : vector<8x256xf32>
    %cst_159 = arith.constant dense<0.000000e+00> : vector<8xf32>
    %429 = vector.multi_reduction <add>, %428, %cst_159 [1] : vector<8x256xf32> to vector<8xf32>
    %430 = vector.shape_cast %429 : vector<8xf32> to vector<8x1xf32>
    %cst_160 = arith.constant 2.560000e+02 : f32
    %431 = vector.broadcast %cst_160 : f32 to vector<8x1xf32>
    %432 = arith.divf %430, %431 : vector<8x1xf32>
    %433 = arith.mulf %428, %428 : vector<8x256xf32>
    %cst_161 = arith.constant dense<0.000000e+00> : vector<8xf32>
    %434 = vector.multi_reduction <add>, %433, %cst_161 [1] : vector<8x256xf32> to vector<8xf32>
    %435 = vector.shape_cast %434 : vector<8xf32> to vector<8x1xf32>
    %cst_162 = arith.constant 2.560000e+02 : f32
    %436 = vector.broadcast %cst_162 : f32 to vector<8x1xf32>
    %437 = arith.divf %435, %436 : vector<8x1xf32>
    %438 = arith.mulf %432, %432 : vector<8x1xf32>
    %439 = arith.subf %437, %438 : vector<8x1xf32>
    %cst_163 = arith.constant 0.000000e+00 : f32
    %440 = vector.broadcast %cst_163 : f32 to vector<8x1xf32>
    %441 = arith.maximumf %439, %440 : vector<8x1xf32>
    %442 = vector.broadcast %432 : vector<8x1xf32> to vector<8x256xf32>
    %443 = arith.subf %428, %442 : vector<8x256xf32>
    %cst_164 = arith.constant 9.99999974E-6 : f32
    %444 = vector.broadcast %cst_164 : f32 to vector<8x1xf32>
    %445 = arith.addf %441, %444 : vector<8x1xf32>
    %446 = math.rsqrt %445 : vector<8x1xf32>
    %447 = vector.broadcast %446 : vector<8x1xf32> to vector<8x256xf32>
    %448 = arith.mulf %443, %447 : vector<8x256xf32>
    %cst_165 = arith.constant 0.000000e+00 : f32
    %449 = vector.broadcast %cst_165 : f32 to vector<8x256xf32>
    %450 = arith.maximumf %448, %449 : vector<8x256xf32>
    %451 = arith.addf %450, %416 : vector<8x256xf32>
    %c16_i32_166 = arith.constant 16 : i32
    %452 = tpu.dynamic_rotate %451 by %c16_i32_166 dim 1 : vector<8x256xf32>, i32 -> vector<8x256xf32>
    %453 = vector.broadcast %2 : vector<1x256xf32> to vector<8x256xf32>
    %454 = arith.mulf %452, %453 : vector<8x256xf32>
    %c240_i32_167 = arith.constant 240 : i32
    %455 = tpu.dynamic_rotate %451 by %c240_i32_167 dim 1 : vector<8x256xf32>, i32 -> vector<8x256xf32>
    %456 = vector.broadcast %3 : vector<1x256xf32> to vector<8x256xf32>
    %457 = arith.mulf %455, %456 : vector<8x256xf32>
    %458 = tpu.concatenate %454, %451, %457 in 0 : vector<8x256xf32>, vector<8x256xf32>, vector<8x256xf32> -> vector<24x256xf32>
    %459 = arith.truncf %458 : vector<24x256xf32> to vector<24x256xbf16>
    %cst_168 = arith.constant dense<0.000000e+00> : vector<8x256xf32>
    %460 = tpu.matmul %16, %459, %cst_168 {dimension_numbers = #tpu.dot_dimension_numbers<[1], [0], [0], [1], [0, 0, 1, 1], [], []>} : vector<8x24xbf16>, vector<24x256xbf16>, vector<8x256xf32> -> vector<8x256xf32>
    %461 = vector.broadcast %17 : vector<8x1xf32> to vector<8x256xf32>
    %462 = arith.addf %460, %461 : vector<8x256xf32>
    %cst_169 = arith.constant dense<0.000000e+00> : vector<8xf32>
    %463 = vector.multi_reduction <add>, %462, %cst_169 [1] : vector<8x256xf32> to vector<8xf32>
    %464 = vector.shape_cast %463 : vector<8xf32> to vector<8x1xf32>
    %cst_170 = arith.constant 2.560000e+02 : f32
    %465 = vector.broadcast %cst_170 : f32 to vector<8x1xf32>
    %466 = arith.divf %464, %465 : vector<8x1xf32>
    %467 = arith.mulf %462, %462 : vector<8x256xf32>
    %cst_171 = arith.constant dense<0.000000e+00> : vector<8xf32>
    %468 = vector.multi_reduction <add>, %467, %cst_171 [1] : vector<8x256xf32> to vector<8xf32>
    %469 = vector.shape_cast %468 : vector<8xf32> to vector<8x1xf32>
    %cst_172 = arith.constant 2.560000e+02 : f32
    %470 = vector.broadcast %cst_172 : f32 to vector<8x1xf32>
    %471 = arith.divf %469, %470 : vector<8x1xf32>
    %472 = arith.mulf %466, %466 : vector<8x1xf32>
    %473 = arith.subf %471, %472 : vector<8x1xf32>
    %cst_173 = arith.constant 0.000000e+00 : f32
    %474 = vector.broadcast %cst_173 : f32 to vector<8x1xf32>
    %475 = arith.maximumf %473, %474 : vector<8x1xf32>
    %476 = vector.broadcast %466 : vector<8x1xf32> to vector<8x256xf32>
    %477 = arith.subf %462, %476 : vector<8x256xf32>
    %cst_174 = arith.constant 9.99999974E-6 : f32
    %478 = vector.broadcast %cst_174 : f32 to vector<8x1xf32>
    %479 = arith.addf %475, %478 : vector<8x1xf32>
    %480 = math.rsqrt %479 : vector<8x1xf32>
    %481 = vector.broadcast %480 : vector<8x1xf32> to vector<8x256xf32>
    %482 = arith.mulf %477, %481 : vector<8x256xf32>
    %cst_175 = arith.constant 0.000000e+00 : f32
    %483 = vector.broadcast %cst_175 : f32 to vector<8x256xf32>
    %484 = arith.maximumf %482, %483 : vector<8x256xf32>
    %485 = arith.addf %484, %417 : vector<8x256xf32>
    %c16_i32_176 = arith.constant 16 : i32
    %486 = tpu.dynamic_rotate %485 by %c16_i32_176 dim 1 : vector<8x256xf32>, i32 -> vector<8x256xf32>
    %487 = vector.broadcast %2 : vector<1x256xf32> to vector<8x256xf32>
    %488 = arith.mulf %486, %487 : vector<8x256xf32>
    %c240_i32_177 = arith.constant 240 : i32
    %489 = tpu.dynamic_rotate %485 by %c240_i32_177 dim 1 : vector<8x256xf32>, i32 -> vector<8x256xf32>
    %490 = vector.broadcast %3 : vector<1x256xf32> to vector<8x256xf32>
    %491 = arith.mulf %489, %490 : vector<8x256xf32>
    %492 = tpu.concatenate %488, %485, %491 in 0 : vector<8x256xf32>, vector<8x256xf32>, vector<8x256xf32> -> vector<24x256xf32>
    %493 = arith.truncf %492 : vector<24x256xf32> to vector<24x256xbf16>
    %cst_178 = arith.constant dense<0.000000e+00> : vector<8x256xf32>
    %494 = tpu.matmul %18, %493, %cst_178 {dimension_numbers = #tpu.dot_dimension_numbers<[1], [0], [0], [1], [0, 0, 1, 1], [], []>} : vector<8x24xbf16>, vector<24x256xbf16>, vector<8x256xf32> -> vector<8x256xf32>
    %495 = vector.broadcast %19 : vector<8x1xf32> to vector<8x256xf32>
    %496 = arith.addf %494, %495 : vector<8x256xf32>
    %cst_179 = arith.constant dense<0.000000e+00> : vector<8xf32>
    %497 = vector.multi_reduction <add>, %496, %cst_179 [1] : vector<8x256xf32> to vector<8xf32>
    %498 = vector.shape_cast %497 : vector<8xf32> to vector<8x1xf32>
    %cst_180 = arith.constant 2.560000e+02 : f32
    %499 = vector.broadcast %cst_180 : f32 to vector<8x1xf32>
    %500 = arith.divf %498, %499 : vector<8x1xf32>
    %501 = arith.mulf %496, %496 : vector<8x256xf32>
    %cst_181 = arith.constant dense<0.000000e+00> : vector<8xf32>
    %502 = vector.multi_reduction <add>, %501, %cst_181 [1] : vector<8x256xf32> to vector<8xf32>
    %503 = vector.shape_cast %502 : vector<8xf32> to vector<8x1xf32>
    %cst_182 = arith.constant 2.560000e+02 : f32
    %504 = vector.broadcast %cst_182 : f32 to vector<8x1xf32>
    %505 = arith.divf %503, %504 : vector<8x1xf32>
    %506 = arith.mulf %500, %500 : vector<8x1xf32>
    %507 = arith.subf %505, %506 : vector<8x1xf32>
    %cst_183 = arith.constant 0.000000e+00 : f32
    %508 = vector.broadcast %cst_183 : f32 to vector<8x1xf32>
    %509 = arith.maximumf %507, %508 : vector<8x1xf32>
    %510 = vector.broadcast %500 : vector<8x1xf32> to vector<8x256xf32>
    %511 = arith.subf %496, %510 : vector<8x256xf32>
    %cst_184 = arith.constant 9.99999974E-6 : f32
    %512 = vector.broadcast %cst_184 : f32 to vector<8x1xf32>
    %513 = arith.addf %509, %512 : vector<8x1xf32>
    %514 = math.rsqrt %513 : vector<8x1xf32>
    %515 = vector.broadcast %514 : vector<8x1xf32> to vector<8x256xf32>
    %516 = arith.mulf %511, %515 : vector<8x256xf32>
    %cst_185 = arith.constant 0.000000e+00 : f32
    %517 = vector.broadcast %cst_185 : f32 to vector<8x256xf32>
    %518 = arith.maximumf %516, %517 : vector<8x256xf32>
    %519 = tpu.concatenate %414, %450, %484, %518, %277 in 0 : vector<8x256xf32>, vector<8x256xf32>, vector<8x256xf32>, vector<8x256xf32>, vector<4x256xf32> -> vector<36x256xf32>
    %520 = arith.truncf %519 : vector<36x256xf32> to vector<36x256xbf16>
    %cst_186 = arith.constant dense<0.000000e+00> : vector<32x256xf32>
    %521 = tpu.matmul %20, %520, %cst_186 {dimension_numbers = #tpu.dot_dimension_numbers<[1], [0], [0], [1], [0, 0, 1, 1], [], []>} : vector<32x36xbf16>, vector<36x256xbf16>, vector<32x256xf32> -> vector<32x256xf32>
    %522 = vector.broadcast %21 : vector<32x1xf32> to vector<32x256xf32>
    %523 = arith.addf %521, %522 : vector<32x256xf32>
    %524 = arith.addf %523, %413 : vector<32x256xf32>
    %cst_187 = arith.constant 0.000000e+00 : f32
    %525 = vector.broadcast %cst_187 : f32 to vector<32x256xf32>
    %526 = arith.maximumf %524, %525 : vector<32x256xf32>
    %c1_188 = arith.constant 1 : index
    %c0_189 = arith.constant 0 : index
    %c0_190 = arith.constant 0 : index
    %527 = vector.load %arg24[%c1_188, %c0_189, %c0_190] : memref<2x32x256xf32, #tpu.memory_space<vmem>>, vector<1x32x256xf32>
    %528 = vector.shape_cast %527 : vector<1x32x256xf32> to vector<32x256xf32>
    %529 = vector.shape_cast %526 : vector<32x256xf32> to vector<1x32x256xf32>
    tpu.vector_store %arg24[%c1_188, %c0_189, %c0_190], %529 {strides = array<i32>} : memref<2x32x256xf32, #tpu.memory_space<vmem>>, vector<1x32x256xf32>,
    return
  }
  func.func @transform_0(%arg0: i32) -> (i32, i32, i32) {
    %c0_i32 = arith.constant 0 : i32
    %c0_i32_0 = arith.constant 0 : i32
    %c0_i32_1 = arith.constant 0 : i32
    return %arg0, %c0_i32, %c0_i32_0 : i32, i32, i32
  }
  func.func @transform_1(%arg0: i32) -> (i32, i32) {
    %c0_i32 = arith.constant 0 : i32
    %c0_i32_0 = arith.constant 0 : i32
    %c0_i32_1 = arith.constant 0 : i32
    return %c0_i32, %c0_i32_0 : i32, i32
  }
  func.func @transform_2(%arg0: i32) -> (i32, i32) {
    %c0_i32 = arith.constant 0 : i32
    %c0_i32_0 = arith.constant 0 : i32
    %c0_i32_1 = arith.constant 0 : i32
    return %c0_i32, %c0_i32_0 : i32, i32
  }
  func.func @transform_3(%arg0: i32) -> (i32, i32) {
    %c0_i32 = arith.constant 0 : i32
    %c0_i32_0 = arith.constant 0 : i32
    %c0_i32_1 = arith.constant 0 : i32
    return %c0_i32, %c0_i32_0 : i32, i32
  }
  func.func @transform_4(%arg0: i32) -> (i32, i32) {
    %c0_i32 = arith.constant 0 : i32
    %c0_i32_0 = arith.constant 0 : i32
    %c0_i32_1 = arith.constant 0 : i32
    return %c0_i32, %c0_i32_0 : i32, i32
  }
  func.func @transform_5(%arg0: i32) -> (i32, i32) {
    %c0_i32 = arith.constant 0 : i32
    %c0_i32_0 = arith.constant 0 : i32
    %c0_i32_1 = arith.constant 0 : i32
    return %c0_i32, %c0_i32_0 : i32, i32
  }
  func.func @transform_6(%arg0: i32) -> (i32, i32) {
    %c0_i32 = arith.constant 0 : i32
    %c0_i32_0 = arith.constant 0 : i32
    %c0_i32_1 = arith.constant 0 : i32
    return %c0_i32, %c0_i32_0 : i32, i32
  }
  func.func @transform_7(%arg0: i32) -> (i32, i32) {
    %c0_i32 = arith.constant 0 : i32
    %c0_i32_0 = arith.constant 0 : i32
    %c0_i32_1 = arith.constant 0 : i32
    return %c0_i32, %c0_i32_0 : i32, i32
  }
  func.func @transform_8(%arg0: i32) -> (i32, i32) {
    %c0_i32 = arith.constant 0 : i32
    %c0_i32_0 = arith.constant 0 : i32
    %c0_i32_1 = arith.constant 0 : i32
    return %c0_i32, %c0_i32_0 : i32, i32
  }
  func.func @transform_9(%arg0: i32) -> (i32, i32) {
    %c0_i32 = arith.constant 0 : i32
    %c0_i32_0 = arith.constant 0 : i32
    %c0_i32_1 = arith.constant 0 : i32
    return %c0_i32, %c0_i32_0 : i32, i32
  }
  func.func @transform_10(%arg0: i32) -> (i32, i32) {
    %c0_i32 = arith.constant 0 : i32
    %c0_i32_0 = arith.constant 0 : i32
    %c0_i32_1 = arith.constant 0 : i32
    return %c0_i32, %c0_i32_0 : i32, i32
  }
  func.func @transform_11(%arg0: i32) -> (i32, i32) {
    %c0_i32 = arith.constant 0 : i32
    %c0_i32_0 = arith.constant 0 : i32
    %c0_i32_1 = arith.constant 0 : i32
    return %c0_i32, %c0_i32_0 : i32, i32
  }
  func.func @transform_12(%arg0: i32) -> (i32, i32) {
    %c0_i32 = arith.constant 0 : i32
    %c0_i32_0 = arith.constant 0 : i32
    %c0_i32_1 = arith.constant 0 : i32
    return %c0_i32, %c0_i32_0 : i32, i32
  }
  func.func @transform_13(%arg0: i32) -> (i32, i32) {
    %c0_i32 = arith.constant 0 : i32
    %c0_i32_0 = arith.constant 0 : i32
    %c0_i32_1 = arith.constant 0 : i32
    return %c0_i32, %c0_i32_0 : i32, i32
  }
  func.func @transform_14(%arg0: i32) -> (i32, i32) {
    %c0_i32 = arith.constant 0 : i32
    %c0_i32_0 = arith.constant 0 : i32
    %c0_i32_1 = arith.constant 0 : i32
    return %c0_i32, %c0_i32_0 : i32, i32
  }
  func.func @transform_15(%arg0: i32) -> (i32, i32) {
    %c0_i32 = arith.constant 0 : i32
    %c0_i32_0 = arith.constant 0 : i32
    %c0_i32_1 = arith.constant 0 : i32
    return %c0_i32, %c0_i32_0 : i32, i32
  }
  func.func @transform_16(%arg0: i32) -> (i32, i32) {
    %c0_i32 = arith.constant 0 : i32
    %c0_i32_0 = arith.constant 0 : i32
    %c0_i32_1 = arith.constant 0 : i32
    return %c0_i32, %c0_i32_0 : i32, i32
  }
  func.func @transform_17(%arg0: i32) -> (i32, i32) {
    %c0_i32 = arith.constant 0 : i32
    %c0_i32_0 = arith.constant 0 : i32
    %c0_i32_1 = arith.constant 0 : i32
    return %c0_i32, %c0_i32_0 : i32, i32
  }
  func.func @transform_18(%arg0: i32) -> (i32, i32) {
    %c0_i32 = arith.constant 0 : i32
    %c0_i32_0 = arith.constant 0 : i32
    %c0_i32_1 = arith.constant 0 : i32
    return %c0_i32, %c0_i32_0 : i32, i32
  }
  func.func @transform_19(%arg0: i32) -> (i32, i32) {
    %c0_i32 = arith.constant 0 : i32
    %c0_i32_0 = arith.constant 0 : i32
    %c0_i32_1 = arith.constant 0 : i32
    return %c0_i32, %c0_i32_0 : i32, i32
  }
  func.func @transform_20(%arg0: i32) -> (i32, i32) {
    %c0_i32 = arith.constant 0 : i32
    %c0_i32_0 = arith.constant 0 : i32
    %c0_i32_1 = arith.constant 0 : i32
    return %c0_i32, %c0_i32_0 : i32, i32
  }
  func.func @transform_21(%arg0: i32) -> (i32, i32) {
    %c0_i32 = arith.constant 0 : i32
    %c0_i32_0 = arith.constant 0 : i32
    %c0_i32_1 = arith.constant 0 : i32
    return %c0_i32, %c0_i32_0 : i32, i32
  }
  func.func @transform_22(%arg0: i32) -> (i32, i32) {
    %c0_i32 = arith.constant 0 : i32
    %c0_i32_0 = arith.constant 0 : i32
    %c0_i32_1 = arith.constant 0 : i32
    return %c0_i32, %c0_i32_0 : i32, i32
  }
  func.func @transform_23(%arg0: i32) -> (i32, i32, i32) {
    %c0_i32 = arith.constant 0 : i32
    %c0_i32_0 = arith.constant 0 : i32
    %c0_i32_1 = arith.constant 0 : i32
    return %arg0, %c0_i32, %c0_i32_0 : i32, i32, i32
  }
}

</mosaic_0001>

<llo_original>
// kernel: tpu_custom_call.1
$region0: #{tpu_custom_call.1}
  #allocation0 [shape = 'u32[]', space=smem, size = 0x4, offset = 0x4, fixed_abs, tag = 'smem constant byte address 0x4 - core index']
  #allocation1 [shape = 'u32[144,128]{1,0:T(1,128)}', space=vmem, size = 0x12000, scoped, tag = 'internal scratch']
  %s0 = inlined_call_operand.vmem [shape: f32[2,4,256], index: 0, kind: input, shape index: {}]
  %s1 = inlined_call_operand.vmem [shape: f32[1,256], index: 1, kind: input, shape index: {}]
  %s2 = inlined_call_operand.vmem [shape: f32[1,256], index: 2, kind: input, shape index: {}]
  %s3 = inlined_call_operand.vmem [shape: f32[1,256], index: 3, kind: input, shape index: {}]
  %s4 = inlined_call_operand.vmem [shape: f32[1,256], index: 4, kind: input, shape index: {}]
  %s5 = inlined_call_operand.vmem [shape: bf16[32,4], index: 5, kind: input, shape index: {}]
  %s6 = inlined_call_operand.vmem [shape: f32[32,1], index: 6, kind: input, shape index: {}]
  %s7 = inlined_call_operand.vmem [shape: bf16[8,24], index: 7, kind: input, shape index: {}]
  %s8 = inlined_call_operand.vmem [shape: f32[8,1], index: 8, kind: input, shape index: {}]
  %s9 = inlined_call_operand.vmem [shape: bf16[8,24], index: 9, kind: input, shape index: {}]
  %s10 = inlined_call_operand.vmem [shape: f32[8,1], index: 10, kind: input, shape index: {}]
  %s11 = inlined_call_operand.vmem [shape: bf16[8,24], index: 11, kind: input, shape index: {}]
  %s12 = inlined_call_operand.vmem [shape: f32[8,1], index: 12, kind: input, shape index: {}]
  %s13 = inlined_call_operand.vmem [shape: bf16[32,32], index: 13, kind: input, shape index: {}]
  %s14 = inlined_call_operand.vmem [shape: f32[32,1], index: 14, kind: input, shape index: {}]
  %s15 = inlined_call_operand.vmem [shape: bf16[8,24], index: 15, kind: input, shape index: {}]
  %s16 = inlined_call_operand.vmem [shape: f32[8,1], index: 16, kind: input, shape index: {}]
  %s17 = inlined_call_operand.vmem [shape: bf16[8,24], index: 17, kind: input, shape index: {}]
  %s18 = inlined_call_operand.vmem [shape: f32[8,1], index: 18, kind: input, shape index: {}]
  %s19 = inlined_call_operand.vmem [shape: bf16[8,24], index: 19, kind: input, shape index: {}]
  %s20 = inlined_call_operand.vmem [shape: f32[8,1], index: 20, kind: input, shape index: {}]
  %s21 = inlined_call_operand.vmem [shape: bf16[32,36], index: 21, kind: input, shape index: {}]
  %s22 = inlined_call_operand.vmem [shape: f32[32,1], index: 22, kind: input, shape index: {}]
  %s23 = inlined_call_operand.hbm [shape: f32[2,32,256], index: 23, kind: output, shape index: {}]
  %s24 = sld [smem:[#allocation0]]
  $region102: #{tpu_custom_call.1} parent=0
    _
  %s26 = ssub.s32 1, %s24
  %s27 = scalar_select 0, %s26, %s24
  $region1: #{tpu_custom_call.1} parent=0
    #allocation2 [shape = 'u8[65536]{0}', space=vmem, size = 0x10000, scoped, tag = 'output window, operand 0, single buffered']
    #allocation3 [shape = 's32[1]{0}', space=sflag, size = 0x4, scoped, tag = 'scoped memory for tpu_custom_call.1']
    %28 = vsyncpa [#allocation3], 0
    // Predicated region
    $region2: #{tpu_custom_call.1} parent=1 // pred_check
      _
    $region3: #{tpu_custom_call.1} parent=1 // pred_check_branch
      %30 = sbr.rel (0) target = $region5
    $region4: #{tpu_custom_call.1} parent=1 // pred_region
      _
    $region5: #{tpu_custom_call.1} parent=1 // pred_fallthru
      _
    // Predicated region
    $region6: #{tpu_custom_call.1} parent=1 // pred_check
      _
    $region7: #{tpu_custom_call.1} parent=1 // pred_check_branch
      %32 = sbr.rel (0) target = $region9
    $region8: #{tpu_custom_call.1} parent=1 // pred_region
      _
    $region9: #{tpu_custom_call.1} parent=1 // pred_fallthru
      _
    // Predicated region
    $region10: #{tpu_custom_call.1} parent=1 // pred_check
      _
    $region11: #{tpu_custom_call.1} parent=1 // pred_check_branch
      %34 = sbr.rel (0) target = $region13
    $region12: #{tpu_custom_call.1} parent=1 // pred_region
      _
    $region13: #{tpu_custom_call.1} parent=1 // pred_fallthru
      _
    // Predicated region
    $region14: #{tpu_custom_call.1} parent=1 // pred_check
      _
    $region15: #{tpu_custom_call.1} parent=1 // pred_check_branch
      %36 = sbr.rel (0) target = $region17
    $region16: #{tpu_custom_call.1} parent=1 // pred_region
      _
    $region17: #{tpu_custom_call.1} parent=1 // pred_fallthru
      _
    // Predicated region
    $region18: #{tpu_custom_call.1} parent=1 // pred_check
      _
    $region19: #{tpu_custom_call.1} parent=1 // pred_check_branch
      %38 = sbr.rel (0) target = $region21
    $region20: #{tpu_custom_call.1} parent=1 // pred_region
      _
    $region21: #{tpu_custom_call.1} parent=1 // pred_fallthru
      _
    // Predicated region
    $region22: #{tpu_custom_call.1} parent=1 // pred_check
      _
    $region23: #{tpu_custom_call.1} parent=1 // pred_check_branch
      %40 = sbr.rel (0) target = $region25
    $region24: #{tpu_custom_call.1} parent=1 // pred_region
      _
    $region25: #{tpu_custom_call.1} parent=1 // pred_fallthru
      _
    // Predicated region
    $region26: #{tpu_custom_call.1} parent=1 // pred_check
      _
    $region27: #{tpu_custom_call.1} parent=1 // pred_check_branch
      %42 = sbr.rel (0) target = $region29
    $region28: #{tpu_custom_call.1} parent=1 // pred_region
      _
    $region29: #{tpu_custom_call.1} parent=1 // pred_fallthru
      _
    // Predicated region
    $region30: #{tpu_custom_call.1} parent=1 // pred_check
      _
    $region31: #{tpu_custom_call.1} parent=1 // pred_check_branch
      %44 = sbr.rel (0) target = $region33
    $region32: #{tpu_custom_call.1} parent=1 // pred_region
      _
    $region33: #{tpu_custom_call.1} parent=1 // pred_fallthru
      _
    // Predicated region
    $region34: #{tpu_custom_call.1} parent=1 // pred_check
      _
    $region35: #{tpu_custom_call.1} parent=1 // pred_check_branch
      %46 = sbr.rel (0) target = $region37
    $region36: #{tpu_custom_call.1} parent=1 // pred_region
      _
    $region37: #{tpu_custom_call.1} parent=1 // pred_fallthru
      _
    // Predicated region
    $region38: #{tpu_custom_call.1} parent=1 // pred_check
      _
    $region39: #{tpu_custom_call.1} parent=1 // pred_check_branch
      %48 = sbr.rel (0) target = $region41
    $region40: #{tpu_custom_call.1} parent=1 // pred_region
      _
    $region41: #{tpu_custom_call.1} parent=1 // pred_fallthru
      _
    // Predicated region
    $region42: #{tpu_custom_call.1} parent=1 // pred_check
      _
    $region43: #{tpu_custom_call.1} parent=1 // pred_check_branch
      %50 = sbr.rel (0) target = $region45
    $region44: #{tpu_custom_call.1} parent=1 // pred_region
      _
    $region45: #{tpu_custom_call.1} parent=1 // pred_fallthru
      _
    // Predicated region
    $region46: #{tpu_custom_call.1} parent=1 // pred_check
      _
    $region47: #{tpu_custom_call.1} parent=1 // pred_check_branch
      %52 = sbr.rel (0) target = $region49
    $region48: #{tpu_custom_call.1} parent=1 // pred_region
      _
    $region49: #{tpu_custom_call.1} parent=1 // pred_fallthru
      _
    // Predicated region
    $region50: #{tpu_custom_call.1} parent=1 // pred_check
      _
    $region51: #{tpu_custom_call.1} parent=1 // pred_check_branch
      %54 = sbr.rel (0) target = $region53
    $region52: #{tpu_custom_call.1} parent=1 // pred_region
      _
    $region53: #{tpu_custom_call.1} parent=1 // pred_fallthru
      _
    // Predicated region
    $region54: #{tpu_custom_call.1} parent=1 // pred_check
      _
    $region55: #{tpu_custom_call.1} parent=1 // pred_check_branch
      %56 = sbr.rel (0) target = $region57
    $region56: #{tpu_custom_call.1} parent=1 // pred_region
      _
    $region57: #{tpu_custom_call.1} parent=1 // pred_fallthru
      _
    // Predicated region
    $region58: #{tpu_custom_call.1} parent=1 // pred_check
      _
    $region59: #{tpu_custom_call.1} parent=1 // pred_check_branch
      %58 = sbr.rel (0) target = $region61
    $region60: #{tpu_custom_call.1} parent=1 // pred_region
      _
    $region61: #{tpu_custom_call.1} parent=1 // pred_fallthru
      _
    // Predicated region
    $region62: #{tpu_custom_call.1} parent=1 // pred_check
      _
    $region63: #{tpu_custom_call.1} parent=1 // pred_check_branch
      %60 = sbr.rel (0) target = $region65
    $region64: #{tpu_custom_call.1} parent=1 // pred_region
      _
    $region65: #{tpu_custom_call.1} parent=1 // pred_fallthru
      _
    // Predicated region
    $region66: #{tpu_custom_call.1} parent=1 // pred_check
      _
    $region67: #{tpu_custom_call.1} parent=1 // pred_check_branch
      %62 = sbr.rel (0) target = $region69
    $region68: #{tpu_custom_call.1} parent=1 // pred_region
      _
    $region69: #{tpu_custom_call.1} parent=1 // pred_fallthru
      _
    // Predicated region
    $region70: #{tpu_custom_call.1} parent=1 // pred_check
      _
    $region71: #{tpu_custom_call.1} parent=1 // pred_check_branch
      %64 = sbr.rel (0) target = $region73
    $region72: #{tpu_custom_call.1} parent=1 // pred_region
      _
    $region73: #{tpu_custom_call.1} parent=1 // pred_fallthru
      _
    // Predicated region
    $region74: #{tpu_custom_call.1} parent=1 // pred_check
      _
    $region75: #{tpu_custom_call.1} parent=1 // pred_check_branch
      %66 = sbr.rel (0) target = $region77
    $region76: #{tpu_custom_call.1} parent=1 // pred_region
      _
    $region77: #{tpu_custom_call.1} parent=1 // pred_fallthru
      _
    // Predicated region
    $region78: #{tpu_custom_call.1} parent=1 // pred_check
      _
    $region79: #{tpu_custom_call.1} parent=1 // pred_check_branch
      %68 = sbr.rel (0) target = $region81
    $region80: #{tpu_custom_call.1} parent=1 // pred_region
      _
    $region81: #{tpu_custom_call.1} parent=1 // pred_fallthru
      _
    // Predicated region
    $region82: #{tpu_custom_call.1} parent=1 // pred_check
      _
    $region83: #{tpu_custom_call.1} parent=1 // pred_check_branch
      %70 = sbr.rel (0) target = $region85
    $region84: #{tpu_custom_call.1} parent=1 // pred_region
      _
    $region85: #{tpu_custom_call.1} parent=1 // pred_fallthru
      _
    // Predicated region
    $region86: #{tpu_custom_call.1} parent=1 // pred_check
      _
    $region87: #{tpu_custom_call.1} parent=1 // pred_check_branch
      %72 = sbr.rel (0) target = $region89
    $region88: #{tpu_custom_call.1} parent=1 // pred_region
      _
    $region89: #{tpu_custom_call.1} parent=1 // pred_fallthru
      _
    // Predicated region
    $region90: #{tpu_custom_call.1} parent=1 // pred_check
      _
    $region91: #{tpu_custom_call.1} parent=1 // pred_check_branch
      %74 = sbr.rel (0) target = $region93
    $region92: #{tpu_custom_call.1} parent=1 // pred_region
      _
    $region93: #{tpu_custom_call.1} parent=1 // pred_fallthru
      _
    %v76 = vld [vmem:[%s1] sm:$0x3]
    %v77 = vld [vmem:[%s2] sm:$0x3]
    %v78 = vld [vmem:[%s3] sm:$0x3]
    %v79 = vld [vmem:[%s4] sm:$0x3]
    %v80 = vld [vmem:[%s5] sm:$0xf]
    %v81 = vld [vmem:[%s5 + $0x4] sm:$0xf]
    %v82 = vld [vmem:[%s5 + $0x8] sm:$0xf]
    %v83 = vld [vmem:[%s5 + $0xc] sm:$0xf]
    %v84 = vld [vmem:[%s6] sm:$0xff]
    %v85 = vld [vmem:[%s6 + $0x8] sm:$0xff]
    %v86 = vld [vmem:[%s6 + $0x10] sm:$0xff]
    %v87 = vld [vmem:[%s6 + $0x18] sm:$0xff]
    %v88 = vld [vmem:[%s7] sm:$0xf]
    %v89 = vld [vmem:[%s8] sm:$0xff]
    %v90 = vld [vmem:[%s9] sm:$0xf]
    %v91 = vld [vmem:[%s10] sm:$0xff]
    %v92 = vld [vmem:[%s11] sm:$0xf]
    %v93 = vld [vmem:[%s12] sm:$0xff]
    %v94 = vld [vmem:[%s13] sm:$0xf]
    %v95 = vld [vmem:[%s13 + $0x4] sm:$0xf]
    %v96 = vld [vmem:[%s13 + $0x8] sm:$0xf]
    %v97 = vld [vmem:[%s13 + $0xc] sm:$0xf]
    %v98 = vld [vmem:[%s14] sm:$0xff]
    %v99 = vld [vmem:[%s14 + $0x8] sm:$0xff]
    %v100 = vld [vmem:[%s14 + $0x10] sm:$0xff]
    %v101 = vld [vmem:[%s14 + $0x18] sm:$0xff]
    %v102 = vld [vmem:[%s15] sm:$0xf]
    %v103 = vld [vmem:[%s16] sm:$0xff]
    %v104 = vld [vmem:[%s17] sm:$0xf]
    %v105 = vld [vmem:[%s18] sm:$0xff]
    %v106 = vld [vmem:[%s19] sm:$0xf]
    %v107 = vld [vmem:[%s20] sm:$0xff]
    %v108 = vld [vmem:[%s21] sm:$0xf]
    %v109 = vld [vmem:[%s21 + $0x4] sm:$0xf]
    %v110 = vld [vmem:[%s21 + $0x8] sm:$0xf]
    %v111 = vld [vmem:[%s21 + $0xc] sm:$0xf]
    %v112 = vld [vmem:[%s22] sm:$0xff]
    %v113 = vld [vmem:[%s22 + $0x8] sm:$0xff]
    %v114 = vld [vmem:[%s22 + $0x10] sm:$0xff]
    %v115 = vld [vmem:[%s22 + $0x18] sm:$0xff]
    %v116 = vld [vmem:[%s0] sm:$0xff]
    %v118 = vcombine.high %v116, %v116
    %v120 = vpack.c.bf16 %v116, %v116
    %v121 = vpack.c.bf16 %v118, %v118
    %123 = vset.pattern.permute.xlu0 0
    %124 = vperm.xlu0 %123, %v84
    %v125 = vpop.permute.xlu0 %124
    %128 = vset.pattern.permute.xlu0 0
    %129 = vperm.xlu0 %128, %v85
    %v130 = vpop.permute.xlu0 %129
    %133 = vset.pattern.permute.xlu0 0
    %134 = vperm.xlu0 %133, %v86
    %v135 = vpop.permute.xlu0 %134
    %138 = vset.pattern.permute.xlu0 0
    %139 = vperm.xlu0 %138, %v87
    %v140 = vpop.permute.xlu0 %139
    %v146 = vunpack.c.l.b16 %v80
    %v147 = vunpack.c.l.b16 %v81
    %v148 = vunpack.c.l.b16 %v82
    %v149 = vunpack.c.l.b16 %v83
    %v150 = vpack.c.b16 %v147, %v146
    %v151 = vpack.c.b16 %v149, %v148
    %vm152 = vcmask 31744
    %v154 = vsel %vm152, %v150, 0
    %v157 = vsel %vm152, %v151, 0
    %vm159 = vcmask 1041408
    %v161 = vsel %vm159, %v120, 0
    %v164 = vsel %vm159, %v121, 0
    %166 = vmatprep.subr.bf16.mxu0 %v164
    %167 = vmatpush1.bf16.msra.mxu0 %v161
    %168 = vmatprep.subr.bf16.mxu0 0
    %169 = vmatpush1.bf16.msra.mxu0 0
    %170 = vmatprep.subr.bf16.mxu0 0
    %171 = vmatpush1.bf16.msra.mxu0 0
    %172 = vmatprep.subr.bf16.mxu0 0
    %173 = vmatpush1.bf16.msra.mxu0 0
    %174 = vmatprep.subr.bf16.mxu0 0
    %175 = vmatpush1.bf16.msra.mxu0 0
    %176 = vmatprep.subr.bf16.mxu0 0
    %177 = vmatpush1.bf16.msra.mxu0 0
    %178 = vmatprep.subr.bf16.mxu0 0
    %179 = vmatpush1.bf16.msra.mxu0 0
    %180 = vmatprep.subr.bf16.mxu0 0
    %181 = vmatpush1.bf16.msra.mxu0 0
    %182 = vmatprep.subr.bf16.mxu0 0
    %183 = vmatpush1.bf16.msra.mxu0 0
    %184 = vmatprep.subr.bf16.mxu0 0
    %185 = vmatpush1.bf16.msra.mxu0 0
    %186 = vmatprep.subr.bf16.mxu0 0
    %187 = vmatpush1.bf16.msra.mxu0 0
    %188 = vmatprep.subr.bf16.mxu0 0
    %189 = vmatpush1.bf16.msra.mxu0 0
    %190 = vmatprep.subr.bf16.mxu0 0
    %191 = vmatpush1.bf16.msra.mxu0 0
    %192 = vmatprep.subr.bf16.mxu0 0
    %193 = vmatpush1.bf16.msra.mxu0 0
    %194 = vmatprep.subr.bf16.mxu0 0
    %195 = vmatpush1.bf16.msra.mxu0 0
    %196 = vmatprep.subr.bf16.mxu0 0
    %197 = vmatpush1.bf16.msra.mxu0 0
    %198 = vmatprep.mubr.bf16.mxu0 0
    %199 = vmatmul.mubr.bf16.gmra.mrb[0].mxu0 %v154
    %v200 = vpop.f32.mrb[0].mxu0
    %v201 = vadd.f32 %v125, %v200
    %v202 = vpop.f32.mrb[0].mxu0
    %v203 = vadd.f32 %v125, %v202
    %v204 = vpop.f32.mrb[0].mxu0
    %v205 = vadd.f32 %v130, %v204
    %v206 = vpop.f32.mrb[0].mxu0
    %v207 = vadd.f32 %v130, %v206
    %208 = vmatprep.mubr.bf16.mxu0 0
    %209 = vmatmul.mubr.bf16.gmra.mrb[0].mxu0 %v157
    %v210 = vpop.f32.mrb[0].mxu0
    %v211 = vadd.f32 %v135, %v210
    %v212 = vpop.f32.mrb[0].mxu0
    %v213 = vadd.f32 %v135, %v212
    %v214 = vpop.f32.mrb[0].mxu0
    %v215 = vadd.f32 %v140, %v214
    %v216 = vpop.f32.mrb[0].mxu0
    %v217 = vadd.f32 %v140, %v216
    %218 = vdwg.mxu0
    %v219 = vadd.f32 %v201, %v203
    %220 = vadd.xlane.f32.xlu0 %v219
    %v221 = vpop.xlane.xlu0 %220
    %v222 = vadd.f32 %v205, %v207
    %223 = vadd.xlane.f32.xlu0 %v222
    %v224 = vpop.xlane.xlu0 %223
    %v225 = vadd.f32 %v211, %v213
    %226 = vadd.xlane.f32.xlu0 %v225
    %v227 = vpop.xlane.xlu0 %226
    %v228 = vadd.f32 %v215, %v217
    %229 = vadd.xlane.f32.xlu0 %v228
    %v230 = vpop.xlane.xlu0 %229
    %v231 = vrcp.pop 256.0
    %v232 = vmul.f32 %v221, %v231
    %v233 = vmul.f32 %v224, %v231
    %v234 = vmul.f32 %v227, %v231
    %v235 = vmul.f32 %v230, %v231
    %v236 = vmul.f32 %v201, %v201
    %v237 = vmul.f32 %v203, %v203
    %v238 = vmul.f32 %v205, %v205
    %v239 = vmul.f32 %v207, %v207
    %v240 = vmul.f32 %v211, %v211
    %v241 = vmul.f32 %v213, %v213
    %v242 = vmul.f32 %v215, %v215
    %v243 = vmul.f32 %v217, %v217
    %v244 = vadd.f32 %v236, %v237
    %245 = vadd.xlane.f32.xlu0 %v244
    %v246 = vpop.xlane.xlu0 %245
    %v247 = vadd.f32 %v238, %v239
    %248 = vadd.xlane.f32.xlu0 %v247
    %v249 = vpop.xlane.xlu0 %248
    %v250 = vadd.f32 %v240, %v241
    %251 = vadd.xlane.f32.xlu0 %v250
    %v252 = vpop.xlane.xlu0 %251
    %v253 = vadd.f32 %v242, %v243
    %254 = vadd.xlane.f32.xlu0 %v253
    %v255 = vpop.xlane.xlu0 %254
    %v256 = vmul.f32 %v246, %v231
    %v257 = vmul.f32 %v249, %v231
    %v258 = vmul.f32 %v252, %v231
    %v259 = vmul.f32 %v255, %v231
    %v260 = vmul.f32 %v232, %v232
    %v261 = vmul.f32 %v233, %v233
    %v262 = vmul.f32 %v234, %v234
    %v263 = vmul.f32 %v235, %v235
    %v264 = vsub.f32 %v256, %v260
    %v265 = vsub.f32 %v257, %v261
    %v266 = vsub.f32 %v258, %v262
    %v267 = vsub.f32 %v259, %v263
    %v268 = vmax.f32 %v264, 0.0
    %v269 = vmax.f32 %v265, 0.0
    %v270 = vmax.f32 %v266, 0.0
    %v271 = vmax.f32 %v267, 0.0
    %v272 = vsub.f32 %v201, %v232
    %v273 = vsub.f32 %v203, %v232
    %v274 = vsub.f32 %v205, %v233
    %v275 = vsub.f32 %v207, %v233
    %v276 = vsub.f32 %v211, %v234
    %v277 = vsub.f32 %v213, %v234
    %v278 = vsub.f32 %v215, %v235
    %v279 = vsub.f32 %v217, %v235
    %v280 = vadd.f32 %v268, 1e-05
    %v281 = vadd.f32 %v269, 1e-05
    %v282 = vadd.f32 %v270, 1e-05
    %v283 = vadd.f32 %v271, 1e-05
    %v284 = vrsqrt.pop %v280
    %v285 = vrsqrt.pop %v281
    %v286 = vrsqrt.pop %v282
    %v287 = vrsqrt.pop %v283
    %v288 = vmul.f32 %v272, %v284
    %v289 = vmul.f32 %v273, %v284
    %v290 = vmul.f32 %v274, %v285
    %v291 = vmul.f32 %v275, %v285
    %v292 = vmul.f32 %v276, %v286
    %v293 = vmul.f32 %v277, %v286
    %v294 = vmul.f32 %v278, %v287
    %v295 = vmul.f32 %v279, %v287
    %v296 = vmax.f32 %v288, 0.0
    %v297 = vmax.f32 %v289, 0.0
    %v298 = vmax.f32 %v290, 0.0
    %v299 = vmax.f32 %v291, 0.0
    %v300 = vmax.f32 %v292, 0.0
    %v301 = vmax.f32 %v293, 0.0
    %v302 = vmax.f32 %v294, 0.0
    %v303 = vmax.f32 %v295, 0.0
    %304 = vrot.lane.b32.xlu0 %v298, 1
    %v305 = vpop.permute.xlu0 %304
    %306 = vrot.lane.b32.xlu0 %v299, 1
    %v307 = vpop.permute.xlu0 %306
    %v308 = vlaneseq
    %v309 = vand.u32 %v308, 127
    %vm310 = vcmp.lt.s32.totalorder %v309, 1
    %v311 = vsel %vm310, %v305, %v307
    %v312 = vsel %vm310, %v307, %v305
    %v314 = vlaneseq
    %v315 = vshrl.u32 %v314, 7
    %v316 = vsub.s32 0, %v315
    %v317 = vrot.slane %v76, %v316
    %v318 = vlaneseq
    %v319 = vshrl.u32 %v318, 7
    %v320 = vsub.s32 1, %v319
    %v321 = vrot.slane %v76, %v320
    %v324 = vmul.f32 %v312, %v317
    %v325 = vmul.f32 %v311, %v321
    %326 = vrot.lane.b32.xlu0 %v298, 127
    %v327 = vpop.permute.xlu0 %326
    %328 = vrot.lane.b32.xlu0 %v299, 127
    %v329 = vpop.permute.xlu0 %328
    %vm330 = vcmp.lt.s32.totalorder %v309, 127
    %v331 = vsel %vm330, %v327, %v329
    %v332 = vsel %vm330, %v329, %v327
    %v334 = vlaneseq
    %v335 = vshrl.u32 %v334, 7
    %v336 = vsub.s32 0, %v335
    %v337 = vrot.slane %v77, %v336
    %v338 = vlaneseq
    %v339 = vshrl.u32 %v338, 7
    %v340 = vsub.s32 1, %v339
    %v341 = vrot.slane %v77, %v340
    %v344 = vmul.f32 %v331, %v337
    %v345 = vmul.f32 %v332, %v341
    %v346 = vpack.c.bf16 %v298, %v324
    %v347 = vpack.c.bf16 %v299, %v325
    %v348 = vpack.c.bf16 %v344, %v344
    %v349 = vpack.c.bf16 %v345, %v345
    %351 = vset.pattern.permute.xlu0 0
    %352 = vperm.xlu0 %351, %v89
    %v353 = vpop.permute.xlu0 %352
    %vm355 = vcmask 195584
    %v357 = vsel %vm355, %v88, 0
    %vm359 = vcmask 1043456
    %v361 = vsel %vm359, %v348, 0
    %v364 = vsel %vm359, %v349, 0
    %366 = vmatprep.subr.bf16.mxu0 %v347
    %367 = vmatpush1.bf16.msra.mxu0 %v346
    %368 = vmatprep.subr.bf16.mxu0 %v364
    %369 = vmatpush1.bf16.msra.mxu0 %v361
    %370 = vmatprep.subr.bf16.mxu0 0
    %371 = vmatpush1.bf16.msra.mxu0 0
    %372 = vmatprep.subr.bf16.mxu0 0
    %373 = vmatpush1.bf16.msra.mxu0 0
    %374 = vmatprep.subr.bf16.mxu0 0
    %375 = vmatpush1.bf16.msra.mxu0 0
    %376 = vmatprep.subr.bf16.mxu0 0
    %377 = vmatpush1.bf16.msra.mxu0 0
    %378 = vmatprep.subr.bf16.mxu0 0
    %379 = vmatpush1.bf16.msra.mxu0 0
    %380 = vmatprep.subr.bf16.mxu0 0
    %381 = vmatpush1.bf16.msra.mxu0 0
    %382 = vmatprep.subr.bf16.mxu0 0
    %383 = vmatpush1.bf16.msra.mxu0 0
    %384 = vmatprep.subr.bf16.mxu0 0
    %385 = vmatpush1.bf16.msra.mxu0 0
    %386 = vmatprep.subr.bf16.mxu0 0
    %387 = vmatpush1.bf16.msra.mxu0 0
    %388 = vmatprep.subr.bf16.mxu0 0
    %389 = vmatpush1.bf16.msra.mxu0 0
    %390 = vmatprep.subr.bf16.mxu0 0
    %391 = vmatpush1.bf16.msra.mxu0 0
    %392 = vmatprep.subr.bf16.mxu0 0
    %393 = vmatpush1.bf16.msra.mxu0 0
    %394 = vmatprep.subr.bf16.mxu0 0
    %395 = vmatpush1.bf16.msra.mxu0 0
    %396 = vmatprep.subr.bf16.mxu0 0
    %397 = vmatpush1.bf16.msra.mxu0 0
    %398 = vmatprep.mubr.bf16.mxu0 0
    %399 = vmatmul.mubr.bf16.gmra.mrb[0].mxu0 %v357
    %v400 = vpop.f32.mrb[0].mxu0
    %v401 = vadd.f32 %v353, %v400
    %v402 = vpop.f32.mrb[0].mxu0
    %v403 = vadd.f32 %v353, %v402
    %v404 = vpop.f32.mrb[0].mxu0
    %v405 = vpop.f32.mrb[0].mxu0
    %406 = vdwg.mxu0
    %v407 = vadd.f32 %v401, %v403
    %408 = vadd.xlane.f32.xlu0 %v407
    %v409 = vpop.xlane.xlu0 %408
    %v410 = vmul.f32 %v409, %v231
    %v411 = vmul.f32 %v401, %v401
    %v412 = vmul.f32 %v403, %v403
    %v413 = vadd.f32 %v411, %v412
    %414 = vadd.xlane.f32.xlu0 %v413
    %v415 = vpop.xlane.xlu0 %414
    %v416 = vmul.f32 %v415, %v231
    %v417 = vmul.f32 %v410, %v410
    %v418 = vsub.f32 %v416, %v417
    %v419 = vmax.f32 %v418, 0.0
    %v420 = vsub.f32 %v401, %v410
    %v421 = vsub.f32 %v403, %v410
    %v422 = vadd.f32 %v419, 1e-05
    %v423 = vrsqrt.pop %v422
    %v424 = vmul.f32 %v420, %v423
    %v425 = vmul.f32 %v421, %v423
    %v426 = vmax.f32 %v424, 0.0
    %v427 = vmax.f32 %v425, 0.0
    %v428 = vadd.f32 %v300, %v426
    %v429 = vadd.f32 %v301, %v427
    %430 = vrot.lane.b32.xlu0 %v428, 1
    %v431 = vpop.permute.xlu0 %430
    %432 = vrot.lane.b32.xlu0 %v429, 1
    %v433 = vpop.permute.xlu0 %432
    %v434 = vsel %vm310, %v431, %v433
    %v435 = vsel %vm310, %v433, %v431
    %v436 = vmul.f32 %v435, %v317
    %v437 = vmul.f32 %v434, %v321
    %438 = vrot.lane.b32.xlu0 %v428, 127
    %v439 = vpop.permute.xlu0 %438
    %440 = vrot.lane.b32.xlu0 %v429, 127
    %v441 = vpop.permute.xlu0 %440
    %v442 = vsel %vm330, %v439, %v441
    %v443 = vsel %vm330, %v441, %v439
    %v444 = vmul.f32 %v442, %v337
    %v445 = vmul.f32 %v443, %v341
    %v446 = vpack.c.bf16 %v428, %v436
    %v447 = vpack.c.bf16 %v429, %v437
    %v448 = vpack.c.bf16 %v444, %v444
    %v449 = vpack.c.bf16 %v445, %v445
    %451 = vset.pattern.permute.xlu0 0
    %452 = vperm.xlu0 %451, %v91
    %v453 = vpop.permute.xlu0 %452
    %v456 = vsel %vm355, %v90, 0
    %v459 = vsel %vm359, %v448, 0
    %v462 = vsel %vm359, %v449, 0
    %464 = vmatprep.subr.bf16.mxu0 %v447
    %465 = vmatpush1.bf16.msra.mxu0 %v446
    %466 = vmatprep.subr.bf16.mxu0 %v462
    %467 = vmatpush1.bf16.msra.mxu0 %v459
    %468 = vmatprep.subr.bf16.mxu0 0
    %469 = vmatpush1.bf16.msra.mxu0 0
    %470 = vmatprep.subr.bf16.mxu0 0
    %471 = vmatpush1.bf16.msra.mxu0 0
    %472 = vmatprep.subr.bf16.mxu0 0
    %473 = vmatpush1.bf16.msra.mxu0 0
    %474 = vmatprep.subr.bf16.mxu0 0
    %475 = vmatpush1.bf16.msra.mxu0 0
    %476 = vmatprep.subr.bf16.mxu0 0
    %477 = vmatpush1.bf16.msra.mxu0 0
    %478 = vmatprep.subr.bf16.mxu0 0
    %479 = vmatpush1.bf16.msra.mxu0 0
    %480 = vmatprep.subr.bf16.mxu0 0
    %481 = vmatpush1.bf16.msra.mxu0 0
    %482 = vmatprep.subr.bf16.mxu0 0
    %483 = vmatpush1.bf16.msra.mxu0 0
    %484 = vmatprep.subr.bf16.mxu0 0
    %485 = vmatpush1.bf16.msra.mxu0 0
    %486 = vmatprep.subr.bf16.mxu0 0
    %487 = vmatpush1.bf16.msra.mxu0 0
    %488 = vmatprep.subr.bf16.mxu0 0
    %489 = vmatpush1.bf16.msra.mxu0 0
    %490 = vmatprep.subr.bf16.mxu0 0
    %491 = vmatpush1.bf16.msra.mxu0 0
    %492 = vmatprep.subr.bf16.mxu0 0
    %493 = vmatpush1.bf16.msra.mxu0 0
    %494 = vmatprep.subr.bf16.mxu0 0
    %495 = vmatpush1.bf16.msra.mxu0 0
    %496 = vmatprep.mubr.bf16.mxu0 0
    %497 = vmatmul.mubr.bf16.gmra.mrb[0].mxu0 %v456
    %v498 = vpop.f32.mrb[0].mxu0
    %v499 = vadd.f32 %v453, %v498
    %v500 = vpop.f32.mrb[0].mxu0
    %v501 = vadd.f32 %v453, %v500
    %v502 = vpop.f32.mrb[0].mxu0
    %v503 = vpop.f32.mrb[0].mxu0
    %504 = vdwg.mxu0
    %v505 = vadd.f32 %v499, %v501
    %506 = vadd.xlane.f32.xlu0 %v505
    %v507 = vpop.xlane.xlu0 %506
    %v508 = vmul.f32 %v507, %v231
    %v509 = vmul.f32 %v499, %v499
    %v510 = vmul.f32 %v501, %v501
    %v511 = vadd.f32 %v509, %v510
    %512 = vadd.xlane.f32.xlu0 %v511
    %v513 = vpop.xlane.xlu0 %512
    %v514 = vmul.f32 %v513, %v231
    %v515 = vmul.f32 %v508, %v508
    %v516 = vsub.f32 %v514, %v515
    %v517 = vmax.f32 %v516, 0.0
    %v518 = vsub.f32 %v499, %v508
    %v519 = vsub.f32 %v501, %v508
    %v520 = vadd.f32 %v517, 1e-05
    %v521 = vrsqrt.pop %v520
    %v522 = vmul.f32 %v518, %v521
    %v523 = vmul.f32 %v519, %v521
    %v524 = vmax.f32 %v522, 0.0
    %v525 = vmax.f32 %v523, 0.0
    %v526 = vadd.f32 %v524, %v302
    %v527 = vadd.f32 %v525, %v303
    %528 = vrot.lane.b32.xlu0 %v526, 1
    %v529 = vpop.permute.xlu0 %528
    %530 = vrot.lane.b32.xlu0 %v527, 1
    %v531 = vpop.permute.xlu0 %530
    %v532 = vsel %vm310, %v529, %v531
    %v533 = vsel %vm310, %v531, %v529
    %v534 = vmul.f32 %v533, %v317
    %v535 = vmul.f32 %v532, %v321
    %536 = vrot.lane.b32.xlu0 %v526, 127
    %v537 = vpop.permute.xlu0 %536
    %538 = vrot.lane.b32.xlu0 %v527, 127
    %v539 = vpop.permute.xlu0 %538
    %v540 = vsel %vm330, %v537, %v539
    %v541 = vsel %vm330, %v539, %v537
    %v542 = vmul.f32 %v540, %v337
    %v543 = vmul.f32 %v541, %v341
    %v544 = vpack.c.bf16 %v526, %v534
    %v545 = vpack.c.bf16 %v527, %v535
    %v546 = vpack.c.bf16 %v542, %v542
    %v547 = vpack.c.bf16 %v543, %v543
    %549 = vset.pattern.permute.xlu0 0
    %550 = vperm.xlu0 %549, %v93
    %v551 = vpop.permute.xlu0 %550
    %v554 = vsel %vm355, %v92, 0
    %v557 = vsel %vm359, %v546, 0
    %v560 = vsel %vm359, %v547, 0
    %562 = vmatprep.subr.bf16.mxu0 %v545
    %563 = vmatpush1.bf16.msra.mxu0 %v544
    %564 = vmatprep.subr.bf16.mxu0 %v560
    %565 = vmatpush1.bf16.msra.mxu0 %v557
    %566 = vmatprep.subr.bf16.mxu0 0
    %567 = vmatpush1.bf16.msra.mxu0 0
    %568 = vmatprep.subr.bf16.mxu0 0
    %569 = vmatpush1.bf16.msra.mxu0 0
    %570 = vmatprep.subr.bf16.mxu0 0
    %571 = vmatpush1.bf16.msra.mxu0 0
    %572 = vmatprep.subr.bf16.mxu0 0
    %573 = vmatpush1.bf16.msra.mxu0 0
    %574 = vmatprep.subr.bf16.mxu0 0
    %575 = vmatpush1.bf16.msra.mxu0 0
    %576 = vmatprep.subr.bf16.mxu0 0
    %577 = vmatpush1.bf16.msra.mxu0 0
    %578 = vmatprep.subr.bf16.mxu0 0
    %579 = vmatpush1.bf16.msra.mxu0 0
    %580 = vmatprep.subr.bf16.mxu0 0
    %581 = vmatpush1.bf16.msra.mxu0 0
    %582 = vmatprep.subr.bf16.mxu0 0
    %583 = vmatpush1.bf16.msra.mxu0 0
    %584 = vmatprep.subr.bf16.mxu0 0
    %585 = vmatpush1.bf16.msra.mxu0 0
    %586 = vmatprep.subr.bf16.mxu0 0
    %587 = vmatpush1.bf16.msra.mxu0 0
    %588 = vmatprep.subr.bf16.mxu0 0
    %589 = vmatpush1.bf16.msra.mxu0 0
    %590 = vmatprep.subr.bf16.mxu0 0
    %591 = vmatpush1.bf16.msra.mxu0 0
    %592 = vmatprep.subr.bf16.mxu0 0
    %593 = vmatpush1.bf16.msra.mxu0 0
    %594 = vmatprep.mubr.bf16.mxu0 0
    %595 = vmatmul.mubr.bf16.gmra.mrb[0].mxu0 %v554
    %v596 = vpop.f32.mrb[0].mxu0
    %v597 = vadd.f32 %v551, %v596
    %v598 = vpop.f32.mrb[0].mxu0
    %v599 = vadd.f32 %v551, %v598
    %v600 = vpop.f32.mrb[0].mxu0
    %v601 = vpop.f32.mrb[0].mxu0
    %602 = vdwg.mxu0
    %v603 = vadd.f32 %v597, %v599
    %604 = vadd.xlane.f32.xlu0 %v603
    %v605 = vpop.xlane.xlu0 %604
    %v606 = vmul.f32 %v605, %v231
    %v607 = vmul.f32 %v597, %v597
    %v608 = vmul.f32 %v599, %v599
    %v609 = vadd.f32 %v607, %v608
    %610 = vadd.xlane.f32.xlu0 %v609
    %v611 = vpop.xlane.xlu0 %610
    %v612 = vmul.f32 %v611, %v231
    %v613 = vmul.f32 %v606, %v606
    %v614 = vsub.f32 %v612, %v613
    %v615 = vmax.f32 %v614, 0.0
    %v616 = vsub.f32 %v597, %v606
    %v617 = vsub.f32 %v599, %v606
    %v618 = vadd.f32 %v615, 1e-05
    %v619 = vrsqrt.pop %v618
    %v620 = vmul.f32 %v616, %v619
    %v621 = vmul.f32 %v617, %v619
    %v622 = vmax.f32 %v620, 0.0
    %v623 = vmax.f32 %v621, 0.0
    %v624 = vpack.c.bf16 %v426, %v296
    %v625 = vpack.c.bf16 %v427, %v297
    %v626 = vpack.c.bf16 %v622, %v524
    %v627 = vpack.c.bf16 %v623, %v525
    %629 = vset.pattern.permute.xlu0 0
    %630 = vperm.xlu0 %629, %v98
    %v631 = vpop.permute.xlu0 %630
    %634 = vset.pattern.permute.xlu0 0
    %635 = vperm.xlu0 %634, %v99
    %v636 = vpop.permute.xlu0 %635
    %639 = vset.pattern.permute.xlu0 0
    %640 = vperm.xlu0 %639, %v100
    %v641 = vpop.permute.xlu0 %640
    %644 = vset.pattern.permute.xlu0 0
    %645 = vperm.xlu0 %644, %v101
    %v646 = vpop.permute.xlu0 %645
    %v652 = vunpack.c.l.b16 %v94
    %v653 = vunpack.c.l.b16 %v95
    %v654 = vunpack.c.l.b16 %v96
    %v655 = vunpack.c.l.b16 %v97
    %v656 = vpack.c.b16 %v653, %v652
    %v657 = vpack.c.b16 %v655, %v654
    %vm658 = vcmask 261120
    %v660 = vsel %vm658, %v656, 0
    %v663 = vsel %vm658, %v657, 0
    %665 = vmatprep.subr.bf16.mxu0 %v625
    %666 = vmatpush1.bf16.msra.mxu0 %v624
    %667 = vmatprep.subr.bf16.mxu0 %v627
    %668 = vmatpush1.bf16.msra.mxu0 %v626
    %669 = vmatprep.subr.bf16.mxu0 0
    %670 = vmatpush1.bf16.msra.mxu0 0
    %671 = vmatprep.subr.bf16.mxu0 0
    %672 = vmatpush1.bf16.msra.mxu0 0
    %673 = vmatprep.subr.bf16.mxu0 0
    %674 = vmatpush1.bf16.msra.mxu0 0
    %675 = vmatprep.subr.bf16.mxu0 0
    %676 = vmatpush1.bf16.msra.mxu0 0
    %677 = vmatprep.subr.bf16.mxu0 0
    %678 = vmatpush1.bf16.msra.mxu0 0
    %679 = vmatprep.subr.bf16.mxu0 0
    %680 = vmatpush1.bf16.msra.mxu0 0
    %681 = vmatprep.subr.bf16.mxu0 0
    %682 = vmatpush1.bf16.msra.mxu0 0
    %683 = vmatprep.subr.bf16.mxu0 0
    %684 = vmatpush1.bf16.msra.mxu0 0
    %685 = vmatprep.subr.bf16.mxu0 0
    %686 = vmatpush1.bf16.msra.mxu0 0
    %687 = vmatprep.subr.bf16.mxu0 0
    %688 = vmatpush1.bf16.msra.mxu0 0
    %689 = vmatprep.subr.bf16.mxu0 0
    %690 = vmatpush1.bf16.msra.mxu0 0
    %691 = vmatprep.subr.bf16.mxu0 0
    %692 = vmatpush1.bf16.msra.mxu0 0
    %693 = vmatprep.subr.bf16.mxu0 0
    %694 = vmatpush1.bf16.msra.mxu0 0
    %695 = vmatprep.subr.bf16.mxu0 0
    %696 = vmatpush1.bf16.msra.mxu0 0
    %697 = vmatprep.mubr.bf16.mxu0 0
    %698 = vmatmul.mubr.bf16.gmra.mrb[0].mxu0 %v660
    %v699 = vpop.f32.mrb[0].mxu0
    %v700 = vadd.f32 %v631, %v699
    %v701 = vpop.f32.mrb[0].mxu0
    %v702 = vadd.f32 %v631, %v701
    %v703 = vpop.f32.mrb[0].mxu0
    %v704 = vadd.f32 %v636, %v703
    %v705 = vpop.f32.mrb[0].mxu0
    %v706 = vadd.f32 %v636, %v705
    %707 = vmatprep.mubr.bf16.mxu0 0
    %708 = vmatmul.mubr.bf16.gmra.mrb[0].mxu0 %v663
    %v709 = vpop.f32.mrb[0].mxu0
    %v710 = vadd.f32 %v641, %v709
    %v711 = vpop.f32.mrb[0].mxu0
    %v712 = vadd.f32 %v641, %v711
    %v713 = vpop.f32.mrb[0].mxu0
    %v714 = vadd.f32 %v646, %v713
    %v715 = vpop.f32.mrb[0].mxu0
    %v716 = vadd.f32 %v646, %v715
    %717 = vdwg.mxu0
    %718 = vrot.lane.b32.xlu0 %v704, 16
    %v719 = vpop.permute.xlu0 %718
    %720 = vrot.lane.b32.xlu0 %v706, 16
    %v721 = vpop.permute.xlu0 %720
    %vm722 = vcmp.lt.s32.totalorder %v309, 16
    %v723 = vsel %vm722, %v719, %v721
    %v724 = vsel %vm722, %v721, %v719
    %v726 = vlaneseq
    %v727 = vshrl.u32 %v726, 7
    %v728 = vsub.s32 0, %v727
    %v729 = vrot.slane %v78, %v728
    %v730 = vlaneseq
    %v731 = vshrl.u32 %v730, 7
    %v732 = vsub.s32 1, %v731
    %v733 = vrot.slane %v78, %v732
    %v736 = vmul.f32 %v724, %v729
    %v737 = vmul.f32 %v723, %v733
    %738 = vrot.lane.b32.xlu0 %v704, 112
    %v739 = vpop.permute.xlu0 %738
    %740 = vrot.lane.b32.xlu0 %v706, 112
    %v741 = vpop.permute.xlu0 %740
    %vm742 = vcmp.lt.s32.totalorder %v309, 112
    %v743 = vsel %vm742, %v739, %v741
    %v744 = vsel %vm742, %v741, %v739
    %v746 = vlaneseq
    %v747 = vshrl.u32 %v746, 7
    %v748 = vsub.s32 0, %v747
    %v749 = vrot.slane %v79, %v748
    %v750 = vlaneseq
    %v751 = vshrl.u32 %v750, 7
    %v752 = vsub.s32 1, %v751
    %v753 = vrot.slane %v79, %v752
    %v756 = vmul.f32 %v743, %v749
    %v757 = vmul.f32 %v744, %v753
    %v758 = vpack.c.bf16 %v704, %v736
    %v759 = vpack.c.bf16 %v706, %v737
    %v760 = vpack.c.bf16 %v756, %v756
    %v761 = vpack.c.bf16 %v757, %v757
    %763 = vset.pattern.permute.xlu0 0
    %764 = vperm.xlu0 %763, %v103
    %v765 = vpop.permute.xlu0 %764
    %v768 = vsel %vm355, %v102, 0
    %v771 = vsel %vm359, %v760, 0
    %v774 = vsel %vm359, %v761, 0
    %776 = vmatprep.subr.bf16.mxu0 %v759
    %777 = vmatpush1.bf16.msra.mxu0 %v758
    %778 = vmatprep.subr.bf16.mxu0 %v774
    %779 = vmatpush1.bf16.msra.mxu0 %v771
    %780 = vmatprep.subr.bf16.mxu0 0
    %781 = vmatpush1.bf16.msra.mxu0 0
    %782 = vmatprep.subr.bf16.mxu0 0
    %783 = vmatpush1.bf16.msra.mxu0 0
    %784 = vmatprep.subr.bf16.mxu0 0
    %785 = vmatpush1.bf16.msra.mxu0 0
    %786 = vmatprep.subr.bf16.mxu0 0
    %787 = vmatpush1.bf16.msra.mxu0 0
    %788 = vmatprep.subr.bf16.mxu0 0
    %789 = vmatpush1.bf16.msra.mxu0 0
    %790 = vmatprep.subr.bf16.mxu0 0
    %791 = vmatpush1.bf16.msra.mxu0 0
    %792 = vmatprep.subr.bf16.mxu0 0
    %793 = vmatpush1.bf16.msra.mxu0 0
    %794 = vmatprep.subr.bf16.mxu0 0
    %795 = vmatpush1.bf16.msra.mxu0 0
    %796 = vmatprep.subr.bf16.mxu0 0
    %797 = vmatpush1.bf16.msra.mxu0 0
    %798 = vmatprep.subr.bf16.mxu0 0
    %799 = vmatpush1.bf16.msra.mxu0 0
    %800 = vmatprep.subr.bf16.mxu0 0
    %801 = vmatpush1.bf16.msra.mxu0 0
    %802 = vmatprep.subr.bf16.mxu0 0
    %803 = vmatpush1.bf16.msra.mxu0 0
    %804 = vmatprep.subr.bf16.mxu0 0
    %805 = vmatpush1.bf16.msra.mxu0 0
    %806 = vmatprep.subr.bf16.mxu0 0
    %807 = vmatpush1.bf16.msra.mxu0 0
    %808 = vmatprep.mubr.bf16.mxu0 0
    %809 = vmatmul.mubr.bf16.gmra.mrb[0].mxu0 %v768
    %v810 = vpop.f32.mrb[0].mxu0
    %v811 = vadd.f32 %v765, %v810
    %v812 = vpop.f32.mrb[0].mxu0
    %v813 = vadd.f32 %v765, %v812
    %v814 = vpop.f32.mrb[0].mxu0
    %v815 = vpop.f32.mrb[0].mxu0
    %816 = vdwg.mxu0
    %v817 = vadd.f32 %v811, %v813
    %818 = vadd.xlane.f32.xlu0 %v817
    %v819 = vpop.xlane.xlu0 %818
    %v820 = vmul.f32 %v819, %v231
    %v821 = vmul.f32 %v811, %v811
    %v822 = vmul.f32 %v813, %v813
    %v823 = vadd.f32 %v821, %v822
    %824 = vadd.xlane.f32.xlu0 %v823
    %v825 = vpop.xlane.xlu0 %824
    %v826 = vmul.f32 %v825, %v231
    %v827 = vmul.f32 %v820, %v820
    %v828 = vsub.f32 %v826, %v827
    %v829 = vmax.f32 %v828, 0.0
    %v830 = vsub.f32 %v811, %v820
    %v831 = vsub.f32 %v813, %v820
    %v832 = vadd.f32 %v829, 1e-05
    %v833 = vrsqrt.pop %v832
    %v834 = vmul.f32 %v830, %v833
    %v835 = vmul.f32 %v831, %v833
    %v836 = vmax.f32 %v834, 0.0
    %v837 = vmax.f32 %v835, 0.0
    %v838 = vadd.f32 %v836, %v710
    %v839 = vadd.f32 %v837, %v712
    %840 = vrot.lane.b32.xlu0 %v838, 16
    %v841 = vpop.permute.xlu0 %840
    %842 = vrot.lane.b32.xlu0 %v839, 16
    %v843 = vpop.permute.xlu0 %842
    %v844 = vsel %vm722, %v841, %v843
    %v845 = vsel %vm722, %v843, %v841
    %v846 = vmul.f32 %v845, %v729
    %v847 = vmul.f32 %v844, %v733
    %848 = vrot.lane.b32.xlu0 %v838, 112
    %v849 = vpop.permute.xlu0 %848
    %850 = vrot.lane.b32.xlu0 %v839, 112
    %v851 = vpop.permute.xlu0 %850
    %v852 = vsel %vm742, %v849, %v851
    %v853 = vsel %vm742, %v851, %v849
    %v854 = vmul.f32 %v852, %v749
    %v855 = vmul.f32 %v853, %v753
    %v856 = vpack.c.bf16 %v838, %v846
    %v857 = vpack.c.bf16 %v839, %v847
    %v858 = vpack.c.bf16 %v854, %v854
    %v859 = vpack.c.bf16 %v855, %v855
    %861 = vset.pattern.permute.xlu0 0
    %862 = vperm.xlu0 %861, %v105
    %v863 = vpop.permute.xlu0 %862
    %v866 = vsel %vm355, %v104, 0
    %v869 = vsel %vm359, %v858, 0
    %v872 = vsel %vm359, %v859, 0
    %874 = vmatprep.subr.bf16.mxu0 %v857
    %875 = vmatpush1.bf16.msra.mxu0 %v856
    %876 = vmatprep.subr.bf16.mxu0 %v872
    %877 = vmatpush1.bf16.msra.mxu0 %v869
    %878 = vmatprep.subr.bf16.mxu0 0
    %879 = vmatpush1.bf16.msra.mxu0 0
    %880 = vmatprep.subr.bf16.mxu0 0
    %881 = vmatpush1.bf16.msra.mxu0 0
    %882 = vmatprep.subr.bf16.mxu0 0
    %883 = vmatpush1.bf16.msra.mxu0 0
    %884 = vmatprep.subr.bf16.mxu0 0
    %885 = vmatpush1.bf16.msra.mxu0 0
    %886 = vmatprep.subr.bf16.mxu0 0
    %887 = vmatpush1.bf16.msra.mxu0 0
    %888 = vmatprep.subr.bf16.mxu0 0
    %889 = vmatpush1.bf16.msra.mxu0 0
    %890 = vmatprep.subr.bf16.mxu0 0
    %891 = vmatpush1.bf16.msra.mxu0 0
    %892 = vmatprep.subr.bf16.mxu0 0
    %893 = vmatpush1.bf16.msra.mxu0 0
    %894 = vmatprep.subr.bf16.mxu0 0
    %895 = vmatpush1.bf16.msra.mxu0 0
    %896 = vmatprep.subr.bf16.mxu0 0
    %897 = vmatpush1.bf16.msra.mxu0 0
    %898 = vmatprep.subr.bf16.mxu0 0
    %899 = vmatpush1.bf16.msra.mxu0 0
    %900 = vmatprep.subr.bf16.mxu0 0
    %901 = vmatpush1.bf16.msra.mxu0 0
    %902 = vmatprep.subr.bf16.mxu0 0
    %903 = vmatpush1.bf16.msra.mxu0 0
    %904 = vmatprep.subr.bf16.mxu0 0
    %905 = vmatpush1.bf16.msra.mxu0 0
    %906 = vmatprep.mubr.bf16.mxu0 0
    %907 = vmatmul.mubr.bf16.gmra.mrb[0].mxu0 %v866
    %v908 = vpop.f32.mrb[0].mxu0
    %v909 = vadd.f32 %v863, %v908
    %v910 = vpop.f32.mrb[0].mxu0
    %v911 = vadd.f32 %v863, %v910
    %v912 = vpop.f32.mrb[0].mxu0
    %v913 = vpop.f32.mrb[0].mxu0
    %914 = vdwg.mxu0
    %v915 = vadd.f32 %v909, %v911
    %916 = vadd.xlane.f32.xlu0 %v915
    %v917 = vpop.xlane.xlu0 %916
    %v918 = vmul.f32 %v917, %v231
    %v919 = vmul.f32 %v909, %v909
    %v920 = vmul.f32 %v911, %v911
    %v921 = vadd.f32 %v919, %v920
    %922 = vadd.xlane.f32.xlu0 %v921
    %v923 = vpop.xlane.xlu0 %922
    %v924 = vmul.f32 %v923, %v231
    %v925 = vmul.f32 %v918, %v918
    %v926 = vsub.f32 %v924, %v925
    %v927 = vmax.f32 %v926, 0.0
    %v928 = vsub.f32 %v909, %v918
    %v929 = vsub.f32 %v911, %v918
    %v930 = vadd.f32 %v927, 1e-05
    %v931 = vrsqrt.pop %v930
    %v932 = vmul.f32 %v928, %v931
    %v933 = vmul.f32 %v929, %v931
    %v934 = vmax.f32 %v932, 0.0
    %v935 = vmax.f32 %v933, 0.0
    %v936 = vadd.f32 %v934, %v714
    %v937 = vadd.f32 %v935, %v716
    %938 = vrot.lane.b32.xlu0 %v936, 16
    %v939 = vpop.permute.xlu0 %938
    %940 = vrot.lane.b32.xlu0 %v937, 16
    %v941 = vpop.permute.xlu0 %940
    %v942 = vsel %vm722, %v939, %v941
    %v943 = vsel %vm722, %v941, %v939
    %v944 = vmul.f32 %v943, %v729
    %v945 = vmul.f32 %v942, %v733
    %946 = vrot.lane.b32.xlu0 %v936, 112
    %v947 = vpop.permute.xlu0 %946
    %948 = vrot.lane.b32.xlu0 %v937, 112
    %v949 = vpop.permute.xlu0 %948
    %v950 = vsel %vm742, %v947, %v949
    %v951 = vsel %vm742, %v949, %v947
    %v952 = vmul.f32 %v950, %v749
    %v953 = vmul.f32 %v951, %v753
    %v954 = vpack.c.bf16 %v936, %v944
    %v955 = vpack.c.bf16 %v937, %v945
    %v956 = vpack.c.bf16 %v952, %v952
    %v957 = vpack.c.bf16 %v953, %v953
    %959 = vset.pattern.permute.xlu0 0
    %960 = vperm.xlu0 %959, %v107
    %v961 = vpop.permute.xlu0 %960
    %v964 = vsel %vm355, %v106, 0
    %v967 = vsel %vm359, %v956, 0
    %v970 = vsel %vm359, %v957, 0
    %972 = vmatprep.subr.bf16.mxu0 %v955
    %973 = vmatpush1.bf16.msra.mxu0 %v954
    %974 = vmatprep.subr.bf16.mxu0 %v970
    %975 = vmatpush1.bf16.msra.mxu0 %v967
    %976 = vmatprep.subr.bf16.mxu0 0
    %977 = vmatpush1.bf16.msra.mxu0 0
    %978 = vmatprep.subr.bf16.mxu0 0
    %979 = vmatpush1.bf16.msra.mxu0 0
    %980 = vmatprep.subr.bf16.mxu0 0
    %981 = vmatpush1.bf16.msra.mxu0 0
    %982 = vmatprep.subr.bf16.mxu0 0
    %983 = vmatpush1.bf16.msra.mxu0 0
    %984 = vmatprep.subr.bf16.mxu0 0
    %985 = vmatpush1.bf16.msra.mxu0 0
    %986 = vmatprep.subr.bf16.mxu0 0
    %987 = vmatpush1.bf16.msra.mxu0 0
    %988 = vmatprep.subr.bf16.mxu0 0
    %989 = vmatpush1.bf16.msra.mxu0 0
    %990 = vmatprep.subr.bf16.mxu0 0
    %991 = vmatpush1.bf16.msra.mxu0 0
    %992 = vmatprep.subr.bf16.mxu0 0
    %993 = vmatpush1.bf16.msra.mxu0 0
    %994 = vmatprep.subr.bf16.mxu0 0
    %995 = vmatpush1.bf16.msra.mxu0 0
    %996 = vmatprep.subr.bf16.mxu0 0
    %997 = vmatpush1.bf16.msra.mxu0 0
    %998 = vmatprep.subr.bf16.mxu0 0
    %999 = vmatpush1.bf16.msra.mxu0 0
    %1000 = vmatprep.subr.bf16.mxu0 0
    %1001 = vmatpush1.bf16.msra.mxu0 0
    %1002 = vmatprep.subr.bf16.mxu0 0
    %1003 = vmatpush1.bf16.msra.mxu0 0
    %1004 = vmatprep.mubr.bf16.mxu0 0
    %1005 = vmatmul.mubr.bf16.gmra.mrb[0].mxu0 %v964
    %v1006 = vpop.f32.mrb[0].mxu0
    %v1007 = vadd.f32 %v961, %v1006
    %v1008 = vpop.f32.mrb[0].mxu0
    %v1009 = vadd.f32 %v961, %v1008
    %v1010 = vpop.f32.mrb[0].mxu0
    %v1011 = vpop.f32.mrb[0].mxu0
    %1012 = vdwg.mxu0
    %v1013 = vadd.f32 %v1007, %v1009
    %1014 = vadd.xlane.f32.xlu0 %v1013
    %v1015 = vpop.xlane.xlu0 %1014
    %v1016 = vmul.f32 %v1015, %v231
    %v1017 = vmul.f32 %v1007, %v1007
    %v1018 = vmul.f32 %v1009, %v1009
    %v1019 = vadd.f32 %v1017, %v1018
    %1020 = vadd.xlane.f32.xlu0 %v1019
    %v1021 = vpop.xlane.xlu0 %1020
    %v1022 = vmul.f32 %v1021, %v231
    %v1023 = vmul.f32 %v1016, %v1016
    %v1024 = vsub.f32 %v1022, %v1023
    %v1025 = vmax.f32 %v1024, 0.0
    %v1026 = vsub.f32 %v1007, %v1016
    %v1027 = vsub.f32 %v1009, %v1016
    %v1028 = vadd.f32 %v1025, 1e-05
    %v1029 = vrsqrt.pop %v1028
    %v1030 = vmul.f32 %v1026, %v1029
    %v1031 = vmul.f32 %v1027, %v1029
    %v1032 = vmax.f32 %v1030, 0.0
    %v1033 = vmax.f32 %v1031, 0.0
    %v1034 = vpack.c.bf16 %v836, %v700
    %v1035 = vpack.c.bf16 %v837, %v702
    %v1036 = vpack.c.bf16 %v1032, %v934
    %v1037 = vpack.c.bf16 %v1033, %v935
    %1039 = vset.pattern.permute.xlu0 0
    %1040 = vperm.xlu0 %1039, %v112
    %v1041 = vpop.permute.xlu0 %1040
    %1044 = vset.pattern.permute.xlu0 0
    %1045 = vperm.xlu0 %1044, %v113
    %v1046 = vpop.permute.xlu0 %1045
    %1049 = vset.pattern.permute.xlu0 0
    %1050 = vperm.xlu0 %1049, %v114
    %v1051 = vpop.permute.xlu0 %1050
    %1054 = vset.pattern.permute.xlu0 0
    %1055 = vperm.xlu0 %1054, %v115
    %v1056 = vpop.permute.xlu0 %1055
    %v1062 = vunpack.c.l.b16 %v108
    %v1063 = vunpack.c.l.b16 %v109
    %v1064 = vunpack.c.l.b16 %v110
    %v1065 = vunpack.c.l.b16 %v111
    %v1066 = vpack.c.b16 %v1063, %v1062
    %v1067 = vpack.c.b16 %v1065, %v1064
    %vm1068 = vcmask 293888
    %v1070 = vsel %vm1068, %v1066, 0
    %v1073 = vsel %vm1068, %v1067, 0
    %1075 = vmatprep.subr.bf16.mxu0 %v1035
    %1076 = vmatpush1.bf16.msra.mxu0 %v1034
    %1077 = vmatprep.subr.bf16.mxu0 %v1037
    %1078 = vmatpush1.bf16.msra.mxu0 %v1036
    %1079 = vmatprep.subr.bf16.mxu0 %v164
    %1080 = vmatpush1.bf16.msra.mxu0 %v161
    %1081 = vmatprep.subr.bf16.mxu0 0
    %1082 = vmatpush1.bf16.msra.mxu0 0
    %1083 = vmatprep.subr.bf16.mxu0 0
    %1084 = vmatpush1.bf16.msra.mxu0 0
    %1085 = vmatprep.subr.bf16.mxu0 0
    %1086 = vmatpush1.bf16.msra.mxu0 0
    %1087 = vmatprep.subr.bf16.mxu0 0
    %1088 = vmatpush1.bf16.msra.mxu0 0
    %1089 = vmatprep.subr.bf16.mxu0 0
    %1090 = vmatpush1.bf16.msra.mxu0 0
    %1091 = vmatprep.subr.bf16.mxu0 0
    %1092 = vmatpush1.bf16.msra.mxu0 0
    %1093 = vmatprep.subr.bf16.mxu0 0
    %1094 = vmatpush1.bf16.msra.mxu0 0
    %1095 = vmatprep.subr.bf16.mxu0 0
    %1096 = vmatpush1.bf16.msra.mxu0 0
    %1097 = vmatprep.subr.bf16.mxu0 0
    %1098 = vmatpush1.bf16.msra.mxu0 0
    %1099 = vmatprep.subr.bf16.mxu0 0
    %1100 = vmatpush1.bf16.msra.mxu0 0
    %1101 = vmatprep.subr.bf16.mxu0 0
    %1102 = vmatpush1.bf16.msra.mxu0 0
    %1103 = vmatprep.subr.bf16.mxu0 0
    %1104 = vmatpush1.bf16.msra.mxu0 0
    %1105 = vmatprep.subr.bf16.mxu0 0
    %1106 = vmatpush1.bf16.msra.mxu0 0
    %1107 = vmatprep.mubr.bf16.mxu0 0
    %1108 = vmatmul.mubr.bf16.gmra.mrb[0].mxu0 %v1070
    %v1109 = vpop.f32.mrb[0].mxu0
    %v1110 = vadd.f32 %v1041, %v1109
    %v1111 = vpop.f32.mrb[0].mxu0
    %v1112 = vadd.f32 %v1041, %v1111
    %v1113 = vpop.f32.mrb[0].mxu0
    %v1114 = vadd.f32 %v1046, %v1113
    %v1115 = vpop.f32.mrb[0].mxu0
    %v1116 = vadd.f32 %v1046, %v1115
    %1117 = vmatprep.mubr.bf16.mxu0 0
    %1118 = vmatmul.mubr.bf16.gmra.mrb[0].mxu0 %v1073
    %v1119 = vpop.f32.mrb[0].mxu0
    %v1120 = vadd.f32 %v1051, %v1119
    %v1121 = vpop.f32.mrb[0].mxu0
    %v1122 = vadd.f32 %v1051, %v1121
    %v1123 = vpop.f32.mrb[0].mxu0
    %v1124 = vadd.f32 %v1056, %v1123
    %v1125 = vpop.f32.mrb[0].mxu0
    %v1126 = vadd.f32 %v1056, %v1125
    %1127 = vdwg.mxu0
    %v1128 = vadd.f32 %v1110, %v700
    %v1129 = vadd.f32 %v1112, %v702
    %v1130 = vadd.f32 %v1114, %v704
    %v1131 = vadd.f32 %v1116, %v706
    %v1132 = vadd.f32 %v1120, %v710
    %v1133 = vadd.f32 %v1122, %v712
    %v1134 = vadd.f32 %v1124, %v714
    %v1135 = vadd.f32 %v1126, %v716
    %v1136 = vmax.f32 %v1128, 0.0
    %v1137 = vmax.f32 %v1129, 0.0
    %v1138 = vmax.f32 %v1130, 0.0
    %v1139 = vmax.f32 %v1131, 0.0
    %v1140 = vmax.f32 %v1132, 0.0
    %v1141 = vmax.f32 %v1133, 0.0
    %v1142 = vmax.f32 %v1134, 0.0
    %v1143 = vmax.f32 %v1135, 0.0
    %1144 = vst [vmem:[#allocation2] sm:$0xff] %v1136
    %1145 = vst [vmem:[#allocation2 + $0x8] sm:$0xff] %v1137
    %1146 = vst [vmem:[#allocation2 + $0x10] sm:$0xff] %v1138
    %1147 = vst [vmem:[#allocation2 + $0x18] sm:$0xff] %v1139
    %1148 = vst [vmem:[#allocation2 + $0x20] sm:$0xff] %v1140
    %1149 = vst [vmem:[#allocation2 + $0x28] sm:$0xff] %v1141
    %1150 = vst [vmem:[#allocation2 + $0x30] sm:$0xff] %v1142
    %1151 = vst [vmem:[#allocation2 + $0x38] sm:$0xff] %v1143
    %s1152 = scalar_lea.vmem %s0, 8
    %v1153 = vld [vmem:[%s1152] sm:$0xff]
    %v1155 = vcombine.high %v1153, %v1153
    %v1157 = vpack.c.bf16 %v1153, %v1153
    %v1158 = vpack.c.bf16 %v1155, %v1155
    %v1160 = vsel %vm159, %v1157, 0
    %v1163 = vsel %vm159, %v1158, 0
    %1165 = vmatprep.subr.bf16.mxu0 %v1163
    %1166 = vmatpush1.bf16.msra.mxu0 %v1160
    %1167 = vmatprep.subr.bf16.mxu0 0
    %1168 = vmatpush1.bf16.msra.mxu0 0
    %1169 = vmatprep.subr.bf16.mxu0 0
    %1170 = vmatpush1.bf16.msra.mxu0 0
    %1171 = vmatprep.subr.bf16.mxu0 0
    %1172 = vmatpush1.bf16.msra.mxu0 0
    %1173 = vmatprep.subr.bf16.mxu0 0
    %1174 = vmatpush1.bf16.msra.mxu0 0
    %1175 = vmatprep.subr.bf16.mxu0 0
    %1176 = vmatpush1.bf16.msra.mxu0 0
    %1177 = vmatprep.subr.bf16.mxu0 0
    %1178 = vmatpush1.bf16.msra.mxu0 0
    %1179 = vmatprep.subr.bf16.mxu0 0
    %1180 = vmatpush1.bf16.msra.mxu0 0
    %1181 = vmatprep.subr.bf16.mxu0 0
    %1182 = vmatpush1.bf16.msra.mxu0 0
    %1183 = vmatprep.subr.bf16.mxu0 0
    %1184 = vmatpush1.bf16.msra.mxu0 0
    %1185 = vmatprep.subr.bf16.mxu0 0
    %1186 = vmatpush1.bf16.msra.mxu0 0
    %1187 = vmatprep.subr.bf16.mxu0 0
    %1188 = vmatpush1.bf16.msra.mxu0 0
    %1189 = vmatprep.subr.bf16.mxu0 0
    %1190 = vmatpush1.bf16.msra.mxu0 0
    %1191 = vmatprep.subr.bf16.mxu0 0
    %1192 = vmatpush1.bf16.msra.mxu0 0
    %1193 = vmatprep.subr.bf16.mxu0 0
    %1194 = vmatpush1.bf16.msra.mxu0 0
    %1195 = vmatprep.subr.bf16.mxu0 0
    %1196 = vmatpush1.bf16.msra.mxu0 0
    %1197 = vmatprep.mubr.bf16.mxu0 0
    %1198 = vmatmul.mubr.bf16.gmra.mrb[0].mxu0 %v154
    %v1199 = vpop.f32.mrb[0].mxu0
    %v1200 = vadd.f32 %v125, %v1199
    %v1201 = vpop.f32.mrb[0].mxu0
    %v1202 = vadd.f32 %v125, %v1201
    %v1203 = vpop.f32.mrb[0].mxu0
    %v1204 = vadd.f32 %v130, %v1203
    %v1205 = vpop.f32.mrb[0].mxu0
    %v1206 = vadd.f32 %v130, %v1205
    %1207 = vmatprep.mubr.bf16.mxu0 0
    %1208 = vmatmul.mubr.bf16.gmra.mrb[0].mxu0 %v157
    %v1209 = vpop.f32.mrb[0].mxu0
    %v1210 = vadd.f32 %v135, %v1209
    %v1211 = vpop.f32.mrb[0].mxu0
    %v1212 = vadd.f32 %v135, %v1211
    %v1213 = vpop.f32.mrb[0].mxu0
    %v1214 = vadd.f32 %v140, %v1213
    %v1215 = vpop.f32.mrb[0].mxu0
    %v1216 = vadd.f32 %v140, %v1215
    %1217 = vdwg.mxu0
    %v1218 = vadd.f32 %v1200, %v1202
    %1219 = vadd.xlane.f32.xlu0 %v1218
    %v1220 = vpop.xlane.xlu0 %1219
    %v1221 = vadd.f32 %v1204, %v1206
    %1222 = vadd.xlane.f32.xlu0 %v1221
    %v1223 = vpop.xlane.xlu0 %1222
    %v1224 = vadd.f32 %v1210, %v1212
    %1225 = vadd.xlane.f32.xlu0 %v1224
    %v1226 = vpop.xlane.xlu0 %1225
    %v1227 = vadd.f32 %v1214, %v1216
    %1228 = vadd.xlane.f32.xlu0 %v1227
    %v1229 = vpop.xlane.xlu0 %1228
    %v1230 = vmul.f32 %v1220, %v231
    %v1231 = vmul.f32 %v1223, %v231
    %v1232 = vmul.f32 %v1226, %v231
    %v1233 = vmul.f32 %v1229, %v231
    %v1234 = vmul.f32 %v1200, %v1200
    %v1235 = vmul.f32 %v1202, %v1202
    %v1236 = vmul.f32 %v1204, %v1204
    %v1237 = vmul.f32 %v1206, %v1206
    %v1238 = vmul.f32 %v1210, %v1210
    %v1239 = vmul.f32 %v1212, %v1212
    %v1240 = vmul.f32 %v1214, %v1214
    %v1241 = vmul.f32 %v1216, %v1216
    %v1242 = vadd.f32 %v1234, %v1235
    %1243 = vadd.xlane.f32.xlu0 %v1242
    %v1244 = vpop.xlane.xlu0 %1243
    %v1245 = vadd.f32 %v1236, %v1237
    %1246 = vadd.xlane.f32.xlu0 %v1245
    %v1247 = vpop.xlane.xlu0 %1246
    %v1248 = vadd.f32 %v1238, %v1239
    %1249 = vadd.xlane.f32.xlu0 %v1248
    %v1250 = vpop.xlane.xlu0 %1249
    %v1251 = vadd.f32 %v1240, %v1241
    %1252 = vadd.xlane.f32.xlu0 %v1251
    %v1253 = vpop.xlane.xlu0 %1252
    %v1254 = vmul.f32 %v1244, %v231
    %v1255 = vmul.f32 %v1247, %v231
    %v1256 = vmul.f32 %v1250, %v231
    %v1257 = vmul.f32 %v1253, %v231
    %v1258 = vmul.f32 %v1230, %v1230
    %v1259 = vmul.f32 %v1231, %v1231
    %v1260 = vmul.f32 %v1232, %v1232
    %v1261 = vmul.f32 %v1233, %v1233
    %v1262 = vsub.f32 %v1254, %v1258
    %v1263 = vsub.f32 %v1255, %v1259
    %v1264 = vsub.f32 %v1256, %v1260
    %v1265 = vsub.f32 %v1257, %v1261
    %v1266 = vmax.f32 %v1262, 0.0
    %v1267 = vmax.f32 %v1263, 0.0
    %v1268 = vmax.f32 %v1264, 0.0
    %v1269 = vmax.f32 %v1265, 0.0
    %v1270 = vsub.f32 %v1200, %v1230
    %v1271 = vsub.f32 %v1202, %v1230
    %v1272 = vsub.f32 %v1204, %v1231
    %v1273 = vsub.f32 %v1206, %v1231
    %v1274 = vsub.f32 %v1210, %v1232
    %v1275 = vsub.f32 %v1212, %v1232
    %v1276 = vsub.f32 %v1214, %v1233
    %v1277 = vsub.f32 %v1216, %v1233
    %v1278 = vadd.f32 %v1266, 1e-05
    %v1279 = vadd.f32 %v1267, 1e-05
    %v1280 = vadd.f32 %v1268, 1e-05
    %v1281 = vadd.f32 %v1269, 1e-05
    %v1282 = vrsqrt.pop %v1278
    %v1283 = vrsqrt.pop %v1279
    %v1284 = vrsqrt.pop %v1280
    %v1285 = vrsqrt.pop %v1281
    %v1286 = vmul.f32 %v1270, %v1282
    %v1287 = vmul.f32 %v1271, %v1282
    %v1288 = vmul.f32 %v1272, %v1283
    %v1289 = vmul.f32 %v1273, %v1283
    %v1290 = vmul.f32 %v1274, %v1284
    %v1291 = vmul.f32 %v1275, %v1284
    %v1292 = vmul.f32 %v1276, %v1285
    %v1293 = vmul.f32 %v1277, %v1285
    %v1294 = vmax.f32 %v1286, 0.0
    %v1295 = vmax.f32 %v1287, 0.0
    %v1296 = vmax.f32 %v1288, 0.0
    %v1297 = vmax.f32 %v1289, 0.0
    %v1298 = vmax.f32 %v1290, 0.0
    %v1299 = vmax.f32 %v1291, 0.0
    %v1300 = vmax.f32 %v1292, 0.0
    %v1301 = vmax.f32 %v1293, 0.0
    %1302 = vrot.lane.b32.xlu0 %v1296, 1
    %v1303 = vpop.permute.xlu0 %1302
    %1304 = vrot.lane.b32.xlu0 %v1297, 1
    %v1305 = vpop.permute.xlu0 %1304
    %v1306 = vsel %vm310, %v1303, %v1305
    %v1307 = vsel %vm310, %v1305, %v1303
    %v1308 = vmul.f32 %v1307, %v317
    %v1309 = vmul.f32 %v1306, %v321
    %1310 = vrot.lane.b32.xlu0 %v1296, 127
    %v1311 = vpop.permute.xlu0 %1310
    %1312 = vrot.lane.b32.xlu0 %v1297, 127
    %v1313 = vpop.permute.xlu0 %1312
    %v1314 = vsel %vm330, %v1311, %v1313
    %v1315 = vsel %vm330, %v1313, %v1311
    %v1316 = vmul.f32 %v1314, %v337
    %v1317 = vmul.f32 %v1315, %v341
    %v1318 = vpack.c.bf16 %v1296, %v1308
    %v1319 = vpack.c.bf16 %v1297, %v1309
    %v1320 = vpack.c.bf16 %v1316, %v1316
    %v1321 = vpack.c.bf16 %v1317, %v1317
    %v1323 = vsel %vm359, %v1320, 0
    %v1326 = vsel %vm359, %v1321, 0
    %1328 = vmatprep.subr.bf16.mxu0 %v1319
    %1329 = vmatpush1.bf16.msra.mxu0 %v1318
    %1330 = vmatprep.subr.bf16.mxu0 %v1326
    %1331 = vmatpush1.bf16.msra.mxu0 %v1323
    %1332 = vmatprep.subr.bf16.mxu0 0
    %1333 = vmatpush1.bf16.msra.mxu0 0
    %1334 = vmatprep.subr.bf16.mxu0 0
    %1335 = vmatpush1.bf16.msra.mxu0 0
    %1336 = vmatprep.subr.bf16.mxu0 0
    %1337 = vmatpush1.bf16.msra.mxu0 0
    %1338 = vmatprep.subr.bf16.mxu0 0
    %1339 = vmatpush1.bf16.msra.mxu0 0
    %1340 = vmatprep.subr.bf16.mxu0 0
    %1341 = vmatpush1.bf16.msra.mxu0 0
    %1342 = vmatprep.subr.bf16.mxu0 0
    %1343 = vmatpush1.bf16.msra.mxu0 0
    %1344 = vmatprep.subr.bf16.mxu0 0
    %1345 = vmatpush1.bf16.msra.mxu0 0
    %1346 = vmatprep.subr.bf16.mxu0 0
    %1347 = vmatpush1.bf16.msra.mxu0 0
    %1348 = vmatprep.subr.bf16.mxu0 0
    %1349 = vmatpush1.bf16.msra.mxu0 0
    %1350 = vmatprep.subr.bf16.mxu0 0
    %1351 = vmatpush1.bf16.msra.mxu0 0
    %1352 = vmatprep.subr.bf16.mxu0 0
    %1353 = vmatpush1.bf16.msra.mxu0 0
    %1354 = vmatprep.subr.bf16.mxu0 0
    %1355 = vmatpush1.bf16.msra.mxu0 0
    %1356 = vmatprep.subr.bf16.mxu0 0
    %1357 = vmatpush1.bf16.msra.mxu0 0
    %1358 = vmatprep.subr.bf16.mxu0 0
    %1359 = vmatpush1.bf16.msra.mxu0 0
    %1360 = vmatprep.mubr.bf16.mxu0 0
    %1361 = vmatmul.mubr.bf16.gmra.mrb[0].mxu0 %v357
    %v1362 = vpop.f32.mrb[0].mxu0
    %v1363 = vadd.f32 %v353, %v1362
    %v1364 = vpop.f32.mrb[0].mxu0
    %v1365 = vadd.f32 %v353, %v1364
    %v1366 = vpop.f32.mrb[0].mxu0
    %v1367 = vpop.f32.mrb[0].mxu0
    %1368 = vdwg.mxu0
    %v1369 = vadd.f32 %v1363, %v1365
    %1370 = vadd.xlane.f32.xlu0 %v1369
    %v1371 = vpop.xlane.xlu0 %1370
    %v1372 = vmul.f32 %v1371, %v231
    %v1373 = vmul.f32 %v1363, %v1363
    %v1374 = vmul.f32 %v1365, %v1365
    %v1375 = vadd.f32 %v1373, %v1374
    %1376 = vadd.xlane.f32.xlu0 %v1375
    %v1377 = vpop.xlane.xlu0 %1376
    %v1378 = vmul.f32 %v1377, %v231
    %v1379 = vmul.f32 %v1372, %v1372
    %v1380 = vsub.f32 %v1378, %v1379
    %v1381 = vmax.f32 %v1380, 0.0
    %v1382 = vsub.f32 %v1363, %v1372
    %v1383 = vsub.f32 %v1365, %v1372
    %v1384 = vadd.f32 %v1381, 1e-05
    %v1385 = vrsqrt.pop %v1384
    %v1386 = vmul.f32 %v1382, %v1385
    %v1387 = vmul.f32 %v1383, %v1385
    %v1388 = vmax.f32 %v1386, 0.0
    %v1389 = vmax.f32 %v1387, 0.0
    %v1390 = vadd.f32 %v1298, %v1388
    %v1391 = vadd.f32 %v1299, %v1389
    %1392 = vrot.lane.b32.xlu0 %v1390, 1
    %v1393 = vpop.permute.xlu0 %1392
    %1394 = vrot.lane.b32.xlu0 %v1391, 1
    %v1395 = vpop.permute.xlu0 %1394
    %v1396 = vsel %vm310, %v1393, %v1395
    %v1397 = vsel %vm310, %v1395, %v1393
    %v1398 = vmul.f32 %v1397, %v317
    %v1399 = vmul.f32 %v1396, %v321
    %1400 = vrot.lane.b32.xlu0 %v1390, 127
    %v1401 = vpop.permute.xlu0 %1400
    %1402 = vrot.lane.b32.xlu0 %v1391, 127
    %v1403 = vpop.permute.xlu0 %1402
    %v1404 = vsel %vm330, %v1401, %v1403
    %v1405 = vsel %vm330, %v1403, %v1401
    %v1406 = vmul.f32 %v1404, %v337
    %v1407 = vmul.f32 %v1405, %v341
    %v1408 = vpack.c.bf16 %v1390, %v1398
    %v1409 = vpack.c.bf16 %v1391, %v1399
    %v1410 = vpack.c.bf16 %v1406, %v1406
    %v1411 = vpack.c.bf16 %v1407, %v1407
    %v1413 = vsel %vm359, %v1410, 0
    %v1416 = vsel %vm359, %v1411, 0
    %1418 = vmatprep.subr.bf16.mxu0 %v1409
    %1419 = vmatpush1.bf16.msra.mxu0 %v1408
    %1420 = vmatprep.subr.bf16.mxu0 %v1416
    %1421 = vmatpush1.bf16.msra.mxu0 %v1413
    %1422 = vmatprep.subr.bf16.mxu0 0
    %1423 = vmatpush1.bf16.msra.mxu0 0
    %1424 = vmatprep.subr.bf16.mxu0 0
    %1425 = vmatpush1.bf16.msra.mxu0 0
    %1426 = vmatprep.subr.bf16.mxu0 0
    %1427 = vmatpush1.bf16.msra.mxu0 0
    %1428 = vmatprep.subr.bf16.mxu0 0
    %1429 = vmatpush1.bf16.msra.mxu0 0
    %1430 = vmatprep.subr.bf16.mxu0 0
    %1431 = vmatpush1.bf16.msra.mxu0 0
    %1432 = vmatprep.subr.bf16.mxu0 0
    %1433 = vmatpush1.bf16.msra.mxu0 0
    %1434 = vmatprep.subr.bf16.mxu0 0
    %1435 = vmatpush1.bf16.msra.mxu0 0
    %1436 = vmatprep.subr.bf16.mxu0 0
    %1437 = vmatpush1.bf16.msra.mxu0 0
    %1438 = vmatprep.subr.bf16.mxu0 0
    %1439 = vmatpush1.bf16.msra.mxu0 0
    %1440 = vmatprep.subr.bf16.mxu0 0
    %1441 = vmatpush1.bf16.msra.mxu0 0
    %1442 = vmatprep.subr.bf16.mxu0 0
    %1443 = vmatpush1.bf16.msra.mxu0 0
    %1444 = vmatprep.subr.bf16.mxu0 0
    %1445 = vmatpush1.bf16.msra.mxu0 0
    %1446 = vmatprep.subr.bf16.mxu0 0
    %1447 = vmatpush1.bf16.msra.mxu0 0
    %1448 = vmatprep.subr.bf16.mxu0 0
    %1449 = vmatpush1.bf16.msra.mxu0 0
    %1450 = vmatprep.mubr.bf16.mxu0 0
    %1451 = vmatmul.mubr.bf16.gmra.mrb[0].mxu0 %v456
    %v1452 = vpop.f32.mrb[0].mxu0
    %v1453 = vadd.f32 %v453, %v1452
    %v1454 = vpop.f32.mrb[0].mxu0
    %v1455 = vadd.f32 %v453, %v1454
    %v1456 = vpop.f32.mrb[0].mxu0
    %v1457 = vpop.f32.mrb[0].mxu0
    %1458 = vdwg.mxu0
    %v1459 = vadd.f32 %v1453, %v1455
    %1460 = vadd.xlane.f32.xlu0 %v1459
    %v1461 = vpop.xlane.xlu0 %1460
    %v1462 = vmul.f32 %v1461, %v231
    %v1463 = vmul.f32 %v1453, %v1453
    %v1464 = vmul.f32 %v1455, %v1455
    %v1465 = vadd.f32 %v1463, %v1464
    %1466 = vadd.xlane.f32.xlu0 %v1465
    %v1467 = vpop.xlane.xlu0 %1466
    %v1468 = vmul.f32 %v1467, %v231
    %v1469 = vmul.f32 %v1462, %v1462
    %v1470 = vsub.f32 %v1468, %v1469
    %v1471 = vmax.f32 %v1470, 0.0
    %v1472 = vsub.f32 %v1453, %v1462
    %v1473 = vsub.f32 %v1455, %v1462
    %v1474 = vadd.f32 %v1471, 1e-05
    %v1475 = vrsqrt.pop %v1474
    %v1476 = vmul.f32 %v1472, %v1475
    %v1477 = vmul.f32 %v1473, %v1475
    %v1478 = vmax.f32 %v1476, 0.0
    %v1479 = vmax.f32 %v1477, 0.0
    %v1480 = vadd.f32 %v1478, %v1300
    %v1481 = vadd.f32 %v1479, %v1301
    %1482 = vrot.lane.b32.xlu0 %v1480, 1
    %v1483 = vpop.permute.xlu0 %1482
    %1484 = vrot.lane.b32.xlu0 %v1481, 1
    %v1485 = vpop.permute.xlu0 %1484
    %v1486 = vsel %vm310, %v1483, %v1485
    %v1487 = vsel %vm310, %v1485, %v1483
    %v1488 = vmul.f32 %v1487, %v317
    %v1489 = vmul.f32 %v1486, %v321
    %1490 = vrot.lane.b32.xlu0 %v1480, 127
    %v1491 = vpop.permute.xlu0 %1490
    %1492 = vrot.lane.b32.xlu0 %v1481, 127
    %v1493 = vpop.permute.xlu0 %1492
    %v1494 = vsel %vm330, %v1491, %v1493
    %v1495 = vsel %vm330, %v1493, %v1491
    %v1496 = vmul.f32 %v1494, %v337
    %v1497 = vmul.f32 %v1495, %v341
    %v1498 = vpack.c.bf16 %v1480, %v1488
    %v1499 = vpack.c.bf16 %v1481, %v1489
    %v1500 = vpack.c.bf16 %v1496, %v1496
    %v1501 = vpack.c.bf16 %v1497, %v1497
    %v1503 = vsel %vm359, %v1500, 0
    %v1506 = vsel %vm359, %v1501, 0
    %1508 = vmatprep.subr.bf16.mxu0 %v1499
    %1509 = vmatpush1.bf16.msra.mxu0 %v1498
    %1510 = vmatprep.subr.bf16.mxu0 %v1506
    %1511 = vmatpush1.bf16.msra.mxu0 %v1503
    %1512 = vmatprep.subr.bf16.mxu0 0
    %1513 = vmatpush1.bf16.msra.mxu0 0
    %1514 = vmatprep.subr.bf16.mxu0 0
    %1515 = vmatpush1.bf16.msra.mxu0 0
    %1516 = vmatprep.subr.bf16.mxu0 0
    %1517 = vmatpush1.bf16.msra.mxu0 0
    %1518 = vmatprep.subr.bf16.mxu0 0
    %1519 = vmatpush1.bf16.msra.mxu0 0
    %1520 = vmatprep.subr.bf16.mxu0 0
    %1521 = vmatpush1.bf16.msra.mxu0 0
    %1522 = vmatprep.subr.bf16.mxu0 0
    %1523 = vmatpush1.bf16.msra.mxu0 0
    %1524 = vmatprep.subr.bf16.mxu0 0
    %1525 = vmatpush1.bf16.msra.mxu0 0
    %1526 = vmatprep.subr.bf16.mxu0 0
    %1527 = vmatpush1.bf16.msra.mxu0 0
    %1528 = vmatprep.subr.bf16.mxu0 0
    %1529 = vmatpush1.bf16.msra.mxu0 0
    %1530 = vmatprep.subr.bf16.mxu0 0
    %1531 = vmatpush1.bf16.msra.mxu0 0
    %1532 = vmatprep.subr.bf16.mxu0 0
    %1533 = vmatpush1.bf16.msra.mxu0 0
    %1534 = vmatprep.subr.bf16.mxu0 0
    %1535 = vmatpush1.bf16.msra.mxu0 0
    %1536 = vmatprep.subr.bf16.mxu0 0
    %1537 = vmatpush1.bf16.msra.mxu0 0
    %1538 = vmatprep.subr.bf16.mxu0 0
    %1539 = vmatpush1.bf16.msra.mxu0 0
    %1540 = vmatprep.mubr.bf16.mxu0 0
    %1541 = vmatmul.mubr.bf16.gmra.mrb[0].mxu0 %v554
    %v1542 = vpop.f32.mrb[0].mxu0
    %v1543 = vadd.f32 %v551, %v1542
    %v1544 = vpop.f32.mrb[0].mxu0
    %v1545 = vadd.f32 %v551, %v1544
    %v1546 = vpop.f32.mrb[0].mxu0
    %v1547 = vpop.f32.mrb[0].mxu0
    %1548 = vdwg.mxu0
    %v1549 = vadd.f32 %v1543, %v1545
    %1550 = vadd.xlane.f32.xlu0 %v1549
    %v1551 = vpop.xlane.xlu0 %1550
    %v1552 = vmul.f32 %v1551, %v231
    %v1553 = vmul.f32 %v1543, %v1543
    %v1554 = vmul.f32 %v1545, %v1545
    %v1555 = vadd.f32 %v1553, %v1554
    %1556 = vadd.xlane.f32.xlu0 %v1555
    %v1557 = vpop.xlane.xlu0 %1556
    %v1558 = vmul.f32 %v1557, %v231
    %v1559 = vmul.f32 %v1552, %v1552
    %v1560 = vsub.f32 %v1558, %v1559
    %v1561 = vmax.f32 %v1560, 0.0
    %v1562 = vsub.f32 %v1543, %v1552
    %v1563 = vsub.f32 %v1545, %v1552
    %v1564 = vadd.f32 %v1561, 1e-05
    %v1565 = vrsqrt.pop %v1564
    %v1566 = vmul.f32 %v1562, %v1565
    %v1567 = vmul.f32 %v1563, %v1565
    %v1568 = vmax.f32 %v1566, 0.0
    %v1569 = vmax.f32 %v1567, 0.0
    %v1570 = vpack.c.bf16 %v1388, %v1294
    %v1571 = vpack.c.bf16 %v1389, %v1295
    %v1572 = vpack.c.bf16 %v1568, %v1478
    %v1573 = vpack.c.bf16 %v1569, %v1479
    %1574 = vmatprep.subr.bf16.mxu0 %v1571
    %1575 = vmatpush1.bf16.msra.mxu0 %v1570
    %1576 = vmatprep.subr.bf16.mxu0 %v1573
    %1577 = vmatpush1.bf16.msra.mxu0 %v1572
    %1578 = vmatprep.subr.bf16.mxu0 0
    %1579 = vmatpush1.bf16.msra.mxu0 0
    %1580 = vmatprep.subr.bf16.mxu0 0
    %1581 = vmatpush1.bf16.msra.mxu0 0
    %1582 = vmatprep.subr.bf16.mxu0 0
    %1583 = vmatpush1.bf16.msra.mxu0 0
    %1584 = vmatprep.subr.bf16.mxu0 0
    %1585 = vmatpush1.bf16.msra.mxu0 0
    %1586 = vmatprep.subr.bf16.mxu0 0
    %1587 = vmatpush1.bf16.msra.mxu0 0
    %1588 = vmatprep.subr.bf16.mxu0 0
    %1589 = vmatpush1.bf16.msra.mxu0 0
    %1590 = vmatprep.subr.bf16.mxu0 0
    %1591 = vmatpush1.bf16.msra.mxu0 0
    %1592 = vmatprep.subr.bf16.mxu0 0
    %1593 = vmatpush1.bf16.msra.mxu0 0
    %1594 = vmatprep.subr.bf16.mxu0 0
    %1595 = vmatpush1.bf16.msra.mxu0 0
    %1596 = vmatprep.subr.bf16.mxu0 0
    %1597 = vmatpush1.bf16.msra.mxu0 0
    %1598 = vmatprep.subr.bf16.mxu0 0
    %1599 = vmatpush1.bf16.msra.mxu0 0
    %1600 = vmatprep.subr.bf16.mxu0 0
    %1601 = vmatpush1.bf16.msra.mxu0 0
    %1602 = vmatprep.subr.bf16.mxu0 0
    %1603 = vmatpush1.bf16.msra.mxu0 0
    %1604 = vmatprep.subr.bf16.mxu0 0
    %1605 = vmatpush1.bf16.msra.mxu0 0
    %1606 = vmatprep.mubr.bf16.mxu0 0
    %1607 = vmatmul.mubr.bf16.gmra.mrb[0].mxu0 %v660
    %v1608 = vpop.f32.mrb[0].mxu0
    %v1609 = vadd.f32 %v631, %v1608
    %v1610 = vpop.f32.mrb[0].mxu0
    %v1611 = vadd.f32 %v631, %v1610
    %v1612 = vpop.f32.mrb[0].mxu0
    %v1613 = vadd.f32 %v636, %v1612
    %v1614 = vpop.f32.mrb[0].mxu0
    %v1615 = vadd.f32 %v636, %v1614
    %1616 = vmatprep.mubr.bf16.mxu0 0
    %1617 = vmatmul.mubr.bf16.gmra.mrb[0].mxu0 %v663
    %v1618 = vpop.f32.mrb[0].mxu0
    %v1619 = vadd.f32 %v641, %v1618
    %v1620 = vpop.f32.mrb[0].mxu0
    %v1621 = vadd.f32 %v641, %v1620
    %v1622 = vpop.f32.mrb[0].mxu0
    %v1623 = vadd.f32 %v646, %v1622
    %v1624 = vpop.f32.mrb[0].mxu0
    %v1625 = vadd.f32 %v646, %v1624
    %1626 = vdwg.mxu0
    %1627 = vrot.lane.b32.xlu0 %v1613, 16
    %v1628 = vpop.permute.xlu0 %1627
    %1629 = vrot.lane.b32.xlu0 %v1615, 16
    %v1630 = vpop.permute.xlu0 %1629
    %v1631 = vsel %vm722, %v1628, %v1630
    %v1632 = vsel %vm722, %v1630, %v1628
    %v1633 = vmul.f32 %v1632, %v729
    %v1634 = vmul.f32 %v1631, %v733
    %1635 = vrot.lane.b32.xlu0 %v1613, 112
    %v1636 = vpop.permute.xlu0 %1635
    %1637 = vrot.lane.b32.xlu0 %v1615, 112
    %v1638 = vpop.permute.xlu0 %1637
    %v1639 = vsel %vm742, %v1636, %v1638
    %v1640 = vsel %vm742, %v1638, %v1636
    %v1641 = vmul.f32 %v1639, %v749
    %v1642 = vmul.f32 %v1640, %v753
    %v1643 = vpack.c.bf16 %v1613, %v1633
    %v1644 = vpack.c.bf16 %v1615, %v1634
    %v1645 = vpack.c.bf16 %v1641, %v1641
    %v1646 = vpack.c.bf16 %v1642, %v1642
    %v1648 = vsel %vm359, %v1645, 0
    %v1651 = vsel %vm359, %v1646, 0
    %1653 = vmatprep.subr.bf16.mxu0 %v1644
    %1654 = vmatpush1.bf16.msra.mxu0 %v1643
    %1655 = vmatprep.subr.bf16.mxu0 %v1651
    %1656 = vmatpush1.bf16.msra.mxu0 %v1648
    %1657 = vmatprep.subr.bf16.mxu0 0
    %1658 = vmatpush1.bf16.msra.mxu0 0
    %1659 = vmatprep.subr.bf16.mxu0 0
    %1660 = vmatpush1.bf16.msra.mxu0 0
    %1661 = vmatprep.subr.bf16.mxu0 0
    %1662 = vmatpush1.bf16.msra.mxu0 0
    %1663 = vmatprep.subr.bf16.mxu0 0
    %1664 = vmatpush1.bf16.msra.mxu0 0
    %1665 = vmatprep.subr.bf16.mxu0 0
    %1666 = vmatpush1.bf16.msra.mxu0 0
    %1667 = vmatprep.subr.bf16.mxu0 0
    %1668 = vmatpush1.bf16.msra.mxu0 0
    %1669 = vmatprep.subr.bf16.mxu0 0
    %1670 = vmatpush1.bf16.msra.mxu0 0
    %1671 = vmatprep.subr.bf16.mxu0 0
    %1672 = vmatpush1.bf16.msra.mxu0 0
    %1673 = vmatprep.subr.bf16.mxu0 0
    %1674 = vmatpush1.bf16.msra.mxu0 0
    %1675 = vmatprep.subr.bf16.mxu0 0
    %1676 = vmatpush1.bf16.msra.mxu0 0
    %1677 = vmatprep.subr.bf16.mxu0 0
    %1678 = vmatpush1.bf16.msra.mxu0 0
    %1679 = vmatprep.subr.bf16.mxu0 0
    %1680 = vmatpush1.bf16.msra.mxu0 0
    %1681 = vmatprep.subr.bf16.mxu0 0
    %1682 = vmatpush1.bf16.msra.mxu0 0
    %1683 = vmatprep.subr.bf16.mxu0 0
    %1684 = vmatpush1.bf16.msra.mxu0 0
    %1685 = vmatprep.mubr.bf16.mxu0 0
    %1686 = vmatmul.mubr.bf16.gmra.mrb[0].mxu0 %v768
    %v1687 = vpop.f32.mrb[0].mxu0
    %v1688 = vadd.f32 %v765, %v1687
    %v1689 = vpop.f32.mrb[0].mxu0
    %v1690 = vadd.f32 %v765, %v1689
    %v1691 = vpop.f32.mrb[0].mxu0
    %v1692 = vpop.f32.mrb[0].mxu0
    %1693 = vdwg.mxu0
    %v1694 = vadd.f32 %v1688, %v1690
    %1695 = vadd.xlane.f32.xlu0 %v1694
    %v1696 = vpop.xlane.xlu0 %1695
    %v1697 = vmul.f32 %v1696, %v231
    %v1698 = vmul.f32 %v1688, %v1688
    %v1699 = vmul.f32 %v1690, %v1690
    %v1700 = vadd.f32 %v1698, %v1699
    %1701 = vadd.xlane.f32.xlu0 %v1700
    %v1702 = vpop.xlane.xlu0 %1701
    %v1703 = vmul.f32 %v1702, %v231
    %v1704 = vmul.f32 %v1697, %v1697
    %v1705 = vsub.f32 %v1703, %v1704
    %v1706 = vmax.f32 %v1705, 0.0
    %v1707 = vsub.f32 %v1688, %v1697
    %v1708 = vsub.f32 %v1690, %v1697
    %v1709 = vadd.f32 %v1706, 1e-05
    %v1710 = vrsqrt.pop %v1709
    %v1711 = vmul.f32 %v1707, %v1710
    %v1712 = vmul.f32 %v1708, %v1710
    %v1713 = vmax.f32 %v1711, 0.0
    %v1714 = vmax.f32 %v1712, 0.0
    %v1715 = vadd.f32 %v1713, %v1619
    %v1716 = vadd.f32 %v1714, %v1621
    %1717 = vrot.lane.b32.xlu0 %v1715, 16
    %v1718 = vpop.permute.xlu0 %1717
    %1719 = vrot.lane.b32.xlu0 %v1716, 16
    %v1720 = vpop.permute.xlu0 %1719
    %v1721 = vsel %vm722, %v1718, %v1720
    %v1722 = vsel %vm722, %v1720, %v1718
    %v1723 = vmul.f32 %v1722, %v729
    %v1724 = vmul.f32 %v1721, %v733
    %1725 = vrot.lane.b32.xlu0 %v1715, 112
    %v1726 = vpop.permute.xlu0 %1725
    %1727 = vrot.lane.b32.xlu0 %v1716, 112
    %v1728 = vpop.permute.xlu0 %1727
    %v1729 = vsel %vm742, %v1726, %v1728
    %v1730 = vsel %vm742, %v1728, %v1726
    %v1731 = vmul.f32 %v1729, %v749
    %v1732 = vmul.f32 %v1730, %v753
    %v1733 = vpack.c.bf16 %v1715, %v1723
    %v1734 = vpack.c.bf16 %v1716, %v1724
    %v1735 = vpack.c.bf16 %v1731, %v1731
    %v1736 = vpack.c.bf16 %v1732, %v1732
    %v1738 = vsel %vm359, %v1735, 0
    %v1741 = vsel %vm359, %v1736, 0
    %1743 = vmatprep.subr.bf16.mxu0 %v1734
    %1744 = vmatpush1.bf16.msra.mxu0 %v1733
    %1745 = vmatprep.subr.bf16.mxu0 %v1741
    %1746 = vmatpush1.bf16.msra.mxu0 %v1738
    %1747 = vmatprep.subr.bf16.mxu0 0
    %1748 = vmatpush1.bf16.msra.mxu0 0
    %1749 = vmatprep.subr.bf16.mxu0 0
    %1750 = vmatpush1.bf16.msra.mxu0 0
    %1751 = vmatprep.subr.bf16.mxu0 0
    %1752 = vmatpush1.bf16.msra.mxu0 0
    %1753 = vmatprep.subr.bf16.mxu0 0
    %1754 = vmatpush1.bf16.msra.mxu0 0
    %1755 = vmatprep.subr.bf16.mxu0 0
    %1756 = vmatpush1.bf16.msra.mxu0 0
    %1757 = vmatprep.subr.bf16.mxu0 0
    %1758 = vmatpush1.bf16.msra.mxu0 0
    %1759 = vmatprep.subr.bf16.mxu0 0
    %1760 = vmatpush1.bf16.msra.mxu0 0
    %1761 = vmatprep.subr.bf16.mxu0 0
    %1762 = vmatpush1.bf16.msra.mxu0 0
    %1763 = vmatprep.subr.bf16.mxu0 0
    %1764 = vmatpush1.bf16.msra.mxu0 0
    %1765 = vmatprep.subr.bf16.mxu0 0
    %1766 = vmatpush1.bf16.msra.mxu0 0
    %1767 = vmatprep.subr.bf16.mxu0 0
    %1768 = vmatpush1.bf16.msra.mxu0 0
    %1769 = vmatprep.subr.bf16.mxu0 0
    %1770 = vmatpush1.bf16.msra.mxu0 0
    %1771 = vmatprep.subr.bf16.mxu0 0
    %1772 = vmatpush1.bf16.msra.mxu0 0
    %1773 = vmatprep.subr.bf16.mxu0 0
    %1774 = vmatpush1.bf16.msra.mxu0 0
    %1775 = vmatprep.mubr.bf16.mxu0 0
    %1776 = vmatmul.mubr.bf16.gmra.mrb[0].mxu0 %v866
    %v1777 = vpop.f32.mrb[0].mxu0
    %v1778 = vadd.f32 %v863, %v1777
    %v1779 = vpop.f32.mrb[0].mxu0
    %v1780 = vadd.f32 %v863, %v1779
    %v1781 = vpop.f32.mrb[0].mxu0
    %v1782 = vpop.f32.mrb[0].mxu0
    %1783 = vdwg.mxu0
    %v1784 = vadd.f32 %v1778, %v1780
    %1785 = vadd.xlane.f32.xlu0 %v1784
    %v1786 = vpop.xlane.xlu0 %1785
    %v1787 = vmul.f32 %v1786, %v231
    %v1788 = vmul.f32 %v1778, %v1778
    %v1789 = vmul.f32 %v1780, %v1780
    %v1790 = vadd.f32 %v1788, %v1789
    %1791 = vadd.xlane.f32.xlu0 %v1790
    %v1792 = vpop.xlane.xlu0 %1791
    %v1793 = vmul.f32 %v1792, %v231
    %v1794 = vmul.f32 %v1787, %v1787
    %v1795 = vsub.f32 %v1793, %v1794
    %v1796 = vmax.f32 %v1795, 0.0
    %v1797 = vsub.f32 %v1778, %v1787
    %v1798 = vsub.f32 %v1780, %v1787
    %v1799 = vadd.f32 %v1796, 1e-05
    %v1800 = vrsqrt.pop %v1799
    %v1801 = vmul.f32 %v1797, %v1800
    %v1802 = vmul.f32 %v1798, %v1800
    %v1803 = vmax.f32 %v1801, 0.0
    %v1804 = vmax.f32 %v1802, 0.0
    %v1805 = vadd.f32 %v1803, %v1623
    %v1806 = vadd.f32 %v1804, %v1625
    %1807 = vrot.lane.b32.xlu0 %v1805, 16
    %v1808 = vpop.permute.xlu0 %1807
    %1809 = vrot.lane.b32.xlu0 %v1806, 16
    %v1810 = vpop.permute.xlu0 %1809
    %v1811 = vsel %vm722, %v1808, %v1810
    %v1812 = vsel %vm722, %v1810, %v1808
    %v1813 = vmul.f32 %v1812, %v729
    %v1814 = vmul.f32 %v1811, %v733
    %1815 = vrot.lane.b32.xlu0 %v1805, 112
    %v1816 = vpop.permute.xlu0 %1815
    %1817 = vrot.lane.b32.xlu0 %v1806, 112
    %v1818 = vpop.permute.xlu0 %1817
    %v1819 = vsel %vm742, %v1816, %v1818
    %v1820 = vsel %vm742, %v1818, %v1816
    %v1821 = vmul.f32 %v1819, %v749
    %v1822 = vmul.f32 %v1820, %v753
    %v1823 = vpack.c.bf16 %v1805, %v1813
    %v1824 = vpack.c.bf16 %v1806, %v1814
    %v1825 = vpack.c.bf16 %v1821, %v1821
    %v1826 = vpack.c.bf16 %v1822, %v1822
    %v1828 = vsel %vm359, %v1825, 0
    %v1831 = vsel %vm359, %v1826, 0
    %1833 = vmatprep.subr.bf16.mxu0 %v1824
    %1834 = vmatpush1.bf16.msra.mxu0 %v1823
    %1835 = vmatprep.subr.bf16.mxu0 %v1831
    %1836 = vmatpush1.bf16.msra.mxu0 %v1828
    %1837 = vmatprep.subr.bf16.mxu0 0
    %1838 = vmatpush1.bf16.msra.mxu0 0
    %1839 = vmatprep.subr.bf16.mxu0 0
    %1840 = vmatpush1.bf16.msra.mxu0 0
    %1841 = vmatprep.subr.bf16.mxu0 0
    %1842 = vmatpush1.bf16.msra.mxu0 0
    %1843 = vmatprep.subr.bf16.mxu0 0
    %1844 = vmatpush1.bf16.msra.mxu0 0
    %1845 = vmatprep.subr.bf16.mxu0 0
    %1846 = vmatpush1.bf16.msra.mxu0 0
    %1847 = vmatprep.subr.bf16.mxu0 0
    %1848 = vmatpush1.bf16.msra.mxu0 0
    %1849 = vmatprep.subr.bf16.mxu0 0
    %1850 = vmatpush1.bf16.msra.mxu0 0
    %1851 = vmatprep.subr.bf16.mxu0 0
    %1852 = vmatpush1.bf16.msra.mxu0 0
    %1853 = vmatprep.subr.bf16.mxu0 0
    %1854 = vmatpush1.bf16.msra.mxu0 0
    %1855 = vmatprep.subr.bf16.mxu0 0
    %1856 = vmatpush1.bf16.msra.mxu0 0
    %1857 = vmatprep.subr.bf16.mxu0 0
    %1858 = vmatpush1.bf16.msra.mxu0 0
    %1859 = vmatprep.subr.bf16.mxu0 0
    %1860 = vmatpush1.bf16.msra.mxu0 0
    %1861 = vmatprep.subr.bf16.mxu0 0
    %1862 = vmatpush1.bf16.msra.mxu0 0
    %1863 = vmatprep.subr.bf16.mxu0 0
    %1864 = vmatpush1.bf16.msra.mxu0 0
    %1865 = vmatprep.mubr.bf16.mxu0 0
    %1866 = vmatmul.mubr.bf16.gmra.mrb[0].mxu0 %v964
    %v1867 = vpop.f32.mrb[0].mxu0
    %v1868 = vadd.f32 %v961, %v1867
    %v1869 = vpop.f32.mrb[0].mxu0
    %v1870 = vadd.f32 %v961, %v1869
    %v1871 = vpop.f32.mrb[0].mxu0
    %v1872 = vpop.f32.mrb[0].mxu0
    %1873 = vdwg.mxu0
    %v1874 = vadd.f32 %v1868, %v1870
    %1875 = vadd.xlane.f32.xlu0 %v1874
    %v1876 = vpop.xlane.xlu0 %1875
    %v1877 = vmul.f32 %v1876, %v231
    %v1878 = vmul.f32 %v1868, %v1868
    %v1879 = vmul.f32 %v1870, %v1870
    %v1880 = vadd.f32 %v1878, %v1879
    %1881 = vadd.xlane.f32.xlu0 %v1880
    %v1882 = vpop.xlane.xlu0 %1881
    %v1883 = vmul.f32 %v1882, %v231
    %v1884 = vmul.f32 %v1877, %v1877
    %v1885 = vsub.f32 %v1883, %v1884
    %v1886 = vmax.f32 %v1885, 0.0
    %v1887 = vsub.f32 %v1868, %v1877
    %v1888 = vsub.f32 %v1870, %v1877
    %v1889 = vadd.f32 %v1886, 1e-05
    %v1890 = vrsqrt.pop %v1889
    %v1891 = vmul.f32 %v1887, %v1890
    %v1892 = vmul.f32 %v1888, %v1890
    %v1893 = vmax.f32 %v1891, 0.0
    %v1894 = vmax.f32 %v1892, 0.0
    %v1895 = vpack.c.bf16 %v1713, %v1609
    %v1896 = vpack.c.bf16 %v1714, %v1611
    %v1897 = vpack.c.bf16 %v1893, %v1803
    %v1898 = vpack.c.bf16 %v1894, %v1804
    %1899 = vmatprep.subr.bf16.mxu0 %v1896
    %1900 = vmatpush1.bf16.msra.mxu0 %v1895
    %1901 = vmatprep.subr.bf16.mxu0 %v1898
    %1902 = vmatpush1.bf16.msra.mxu0 %v1897
    %1903 = vmatprep.subr.bf16.mxu0 %v1163
    %1904 = vmatpush1.bf16.msra.mxu0 %v1160
    %1905 = vmatprep.subr.bf16.mxu0 0
    %1906 = vmatpush1.bf16.msra.mxu0 0
    %1907 = vmatprep.subr.bf16.mxu0 0
    %1908 = vmatpush1.bf16.msra.mxu0 0
    %1909 = vmatprep.subr.bf16.mxu0 0
    %1910 = vmatpush1.bf16.msra.mxu0 0
    %1911 = vmatprep.subr.bf16.mxu0 0
    %1912 = vmatpush1.bf16.msra.mxu0 0
    %1913 = vmatprep.subr.bf16.mxu0 0
    %1914 = vmatpush1.bf16.msra.mxu0 0
    %1915 = vmatprep.subr.bf16.mxu0 0
    %1916 = vmatpush1.bf16.msra.mxu0 0
    %1917 = vmatprep.subr.bf16.mxu0 0
    %1918 = vmatpush1.bf16.msra.mxu0 0
    %1919 = vmatprep.subr.bf16.mxu0 0
    %1920 = vmatpush1.bf16.msra.mxu0 0
    %1921 = vmatprep.subr.bf16.mxu0 0
    %1922 = vmatpush1.bf16.msra.mxu0 0
    %1923 = vmatprep.subr.bf16.mxu0 0
    %1924 = vmatpush1.bf16.msra.mxu0 0
    %1925 = vmatprep.subr.bf16.mxu0 0
    %1926 = vmatpush1.bf16.msra.mxu0 0
    %1927 = vmatprep.subr.bf16.mxu0 0
    %1928 = vmatpush1.bf16.msra.mxu0 0
    %1929 = vmatprep.subr.bf16.mxu0 0
    %1930 = vmatpush1.bf16.msra.mxu0 0
    %1931 = vmatprep.mubr.bf16.mxu0 0
    %1932 = vmatmul.mubr.bf16.gmra.mrb[0].mxu0 %v1070
    %v1933 = vpop.f32.mrb[0].mxu0
    %v1934 = vadd.f32 %v1041, %v1933
    %v1935 = vpop.f32.mrb[0].mxu0
    %v1936 = vadd.f32 %v1041, %v1935
    %v1937 = vpop.f32.mrb[0].mxu0
    %v1938 = vadd.f32 %v1046, %v1937
    %v1939 = vpop.f32.mrb[0].mxu0
    %v1940 = vadd.f32 %v1046, %v1939
    %1941 = vmatprep.mubr.bf16.mxu0 0
    %1942 = vmatmul.mubr.bf16.gmra.mrb[0].mxu0 %v1073
    %v1943 = vpop.f32.mrb[0].mxu0
    %v1944 = vadd.f32 %v1051, %v1943
    %v1945 = vpop.f32.mrb[0].mxu0
    %v1946 = vadd.f32 %v1051, %v1945
    %v1947 = vpop.f32.mrb[0].mxu0
    %v1948 = vadd.f32 %v1056, %v1947
    %v1949 = vpop.f32.mrb[0].mxu0
    %v1950 = vadd.f32 %v1056, %v1949
    %1951 = vdwg.mxu0
    %v1952 = vadd.f32 %v1934, %v1609
    %v1953 = vadd.f32 %v1936, %v1611
    %v1954 = vadd.f32 %v1938, %v1613
    %v1955 = vadd.f32 %v1940, %v1615
    %v1956 = vadd.f32 %v1944, %v1619
    %v1957 = vadd.f32 %v1946, %v1621
    %v1958 = vadd.f32 %v1948, %v1623
    %v1959 = vadd.f32 %v1950, %v1625
    %v1960 = vmax.f32 %v1952, 0.0
    %v1961 = vmax.f32 %v1953, 0.0
    %v1962 = vmax.f32 %v1954, 0.0
    %v1963 = vmax.f32 %v1955, 0.0
    %v1964 = vmax.f32 %v1956, 0.0
    %v1965 = vmax.f32 %v1957, 0.0
    %v1966 = vmax.f32 %v1958, 0.0
    %v1967 = vmax.f32 %v1959, 0.0
    %s1968 = scalar_lea.vmem [#allocation2], 64
    %1969 = vst [vmem:[%s1968] sm:$0xff] %v1960
    %1970 = vst [vmem:[%s1968 + $0x8] sm:$0xff] %v1961
    %1971 = vst [vmem:[%s1968 + $0x10] sm:$0xff] %v1962
    %1972 = vst [vmem:[%s1968 + $0x18] sm:$0xff] %v1963
    %1973 = vst [vmem:[%s1968 + $0x20] sm:$0xff] %v1964
    %1974 = vst [vmem:[%s1968 + $0x28] sm:$0xff] %v1965
    %1975 = vst [vmem:[%s1968 + $0x30] sm:$0xff] %v1966
    %1976 = vst [vmem:[%s1968 + $0x38] sm:$0xff] %v1967
    // Predicated region
    $region94: #{tpu_custom_call.1} parent=1 // pred_check
      _
    $region95: #{tpu_custom_call.1} parent=1 // pred_check_branch
      %1978 = sbr.rel (0) target = $region97
    $region96: #{tpu_custom_call.1} parent=1 // pred_region
      %s1980 = ssub.s32 2048, 2048
      %1981 = vsyncadd [#allocation3], %s1980
      %s1982 = sshll.u32 [#allocation2], 4
      %s1983 = int_to_ptr.vmem [resolvable:$true] %s1982
      %1988 = dma.vmem_to_hbm [thread:$0]  %s1983, 2048, %s23, [#allocation3], 256, 256, 16
    $region97: #{tpu_custom_call.1} parent=1 // pred_fallthru
      _
    // Predicated region
    $region98: #{tpu_custom_call.1} parent=1 // pred_check
      _
    $region99: #{tpu_custom_call.1} parent=1 // pred_check_branch
      %1990 = sbr.rel (0) target = $region101
    $region100: #{tpu_custom_call.1} parent=1 // pred_region
      %1991 = dma.done [#allocation3], 2048
    $region101: #{tpu_custom_call.1} parent=1 // pred_fallthru
      _
    %1992 = vsyncpa [#allocation3], 1

</llo_original>
